<compile_context>
chip_gen: v7x
topology: tpu7x:2x2x1
jax: 0.10.0
libtpu: 0.0.40
codegen_flags: <defaults>
</compile_context>

<pallas_src>
import numpy as np
import jax
import jax.numpy as jnp
from jax.experimental import pallas as pl
from jax.experimental.pallas import tpu as pltpu

# ----------------------------- small config ---------------------------------
B = 2                          # batch
IMG_C, IMG_H, IMG_W = 3, 16, 16
PATCH = 4
GRID = IMG_H // PATCH          # 4  -> 4x4 patch grid
NUM_PATCHES = GRID * GRID      # 16
SEQ = NUM_PATCHES + 1          # 17 (patches + CLS)
SEQ_PAD = 24                   # per-image token rows, padded to sublane multiple
BSEQ = B * SEQ_PAD             # 48: batch folded into the sublane dim
CPP = IMG_C * PATCH * PATCH    # 48 im2col features per patch
D = 128                        # vision hidden size      (real: 1024)
HEADS = 4
HEAD_DIM = D // HEADS          # 32
MLP_D = 4 * D                  # 512
LAYERS = 3                     # select_layer = -2 -> run LAYERS-1 layers (real: 24)
NL = LAYERS - 1                # active transformer layers
EMB = 256                      # projector out dim       (real: 2048)
GH = GRID // 2                 # pooled token grid side (2)
NTOKP = B * GH * GH            # pooled tokens with batch folded (8)
LN_EPS = 1e-5


# --------------------------- in-kernel helpers -------------------------------
def _quick_gelu(x):
    # CLIP hidden_act = 'quick_gelu'  (kept in f32)
    return x * jax.nn.sigmoid(1.702 * x)


def _erf(x):
    # Abramowitz & Stegun 7.1.26 polynomial (|err| < 1.5e-7): matches exact erf
    # at f32 precision while using only exp/mul/div (guaranteed to lower).
    a1, a2, a3, a4, a5 = 0.254829592, -0.284496736, 1.421413741, -1.453152027, 1.061405429
    p = 0.3275911
    sgn = jnp.where(x >= 0.0, 1.0, -1.0)
    ax = jnp.abs(x)
    t = 1.0 / (1.0 + p * ax)
    poly = ((((a5 * t + a4) * t + a3) * t + a2) * t + a1) * t
    return sgn * (1.0 - poly * jnp.exp(-ax * ax))


def _exact_gelu(x):
    # nn.GELU() default (erf form)
    return 0.5 * x * (1.0 + _erf(x * 0.7071067811865476))


def _layernorm(x, g, b):
    mu = jnp.mean(x, axis=-1, keepdims=True)
    xc = x - mu
    var = jnp.mean(xc * xc, axis=-1, keepdims=True)
    return (xc * jax.lax.rsqrt(var + LN_EPS)) * g + b


# ------------------------------ Pallas kernel --------------------------------
def encoder_kernel(x_ref, pw_ref, poscls_ref, preln_ref,
                   vec_ref, qkvb_ref, f1b_ref,
                   qkvw_ref, ow_ref, f1w_ref, f2w_ref,
                   p1w_ref, p2w_ref, pv_ref, pool_ref, sel_ref,
                   o_ref, h_vmem):
    """Fused embed prologue + encoder layer + LDPv2 projector epilogue.

    grid = (NL,); the f32 residual stream (BSEQ, D) lives in VMEM scratch
    across layers (batch folded into the row dim)."""
    layer = pl.program_id(0)

    # --------- embed prologue: patch conv + CLS + pos-emb + pre-LN ----------
    @pl.when(layer == 0)
    def _():
        emb = jnp.dot(x_ref[...].astype(jnp.bfloat16), pw_ref[...],
                      preferred_element_type=jnp.float32)        # (BSEQ, D)
        h0 = emb + poscls_ref[...]                               # CLS folded in
        h_vmem[...] = _layernorm(h0, preln_ref[0:1, :], preln_ref[1:2, :])
        # pad rows (>= SEQ within each image block) end up as pre-LN beta; they
        # never contaminate valid rows: pad keys are masked in attention and
        # the pooling matrix has zero columns for CLS/pad rows.

    h = h_vmem[...]                                              # (BSEQ, D) f32

    # packed per-layer vectors: [ln1_g, ln1_b, o_b, ln2_g, ln2_b, fc2_b, 0, 0]
    ln1_g = vec_ref[0:1, :]
    ln1_b = vec_ref[1:2, :]
    o_b = vec_ref[2:3, :]
    ln2_g = vec_ref[3:4, :]
    ln2_b = vec_ref[4:5, :]
    fc2_b = vec_ref[5:6, :]

    # ---------------------------- self-attention ----------------------------
    hn = _layernorm(h, ln1_g, ln1_b)
    qkv = jnp.dot(hn.astype(jnp.bfloat16), qkvw_ref[...],        # fused Wq|Wk|Wv
                  preferred_element_type=jnp.float32) + qkvb_ref[...]   # (BSEQ, 3D)

    scale = HEAD_DIM ** -0.5
    q = (qkv[:, 0:D] * scale).reshape(B, SEQ_PAD, D)             # leading-dim split
    k = qkv[:, D:2 * D].reshape(B, SEQ_PAD, D)
    v = qkv[:, 2 * D:3 * D].reshape(B, SEQ_PAD, D)

    # mask padded key positions (CLS at NUM_PATCHES stays visible)
    key_mask = jax.lax.broadcasted_iota(jnp.int32, (B, SEQ_PAD, SEQ_PAD), 2) < SEQ

    heads_out = []
    # TODO(synk): batch all heads in one (B*HEADS)-batched matmul at real scale.
    for hh in range(HEADS):
        lo, hi = hh * HEAD_DIM, (hh + 1) * HEAD_DIM
        qh = q[:, :, lo:hi].astype(jnp.bfloat16)
        kh = k[:, :, lo:hi].astype(jnp.bfloat16)
        vh = v[:, :, lo:hi].astype(jnp.bfloat16)
        s = jnp.einsum('bqd,bkd->bqk', qh, kh,
                       preferred_element_type=jnp.float32)       # f32 scores
        s = jnp.where(key_mask, s, -1e30)                        # mask in f32
        m = jnp.max(s, axis=-1, keepdims=True)
        e = jnp.exp(s - m)
        denom = jnp.sum(e, axis=-1, keepdims=True)
        p = (e * pl.reciprocal(denom, approx=True)).astype(jnp.bfloat16)
        heads_out.append(jnp.einsum('bqk,bkd->bqd', p, vh,
                                    preferred_element_type=jnp.float32))
    attn = jnp.concatenate(heads_out, axis=-1).reshape(BSEQ, D)  # head concat

    h = h + jnp.dot(attn.astype(jnp.bfloat16), ow_ref[...],
                    preferred_element_type=jnp.float32) + o_b    # fused residual

    # --------------------------------- MLP ----------------------------------
    hn2 = _layernorm(h, ln2_g, ln2_b)
    m1 = jnp.dot(hn2.astype(jnp.bfloat16), f1w_ref[...],
                 preferred_element_type=jnp.float32) + f1b_ref[...]
    m1 = _quick_gelu(m1)
    h = h + jnp.dot(m1.astype(jnp.bfloat16), f2w_ref[...],
                    preferred_element_type=jnp.float32) + fc2_b  # fused residual
    h_vmem[...] = h

    # --------- LDPv2 projector epilogue (last layer only) -------------------
    @pl.when(layer == pl.num_programs(0) - 1)
    def _():
        # Linear -> GELU -> Linear on all token rows (CLS/pad rows are dropped
        # for free by the pooling matrix below).
        t = jnp.dot(h.astype(jnp.bfloat16), p1w_ref[...],
                    preferred_element_type=jnp.float32) + pv_ref[9:10, :]
        t = _exact_gelu(t)
        t = jnp.dot(t.astype(jnp.bfloat16), p2w_ref[...],
                    preferred_element_type=jnp.float32) + pv_ref[10:11, :]  # (BSEQ, EMB)

        # 2x2 avg-pool + feature-select as one constant-matrix matmul.
        pooled = jnp.dot(pool_ref[...], t,
                         preferred_element_type=jnp.float32)     # (NTOKP, EMB)

        # PEG depthwise 3x3 (+bias) + residual: one selection matmul then
        # 9 full-tile multiply-accumulates (pv rows 0..8 are the taps).
        taps = jnp.dot(sel_ref[...], pooled,
                       preferred_element_type=jnp.float32)       # (9*NTOKP, EMB)
        out = pooled + pv_ref[11:12, :]                          # x + bias
        for tp in range(9):
            out = out + taps[tp * NTOKP:(tp + 1) * NTOKP, :] * pv_ref[tp:tp + 1, :]
        o_ref[...] = out                                         # single dense store


# ------------------------- constant projector matrices -----------------------
def _pool_matrix():
    """(NTOKP, BSEQ): 2x2 average pool over each image's patch grid; zero
    columns for CLS (row NUM_PATCHES) and pad rows -> also does feature select."""
    m = np.zeros((NTOKP, BSEQ), np.float32)
    for b in range(B):
        for gi in range(GH):
            for gj in range(GH):
                row = b * GH * GH + gi * GH + gj
                for di in range(2):
                    for dj in range(2):
                        tok = b * SEQ_PAD + (2 * gi + di) * GRID + (2 * gj + dj)
                        m[row, tok] = 0.25
    return jnp.asarray(m)


def _peg_select_matrix():
    """(9*NTOKP, NTOKP): for each 3x3 tap, selects the in-bounds neighbour of
    every pooled token (per image); out-of-bounds taps are all-zero rows."""
    m = np.zeros((9 * NTOKP, NTOKP), np.float32)
    for b in range(B):
        for gi in range(GH):
            for gj in range(GH):
                dst = b * GH * GH + gi * GH + gj
                for dy in (-1, 0, 1):
                    for dx in (-1, 0, 1):
                        ni, nj = gi + dy, gj + dx
                        if 0 <= ni < GH and 0 <= nj < GH:
                            tap = (dy + 1) * 3 + (dx + 1)
                            src = b * GH * GH + ni * GH + nj
                            m[tap * NTOKP + dst, src] = 1.0
    return jnp.asarray(m)


# ------------------------------ pallas wrapper --------------------------------
def encoder_call(x_tok, p):
    def const2(r, c):                       # fetched once (constant block index)
        return pl.BlockSpec((r, c), lambda l: (0, 0))

    def perlayer(r, c):                     # one block per layer step
        return pl.BlockSpec((None, r, c), lambda l: (l, 0, 0))

    return pl.pallas_call(
        encoder_kernel,
        grid=(NL,),
        in_specs=[
            const2(BSEQ, CPP),              # im2col tokens (CLS/pad rows zero)
            const2(CPP, D),                 # patch-embed weight (bf16)
            const2(BSEQ, D),                # pos emb (+CLS token folded in)
            const2(2, D),                   # pre-LN gamma/beta
            perlayer(8, D),                 # packed per-layer vectors
            perlayer(1, 3 * D),             # qkv bias
            perlayer(1, MLP_D),             # fc1 bias
            perlayer(D, 3 * D),             # fused QKV weight (bf16)
            perlayer(D, D),                 # out-proj weight (bf16)
            perlayer(D, MLP_D),             # fc1 weight (bf16)
            perlayer(MLP_D, D),             # fc2 weight (bf16)
            const2(D, EMB),                 # projector linear 1 (bf16)
            const2(EMB, EMB),               # projector linear 2 (bf16)
            const2(12, EMB),                # packed: PEG taps(9)|p1_b|p2_b|peg_b
            const2(NTOKP, BSEQ),            # pooling matrix
            const2(9 * NTOKP, NTOKP),       # PEG neighbour-selection matrix
        ],
        out_specs=pl.BlockSpec((NTOKP, EMB), lambda l: (0, 0)),
        out_shape=jax.ShapeDtypeStruct((NTOKP, EMB), jnp.float32),
        scratch_shapes=[pltpu.VMEM((BSEQ, D), jnp.float32)],     # residual stream
        compiler_params=pltpu.CompilerParams(
            dimension_semantics=("arbitrary",),                  # layer carry
            vmem_limit_bytes=32 * 1024 * 1024),
    )(x_tok, p["patch_w"], p["poscls"], p["pre_ln"],
      p["layer_vec"], p["qkv_b"], p["fc1_b"],
      p["qkv_w"], p["o_w"], p["fc1_w"], p["fc2_w"],
      p["p1_w"], p["p2_w"], p["proj_vec"], p["pool_mat"], p["peg_sel"])


# ------------------------------ parameters -----------------------------------
def init_params(key):
    ks = iter(jax.random.split(key, 32))

    def nrm(shape, scale=0.02):
        return (scale * jax.random.normal(next(ks), shape)).astype(jnp.float32)

    # CLS token kept at row NUM_PATCHES of each SEQ_PAD block (patch rows are
    # contiguous & sublane-aligned from row 0); CLS embedding + its pos emb are
    # folded directly into the additive pos array (its im2col pixels are zero).
    cls = nrm((D,))
    pos = nrm((SEQ, D))                     # CLIP order: row 0 = CLS position
    block = jnp.zeros((SEQ_PAD, D), jnp.float32)
    block = block.at[:NUM_PATCHES].set(pos[1:])
    block = block.at[NUM_PATCHES].set(pos[0] + cls)
    poscls = jnp.tile(block, (B, 1))        # (BSEQ, D)

    pre_ln = jnp.concatenate([jnp.ones((1, D), jnp.float32), nrm((1, D))], axis=0)

    # packed per-layer vectors: [ln1_g, ln1_b, o_b, ln2_g, ln2_b, fc2_b, 0, 0]
    layer_vec = jnp.zeros((NL, 8, D), jnp.float32)
    layer_vec = layer_vec.at[:, 0].set(1.0)
    layer_vec = layer_vec.at[:, 1].set(nrm((NL, D)))
    layer_vec = layer_vec.at[:, 2].set(nrm((NL, D)))
    layer_vec = layer_vec.at[:, 3].set(1.0)
    layer_vec = layer_vec.at[:, 4].set(nrm((NL, D)))
    layer_vec = layer_vec.at[:, 5].set(nrm((NL, D)))

    # packed projector vectors: rows 0..8 = PEG depthwise taps, 9=p1_b, 10=p2_b,
    # 11 = PEG bias
    proj_vec = jnp.concatenate(
        [nrm((9, EMB)), nrm((1, EMB)), nrm((1, EMB)), nrm((1, EMB))], axis=0)

    return {
        "patch_w": nrm((CPP, D)).astype(jnp.bfloat16),
        "poscls": poscls,
        "pre_ln": pre_ln,
        "layer_vec": layer_vec,
        "qkv_b": nrm((NL, 1, 3 * D)),
        "fc1_b": nrm((NL, 1, MLP_D)),
        "qkv_w": nrm((NL, D, 3 * D)).astype(jnp.bfloat16),
        "o_w": nrm((NL, D, D)).astype(jnp.bfloat16),
        "fc1_w": nrm((NL, D, MLP_D)).astype(jnp.bfloat16),
        "fc2_w": nrm((NL, MLP_D, D)).astype(jnp.bfloat16),
        "p1_w": nrm((D, EMB)).astype(jnp.bfloat16),
        "p2_w": nrm((EMB, EMB)).astype(jnp.bfloat16),
        "proj_vec": proj_vec,
        "pool_mat": _pool_matrix(),
        "peg_sel": _peg_select_matrix(),
    }


# ------------------------------ forward pass ---------------------------------
def mobilevlm_vision_encoder(image, params):
    """image: (B, C, H, W) float32 (NCHW, like PyTorch). Returns (B, N/4, EMB)."""
    assert image.shape[0] == B
    # im2col of the non-overlapping patch conv; CLS slot (zero pixels) and pad
    # rows appended per image, batch folded into the row dim.  Input formatting
    # only — all compute happens inside the single fused kernel.
    x = image.reshape(B, IMG_C, GRID, PATCH, GRID, PATCH)
    x = x.transpose(0, 2, 4, 1, 3, 5).reshape(B, NUM_PATCHES, CPP)
    x = jnp.pad(x, ((0, 0), (0, SEQ_PAD - NUM_PATCHES), (0, 0)))
    x_tok = x.reshape(BSEQ, CPP)

    out = encoder_call(x_tok, params)       # (B*GH*GH, EMB)
    return out.reshape(B, GH * GH, EMB)


# ---------------------------------- main -------------------------------------
if __name__ == "__main__":
    root = jax.random.PRNGKey(0)
    k_params, k_img = jax.random.split(root)
    params = init_params(k_params)
    image = jax.random.normal(k_img, (B, IMG_C, IMG_H, IMG_W), jnp.float32)

    out = jax.block_until_ready(mobilevlm_vision_encoder(image, params))

    expected = (B, GH * GH, EMB)
    assert out.shape == expected, (out.shape, expected)
    assert bool(jnp.all(jnp.isfinite(out)))
    print("KERNEL_OK")
</pallas_src>

<mosaic_0001>
module attributes {stable_mosaic.version = 11 : i64} {
  func.func @encoder_kernel(%arg0: i32, %arg1: memref<48x48xf32, #tpu.memory_space<vmem>>, %arg2: memref<48x128xbf16, #tpu.memory_space<vmem>>, %arg3: memref<48x128xf32, #tpu.memory_space<vmem>>, %arg4: memref<2x128xf32, #tpu.memory_space<vmem>>, %arg5: memref<1x8x128xf32, #tpu.memory_space<vmem>>, %arg6: memref<1x1x384xf32, #tpu.memory_space<vmem>>, %arg7: memref<1x1x512xf32, #tpu.memory_space<vmem>>, %arg8: memref<1x128x384xbf16, #tpu.memory_space<vmem>>, %arg9: memref<1x128x128xbf16, #tpu.memory_space<vmem>>, %arg10: memref<1x128x512xbf16, #tpu.memory_space<vmem>>, %arg11: memref<1x512x128xbf16, #tpu.memory_space<vmem>>, %arg12: memref<128x256xbf16, #tpu.memory_space<vmem>>, %arg13: memref<256x256xbf16, #tpu.memory_space<vmem>>, %arg14: memref<12x256xf32, #tpu.memory_space<vmem>>, %arg15: memref<8x48xf32, #tpu.memory_space<vmem>>, %arg16: memref<72x8xf32, #tpu.memory_space<vmem>>, %arg17: memref<8x256xf32, #tpu.memory_space<vmem>>, %arg18: memref<48x128xf32, #tpu.memory_space<vmem>>) attributes {dimension_semantics = [#tpu.dimension_semantics<arbitrary>], iteration_bounds = array<i64: 2>, scalar_prefetch = 0 : i64, scratch_operands = 1 : i64, tpu.core_type = #tpu.core_type<tc>, window_params = [{pipeline_mode = #tpu.pipeline_mode<synchronous>, transform_indices = @transform_0, window_bounds = array<i64: 48, 48>}, {pipeline_mode = #tpu.pipeline_mode<synchronous>, transform_indices = @transform_1, window_bounds = array<i64: 48, 128>}, {pipeline_mode = #tpu.pipeline_mode<synchronous>, transform_indices = @transform_2, window_bounds = array<i64: 48, 128>}, {pipeline_mode = #tpu.pipeline_mode<synchronous>, transform_indices = @transform_3, window_bounds = array<i64: 2, 128>}, {transform_indices = @transform_4, window_bounds = array<i64: 1, 8, 128>}, {transform_indices = @transform_5, window_bounds = array<i64: 1, 1, 384>}, {transform_indices = @transform_6, window_bounds = array<i64: 1, 1, 512>}, {transform_indices = @transform_7, window_bounds = array<i64: 1, 128, 384>}, {transform_indices = @transform_8, window_bounds = array<i64: 1, 128, 128>}, {transform_indices = @transform_9, window_bounds = array<i64: 1, 128, 512>}, {transform_indices = @transform_10, window_bounds = array<i64: 1, 512, 128>}, {pipeline_mode = #tpu.pipeline_mode<synchronous>, transform_indices = @transform_11, window_bounds = array<i64: 128, 256>}, {pipeline_mode = #tpu.pipeline_mode<synchronous>, transform_indices = @transform_12, window_bounds = array<i64: 256, 256>}, {pipeline_mode = #tpu.pipeline_mode<synchronous>, transform_indices = @transform_13, window_bounds = array<i64: 12, 256>}, {pipeline_mode = #tpu.pipeline_mode<synchronous>, transform_indices = @transform_14, window_bounds = array<i64: 8, 48>}, {pipeline_mode = #tpu.pipeline_mode<synchronous>, transform_indices = @transform_15, window_bounds = array<i64: 72, 8>}, {pipeline_mode = #tpu.pipeline_mode<synchronous>, transform_indices = @transform_16, window_bounds = array<i64: 8, 256>}]} {
    %c0_i32 = arith.constant 0 : i32
    %0 = arith.cmpi eq, %arg0, %c0_i32 : i32
    %1 = arith.extui %0 : i1 to i32
    %c0_i32_0 = arith.constant 0 : i32
    %2 = arith.cmpi ne, %1, %c0_i32_0 : i32
    scf.if %2 {
      %c0_72 = arith.constant 0 : index
      %c0_73 = arith.constant 0 : index
      %195 = vector.load %arg1[%c0_72, %c0_73] : memref<48x48xf32, #tpu.memory_space<vmem>>, vector<48x48xf32>
      %196 = arith.truncf %195 : vector<48x48xf32> to vector<48x48xbf16>
      %c0_74 = arith.constant 0 : index
      %c0_75 = arith.constant 0 : index
      %197 = vector.load %arg2[%c0_74, %c0_75] : memref<48x128xbf16, #tpu.memory_space<vmem>>, vector<48x128xbf16>
      %cst_76 = arith.constant dense<0.000000e+00> : vector<48x128xf32>
      %198 = tpu.matmul %196, %197, %cst_76 {dimension_numbers = #tpu.dot_dimension_numbers<[1], [0], [0], [1], [0, 0, 1, 1], [], []>} : vector<48x48xbf16>, vector<48x128xbf16>, vector<48x128xf32> -> vector<48x128xf32>
      %c0_77 = arith.constant 0 : index
      %c0_78 = arith.constant 0 : index
      %199 = vector.load %arg3[%c0_77, %c0_78] : memref<48x128xf32, #tpu.memory_space<vmem>>, vector<48x128xf32>
      %200 = arith.addf %198, %199 : vector<48x128xf32>
      %c0_79 = arith.constant 0 : index
      %c0_80 = arith.constant 0 : index
      %201 = vector.load %arg4[%c0_79, %c0_80] : memref<2x128xf32, #tpu.memory_space<vmem>>, vector<1x128xf32>
      %c1_81 = arith.constant 1 : index
      %c0_82 = arith.constant 0 : index
      %202 = vector.load %arg4[%c1_81, %c0_82] : memref<2x128xf32, #tpu.memory_space<vmem>>, vector<1x128xf32>
      %cst_83 = arith.constant dense<0.000000e+00> : vector<48xf32>
      %203 = vector.multi_reduction <add>, %200, %cst_83 [1] : vector<48x128xf32> to vector<48xf32>
      %204 = vector.shape_cast %203 : vector<48xf32> to vector<48x1xf32>
      %cst_84 = arith.constant 1.280000e+02 : f32
      %205 = vector.broadcast %cst_84 : f32 to vector<48x1xf32>
      %206 = arith.divf %204, %205 : vector<48x1xf32>
      %207 = vector.broadcast %206 : vector<48x1xf32> to vector<48x128xf32>
      %208 = arith.subf %200, %207 : vector<48x128xf32>
      %209 = arith.mulf %208, %208 : vector<48x128xf32>
      %cst_85 = arith.constant dense<0.000000e+00> : vector<48xf32>
      %210 = vector.multi_reduction <add>, %209, %cst_85 [1] : vector<48x128xf32> to vector<48xf32>
      %211 = vector.shape_cast %210 : vector<48xf32> to vector<48x1xf32>
      %cst_86 = arith.constant 1.280000e+02 : f32
      %212 = vector.broadcast %cst_86 : f32 to vector<48x1xf32>
      %213 = arith.divf %211, %212 : vector<48x1xf32>
      %cst_87 = arith.constant 9.99999974E-6 : f32
      %214 = vector.broadcast %cst_87 : f32 to vector<48x1xf32>
      %215 = arith.addf %213, %214 : vector<48x1xf32>
      %216 = math.rsqrt %215 : vector<48x1xf32>
      %217 = vector.broadcast %216 : vector<48x1xf32> to vector<48x128xf32>
      %218 = arith.mulf %208, %217 : vector<48x128xf32>
      %219 = vector.broadcast %201 : vector<1x128xf32> to vector<48x128xf32>
      %220 = arith.mulf %218, %219 : vector<48x128xf32>
      %221 = vector.broadcast %202 : vector<1x128xf32> to vector<48x128xf32>
      %222 = arith.addf %220, %221 : vector<48x128xf32>
      %c0_88 = arith.constant 0 : index
      %c0_89 = arith.constant 0 : index
      %223 = vector.load %arg18[%c0_88, %c0_89] : memref<48x128xf32, #tpu.memory_space<vmem>>, vector<48x128xf32>
      tpu.vector_store %arg18[%c0_88, %c0_89], %222 {strides = array<i32>} : memref<48x128xf32, #tpu.memory_space<vmem>>, vector<48x128xf32>,
    } else {
    }
    %c0 = arith.constant 0 : index
    %c0_1 = arith.constant 0 : index
    %3 = vector.load %arg18[%c0, %c0_1] : memref<48x128xf32, #tpu.memory_space<vmem>>, vector<48x128xf32>
    %c0_2 = arith.constant 0 : index
    %c0_3 = arith.constant 0 : index
    %c0_4 = arith.constant 0 : index
    %4 = vector.load %arg5[%c0_2, %c0_3, %c0_4] : memref<1x8x128xf32, #tpu.memory_space<vmem>>, vector<1x1x128xf32>
    %5 = vector.shape_cast %4 : vector<1x1x128xf32> to vector<1x128xf32>
    %c0_5 = arith.constant 0 : index
    %c1 = arith.constant 1 : index
    %c0_6 = arith.constant 0 : index
    %6 = vector.load %arg5[%c0_5, %c1, %c0_6] : memref<1x8x128xf32, #tpu.memory_space<vmem>>, vector<1x1x128xf32>
    %7 = vector.shape_cast %6 : vector<1x1x128xf32> to vector<1x128xf32>
    %c0_7 = arith.constant 0 : index
    %c2 = arith.constant 2 : index
    %c0_8 = arith.constant 0 : index
    %8 = vector.load %arg5[%c0_7, %c2, %c0_8] : memref<1x8x128xf32, #tpu.memory_space<vmem>>, vector<1x1x128xf32>
    %9 = vector.shape_cast %8 : vector<1x1x128xf32> to vector<1x128xf32>
    %c0_9 = arith.constant 0 : index
    %c3 = arith.constant 3 : index
    %c0_10 = arith.constant 0 : index
    %10 = vector.load %arg5[%c0_9, %c3, %c0_10] : memref<1x8x128xf32, #tpu.memory_space<vmem>>, vector<1x1x128xf32>
    %11 = vector.shape_cast %10 : vector<1x1x128xf32> to vector<1x128xf32>
    %c0_11 = arith.constant 0 : index
    %c4 = arith.constant 4 : index
    %c0_12 = arith.constant 0 : index
    %12 = vector.load %arg5[%c0_11, %c4, %c0_12] : memref<1x8x128xf32, #tpu.memory_space<vmem>>, vector<1x1x128xf32>
    %13 = vector.shape_cast %12 : vector<1x1x128xf32> to vector<1x128xf32>
    %c0_13 = arith.constant 0 : index
    %c5 = arith.constant 5 : index
    %c0_14 = arith.constant 0 : index
    %14 = vector.load %arg5[%c0_13, %c5, %c0_14] : memref<1x8x128xf32, #tpu.memory_space<vmem>>, vector<1x1x128xf32>
    %15 = vector.shape_cast %14 : vector<1x1x128xf32> to vector<1x128xf32>
    %cst = arith.constant dense<0.000000e+00> : vector<48xf32>
    %16 = vector.multi_reduction <add>, %3, %cst [1] : vector<48x128xf32> to vector<48xf32>
    %17 = vector.shape_cast %16 : vector<48xf32> to vector<48x1xf32>
    %cst_15 = arith.constant 1.280000e+02 : f32
    %18 = vector.broadcast %cst_15 : f32 to vector<48x1xf32>
    %19 = arith.divf %17, %18 : vector<48x1xf32>
    %20 = vector.broadcast %19 : vector<48x1xf32> to vector<48x128xf32>
    %21 = arith.subf %3, %20 : vector<48x128xf32>
    %22 = arith.mulf %21, %21 : vector<48x128xf32>
    %cst_16 = arith.constant dense<0.000000e+00> : vector<48xf32>
    %23 = vector.multi_reduction <add>, %22, %cst_16 [1] : vector<48x128xf32> to vector<48xf32>
    %24 = vector.shape_cast %23 : vector<48xf32> to vector<48x1xf32>
    %cst_17 = arith.constant 1.280000e+02 : f32
    %25 = vector.broadcast %cst_17 : f32 to vector<48x1xf32>
    %26 = arith.divf %24, %25 : vector<48x1xf32>
    %cst_18 = arith.constant 9.99999974E-6 : f32
    %27 = vector.broadcast %cst_18 : f32 to vector<48x1xf32>
    %28 = arith.addf %26, %27 : vector<48x1xf32>
    %29 = math.rsqrt %28 : vector<48x1xf32>
    %30 = vector.broadcast %29 : vector<48x1xf32> to vector<48x128xf32>
    %31 = arith.mulf %21, %30 : vector<48x128xf32>
    %32 = vector.broadcast %5 : vector<1x128xf32> to vector<48x128xf32>
    %33 = arith.mulf %31, %32 : vector<48x128xf32>
    %34 = vector.broadcast %7 : vector<1x128xf32> to vector<48x128xf32>
    %35 = arith.addf %33, %34 : vector<48x128xf32>
    %36 = arith.truncf %35 : vector<48x128xf32> to vector<48x128xbf16>
    %c0_19 = arith.constant 0 : index
    %c0_20 = arith.constant 0 : index
    %c0_21 = arith.constant 0 : index
    %37 = vector.load %arg8[%c0_19, %c0_20, %c0_21] : memref<1x128x384xbf16, #tpu.memory_space<vmem>>, vector<1x128x384xbf16>
    %38 = vector.shape_cast %37 : vector<1x128x384xbf16> to vector<128x384xbf16>
    %cst_22 = arith.constant dense<0.000000e+00> : vector<48x384xf32>
    %39 = tpu.matmul %36, %38, %cst_22 {dimension_numbers = #tpu.dot_dimension_numbers<[1], [0], [0], [1], [0, 0, 1, 1], [], []>} : vector<48x128xbf16>, vector<128x384xbf16>, vector<48x384xf32> -> vector<48x384xf32>
    %c0_23 = arith.constant 0 : index
    %c0_24 = arith.constant 0 : index
    %c0_25 = arith.constant 0 : index
    %40 = vector.load %arg6[%c0_23, %c0_24, %c0_25] : memref<1x1x384xf32, #tpu.memory_space<vmem>>, vector<1x1x384xf32>
    %41 = vector.shape_cast %40 : vector<1x1x384xf32> to vector<1x384xf32>
    %42 = vector.broadcast %41 : vector<1x384xf32> to vector<48x384xf32>
    %43 = arith.addf %39, %42 : vector<48x384xf32>
    %44 = vector.extract_strided_slice %43 {offsets = [0, 0], sizes = [48, 128], strides = [1, 1]} : vector<48x384xf32> to vector<48x128xf32>
    %cst_26 = arith.constant 0.176776692 : f32
    %45 = vector.broadcast %cst_26 : f32 to vector<48x128xf32>
    %46 = arith.mulf %44, %45 : vector<48x128xf32>
    %47 = vector.shape_cast %46 : vector<48x128xf32> to vector<2x24x128xf32>
    %48 = vector.extract_strided_slice %43 {offsets = [0, 128], sizes = [48, 128], strides = [1, 1]} : vector<48x384xf32> to vector<48x128xf32>
    %49 = vector.shape_cast %48 : vector<48x128xf32> to vector<2x24x128xf32>
    %50 = vector.extract_strided_slice %43 {offsets = [0, 256], sizes = [48, 128], strides = [1, 1]} : vector<48x384xf32> to vector<48x128xf32>
    %51 = vector.shape_cast %50 : vector<48x128xf32> to vector<2x24x128xf32>
    %52 = tpu.iota {dimensions = array<i32: 2>} : vector<2x24x24xi32>
    %c17_i32 = arith.constant 17 : i32
    %53 = vector.broadcast %c17_i32 : i32 to vector<2x24x24xi32>
    %54 = arith.cmpi slt, %52, %53 : vector<2x24x24xi32>
    %55 = vector.extract_strided_slice %47 {offsets = [0, 0, 0], sizes = [2, 24, 32], strides = [1, 1, 1]} : vector<2x24x128xf32> to vector<2x24x32xf32>
    %56 = arith.truncf %55 : vector<2x24x32xf32> to vector<2x24x32xbf16>
    %57 = vector.extract_strided_slice %49 {offsets = [0, 0, 0], sizes = [2, 24, 32], strides = [1, 1, 1]} : vector<2x24x128xf32> to vector<2x24x32xf32>
    %58 = arith.truncf %57 : vector<2x24x32xf32> to vector<2x24x32xbf16>
    %59 = vector.extract_strided_slice %51 {offsets = [0, 0, 0], sizes = [2, 24, 32], strides = [1, 1, 1]} : vector<2x24x128xf32> to vector<2x24x32xf32>
    %60 = arith.truncf %59 : vector<2x24x32xf32> to vector<2x24x32xbf16>
    "tpu.trace_start"() <{level = 10 : i32, message = "bqd,bkd->bqk"}> : () -> ()
    %cst_27 = arith.constant dense<0.000000e+00> : vector<2x24x24xf32>
    %61 = tpu.matmul %56, %58, %cst_27 {dimension_numbers = #tpu.dot_dimension_numbers<[2], [2], [1], [1], [0, 0, 0, 1, 1, 1], [0], [0]>} : vector<2x24x32xbf16>, vector<2x24x32xbf16>, vector<2x24x24xf32> -> vector<2x24x24xf32>
    %cst_28 = arith.constant -1.000000e+30 : f32
    "tpu.trace_stop"() : () -> ()
    %62 = vector.broadcast %cst_28 : f32 to vector<2x24x24xf32>
    %63 = arith.select %54, %61, %62 : vector<2x24x24xi1>, vector<2x24x24xf32>
    %cst_29 = arith.constant dense<0xFF800000> : vector<2x24xf32>
    %64 = vector.multi_reduction <maximumf>, %63, %cst_29 [2] : vector<2x24x24xf32> to vector<2x24xf32>
    %65 = vector.shape_cast %64 : vector<2x24xf32> to vector<2x24x1xf32>
    %66 = vector.broadcast %65 : vector<2x24x1xf32> to vector<2x24x24xf32>
    %67 = arith.subf %63, %66 : vector<2x24x24xf32>
    %68 = math.exp %67 : vector<2x24x24xf32>
    %cst_30 = arith.constant dense<0.000000e+00> : vector<2x24xf32>
    %69 = vector.multi_reduction <add>, %68, %cst_30 [2] : vector<2x24x24xf32> to vector<2x24xf32>
    %70 = vector.shape_cast %69 : vector<2x24xf32> to vector<2x24x1xf32>
    %71 = tpu.reciprocal %70 {approx = true} : vector<2x24x1xf32> -> vector<2x24x1xf32>
    %72 = vector.broadcast %71 : vector<2x24x1xf32> to vector<2x24x24xf32>
    %73 = arith.mulf %68, %72 : vector<2x24x24xf32>
    %74 = arith.truncf %73 : vector<2x24x24xf32> to vector<2x24x24xbf16>
    "tpu.trace_start"() <{level = 10 : i32, message = "bqk,bkd->bqd"}> : () -> ()
    %cst_31 = arith.constant dense<0.000000e+00> : vector<2x24x32xf32>
    %75 = tpu.matmul %74, %60, %cst_31 {dimension_numbers = #tpu.dot_dimension_numbers<[2], [1], [1], [2], [0, 0, 0, 1, 1, 2], [0], [0]>} : vector<2x24x24xbf16>, vector<2x24x32xbf16>, vector<2x24x32xf32> -> vector<2x24x32xf32>
    "tpu.trace_stop"() : () -> ()
    %76 = vector.extract_strided_slice %47 {offsets = [0, 0, 32], sizes = [2, 24, 32], strides = [1, 1, 1]} : vector<2x24x128xf32> to vector<2x24x32xf32>
    %77 = arith.truncf %76 : vector<2x24x32xf32> to vector<2x24x32xbf16>
    %78 = vector.extract_strided_slice %49 {offsets = [0, 0, 32], sizes = [2, 24, 32], strides = [1, 1, 1]} : vector<2x24x128xf32> to vector<2x24x32xf32>
    %79 = arith.truncf %78 : vector<2x24x32xf32> to vector<2x24x32xbf16>
    %80 = vector.extract_strided_slice %51 {offsets = [0, 0, 32], sizes = [2, 24, 32], strides = [1, 1, 1]} : vector<2x24x128xf32> to vector<2x24x32xf32>
    %81 = arith.truncf %80 : vector<2x24x32xf32> to vector<2x24x32xbf16>
    "tpu.trace_start"() <{level = 10 : i32, message = "bqd,bkd->bqk"}> : () -> ()
    %cst_32 = arith.constant dense<0.000000e+00> : vector<2x24x24xf32>
    %82 = tpu.matmul %77, %79, %cst_32 {dimension_numbers = #tpu.dot_dimension_numbers<[2], [2], [1], [1], [0, 0, 0, 1, 1, 1], [0], [0]>} : vector<2x24x32xbf16>, vector<2x24x32xbf16>, vector<2x24x24xf32> -> vector<2x24x24xf32>
    %cst_33 = arith.constant -1.000000e+30 : f32
    "tpu.trace_stop"() : () -> ()
    %83 = vector.broadcast %cst_33 : f32 to vector<2x24x24xf32>
    %84 = arith.select %54, %82, %83 : vector<2x24x24xi1>, vector<2x24x24xf32>
    %cst_34 = arith.constant dense<0xFF800000> : vector<2x24xf32>
    %85 = vector.multi_reduction <maximumf>, %84, %cst_34 [2] : vector<2x24x24xf32> to vector<2x24xf32>
    %86 = vector.shape_cast %85 : vector<2x24xf32> to vector<2x24x1xf32>
    %87 = vector.broadcast %86 : vector<2x24x1xf32> to vector<2x24x24xf32>
    %88 = arith.subf %84, %87 : vector<2x24x24xf32>
    %89 = math.exp %88 : vector<2x24x24xf32>
    %cst_35 = arith.constant dense<0.000000e+00> : vector<2x24xf32>
    %90 = vector.multi_reduction <add>, %89, %cst_35 [2] : vector<2x24x24xf32> to vector<2x24xf32>
    %91 = vector.shape_cast %90 : vector<2x24xf32> to vector<2x24x1xf32>
    %92 = tpu.reciprocal %91 {approx = true} : vector<2x24x1xf32> -> vector<2x24x1xf32>
    %93 = vector.broadcast %92 : vector<2x24x1xf32> to vector<2x24x24xf32>
    %94 = arith.mulf %89, %93 : vector<2x24x24xf32>
    %95 = arith.truncf %94 : vector<2x24x24xf32> to vector<2x24x24xbf16>
    "tpu.trace_start"() <{level = 10 : i32, message = "bqk,bkd->bqd"}> : () -> ()
    %cst_36 = arith.constant dense<0.000000e+00> : vector<2x24x32xf32>
    %96 = tpu.matmul %95, %81, %cst_36 {dimension_numbers = #tpu.dot_dimension_numbers<[2], [1], [1], [2], [0, 0, 0, 1, 1, 2], [0], [0]>} : vector<2x24x24xbf16>, vector<2x24x32xbf16>, vector<2x24x32xf32> -> vector<2x24x32xf32>
    "tpu.trace_stop"() : () -> ()
    %97 = vector.extract_strided_slice %47 {offsets = [0, 0, 64], sizes = [2, 24, 32], strides = [1, 1, 1]} : vector<2x24x128xf32> to vector<2x24x32xf32>
    %98 = arith.truncf %97 : vector<2x24x32xf32> to vector<2x24x32xbf16>
    %99 = vector.extract_strided_slice %49 {offsets = [0, 0, 64], sizes = [2, 24, 32], strides = [1, 1, 1]} : vector<2x24x128xf32> to vector<2x24x32xf32>
    %100 = arith.truncf %99 : vector<2x24x32xf32> to vector<2x24x32xbf16>
    %101 = vector.extract_strided_slice %51 {offsets = [0, 0, 64], sizes = [2, 24, 32], strides = [1, 1, 1]} : vector<2x24x128xf32> to vector<2x24x32xf32>
    %102 = arith.truncf %101 : vector<2x24x32xf32> to vector<2x24x32xbf16>
    "tpu.trace_start"() <{level = 10 : i32, message = "bqd,bkd->bqk"}> : () -> ()
    %cst_37 = arith.constant dense<0.000000e+00> : vector<2x24x24xf32>
    %103 = tpu.matmul %98, %100, %cst_37 {dimension_numbers = #tpu.dot_dimension_numbers<[2], [2], [1], [1], [0, 0, 0, 1, 1, 1], [0], [0]>} : vector<2x24x32xbf16>, vector<2x24x32xbf16>, vector<2x24x24xf32> -> vector<2x24x24xf32>
    %cst_38 = arith.constant -1.000000e+30 : f32
    "tpu.trace_stop"() : () -> ()
    %104 = vector.broadcast %cst_38 : f32 to vector<2x24x24xf32>
    %105 = arith.select %54, %103, %104 : vector<2x24x24xi1>, vector<2x24x24xf32>
    %cst_39 = arith.constant dense<0xFF800000> : vector<2x24xf32>
    %106 = vector.multi_reduction <maximumf>, %105, %cst_39 [2] : vector<2x24x24xf32> to vector<2x24xf32>
    %107 = vector.shape_cast %106 : vector<2x24xf32> to vector<2x24x1xf32>
    %108 = vector.broadcast %107 : vector<2x24x1xf32> to vector<2x24x24xf32>
    %109 = arith.subf %105, %108 : vector<2x24x24xf32>
    %110 = math.exp %109 : vector<2x24x24xf32>
    %cst_40 = arith.constant dense<0.000000e+00> : vector<2x24xf32>
    %111 = vector.multi_reduction <add>, %110, %cst_40 [2] : vector<2x24x24xf32> to vector<2x24xf32>
    %112 = vector.shape_cast %111 : vector<2x24xf32> to vector<2x24x1xf32>
    %113 = tpu.reciprocal %112 {approx = true} : vector<2x24x1xf32> -> vector<2x24x1xf32>
    %114 = vector.broadcast %113 : vector<2x24x1xf32> to vector<2x24x24xf32>
    %115 = arith.mulf %110, %114 : vector<2x24x24xf32>
    %116 = arith.truncf %115 : vector<2x24x24xf32> to vector<2x24x24xbf16>
    "tpu.trace_start"() <{level = 10 : i32, message = "bqk,bkd->bqd"}> : () -> ()
    %cst_41 = arith.constant dense<0.000000e+00> : vector<2x24x32xf32>
    %117 = tpu.matmul %116, %102, %cst_41 {dimension_numbers = #tpu.dot_dimension_numbers<[2], [1], [1], [2], [0, 0, 0, 1, 1, 2], [0], [0]>} : vector<2x24x24xbf16>, vector<2x24x32xbf16>, vector<2x24x32xf32> -> vector<2x24x32xf32>
    "tpu.trace_stop"() : () -> ()
    %118 = vector.extract_strided_slice %47 {offsets = [0, 0, 96], sizes = [2, 24, 32], strides = [1, 1, 1]} : vector<2x24x128xf32> to vector<2x24x32xf32>
    %119 = arith.truncf %118 : vector<2x24x32xf32> to vector<2x24x32xbf16>
    %120 = vector.extract_strided_slice %49 {offsets = [0, 0, 96], sizes = [2, 24, 32], strides = [1, 1, 1]} : vector<2x24x128xf32> to vector<2x24x32xf32>
    %121 = arith.truncf %120 : vector<2x24x32xf32> to vector<2x24x32xbf16>
    %122 = vector.extract_strided_slice %51 {offsets = [0, 0, 96], sizes = [2, 24, 32], strides = [1, 1, 1]} : vector<2x24x128xf32> to vector<2x24x32xf32>
    %123 = arith.truncf %122 : vector<2x24x32xf32> to vector<2x24x32xbf16>
    "tpu.trace_start"() <{level = 10 : i32, message = "bqd,bkd->bqk"}> : () -> ()
    %cst_42 = arith.constant dense<0.000000e+00> : vector<2x24x24xf32>
    %124 = tpu.matmul %119, %121, %cst_42 {dimension_numbers = #tpu.dot_dimension_numbers<[2], [2], [1], [1], [0, 0, 0, 1, 1, 1], [0], [0]>} : vector<2x24x32xbf16>, vector<2x24x32xbf16>, vector<2x24x24xf32> -> vector<2x24x24xf32>
    %cst_43 = arith.constant -1.000000e+30 : f32
    "tpu.trace_stop"() : () -> ()
    %125 = vector.broadcast %cst_43 : f32 to vector<2x24x24xf32>
    %126 = arith.select %54, %124, %125 : vector<2x24x24xi1>, vector<2x24x24xf32>
    %cst_44 = arith.constant dense<0xFF800000> : vector<2x24xf32>
    %127 = vector.multi_reduction <maximumf>, %126, %cst_44 [2] : vector<2x24x24xf32> to vector<2x24xf32>
    %128 = vector.shape_cast %127 : vector<2x24xf32> to vector<2x24x1xf32>
    %129 = vector.broadcast %128 : vector<2x24x1xf32> to vector<2x24x24xf32>
    %130 = arith.subf %126, %129 : vector<2x24x24xf32>
    %131 = math.exp %130 : vector<2x24x24xf32>
    %cst_45 = arith.constant dense<0.000000e+00> : vector<2x24xf32>
    %132 = vector.multi_reduction <add>, %131, %cst_45 [2] : vector<2x24x24xf32> to vector<2x24xf32>
    %133 = vector.shape_cast %132 : vector<2x24xf32> to vector<2x24x1xf32>
    %134 = tpu.reciprocal %133 {approx = true} : vector<2x24x1xf32> -> vector<2x24x1xf32>
    %135 = vector.broadcast %134 : vector<2x24x1xf32> to vector<2x24x24xf32>
    %136 = arith.mulf %131, %135 : vector<2x24x24xf32>
    %137 = arith.truncf %136 : vector<2x24x24xf32> to vector<2x24x24xbf16>
    "tpu.trace_start"() <{level = 10 : i32, message = "bqk,bkd->bqd"}> : () -> ()
    %cst_46 = arith.constant dense<0.000000e+00> : vector<2x24x32xf32>
    %138 = tpu.matmul %137, %123, %cst_46 {dimension_numbers = #tpu.dot_dimension_numbers<[2], [1], [1], [2], [0, 0, 0, 1, 1, 2], [0], [0]>} : vector<2x24x24xbf16>, vector<2x24x32xbf16>, vector<2x24x32xf32> -> vector<2x24x32xf32>
    "tpu.trace_stop"() : () -> ()
    %139 = tpu.concatenate %75, %96, %117, %138 in 2 : vector<2x24x32xf32>, vector<2x24x32xf32>, vector<2x24x32xf32>, vector<2x24x32xf32> -> vector<2x24x128xf32>
    %140 = vector.shape_cast %139 : vector<2x24x128xf32> to vector<48x128xf32>
    %141 = arith.truncf %140 : vector<48x128xf32> to vector<48x128xbf16>
    %c0_47 = arith.constant 0 : index
    %c0_48 = arith.constant 0 : index
    %c0_49 = arith.constant 0 : index
    %142 = vector.load %arg9[%c0_47, %c0_48, %c0_49] : memref<1x128x128xbf16, #tpu.memory_space<vmem>>, vector<1x128x128xbf16>
    %143 = vector.shape_cast %142 : vector<1x128x128xbf16> to vector<128x128xbf16>
    %cst_50 = arith.constant dense<0.000000e+00> : vector<48x128xf32>
    %144 = tpu.matmul %141, %143, %cst_50 {dimension_numbers = #tpu.dot_dimension_numbers<[1], [0], [0], [1], [0, 0, 1, 1], [], []>} : vector<48x128xbf16>, vector<128x128xbf16>, vector<48x128xf32> -> vector<48x128xf32>
    %145 = arith.addf %3, %144 : vector<48x128xf32>
    %146 = vector.broadcast %9 : vector<1x128xf32> to vector<48x128xf32>
    %147 = arith.addf %145, %146 : vector<48x128xf32>
    %cst_51 = arith.constant dense<0.000000e+00> : vector<48xf32>
    %148 = vector.multi_reduction <add>, %147, %cst_51 [1] : vector<48x128xf32> to vector<48xf32>
    %149 = vector.shape_cast %148 : vector<48xf32> to vector<48x1xf32>
    %cst_52 = arith.constant 1.280000e+02 : f32
    %150 = vector.broadcast %cst_52 : f32 to vector<48x1xf32>
    %151 = arith.divf %149, %150 : vector<48x1xf32>
    %152 = vector.broadcast %151 : vector<48x1xf32> to vector<48x128xf32>
    %153 = arith.subf %147, %152 : vector<48x128xf32>
    %154 = arith.mulf %153, %153 : vector<48x128xf32>
    %cst_53 = arith.constant dense<0.000000e+00> : vector<48xf32>
    %155 = vector.multi_reduction <add>, %154, %cst_53 [1] : vector<48x128xf32> to vector<48xf32>
    %156 = vector.shape_cast %155 : vector<48xf32> to vector<48x1xf32>
    %cst_54 = arith.constant 1.280000e+02 : f32
    %157 = vector.broadcast %cst_54 : f32 to vector<48x1xf32>
    %158 = arith.divf %156, %157 : vector<48x1xf32>
    %cst_55 = arith.constant 9.99999974E-6 : f32
    %159 = vector.broadcast %cst_55 : f32 to vector<48x1xf32>
    %160 = arith.addf %158, %159 : vector<48x1xf32>
    %161 = math.rsqrt %160 : vector<48x1xf32>
    %162 = vector.broadcast %161 : vector<48x1xf32> to vector<48x128xf32>
    %163 = arith.mulf %153, %162 : vector<48x128xf32>
    %164 = vector.broadcast %11 : vector<1x128xf32> to vector<48x128xf32>
    %165 = arith.mulf %163, %164 : vector<48x128xf32>
    %166 = vector.broadcast %13 : vector<1x128xf32> to vector<48x128xf32>
    %167 = arith.addf %165, %166 : vector<48x128xf32>
    %168 = arith.truncf %167 : vector<48x128xf32> to vector<48x128xbf16>
    %c0_56 = arith.constant 0 : index
    %c0_57 = arith.constant 0 : index
    %c0_58 = arith.constant 0 : index
    %169 = vector.load %arg10[%c0_56, %c0_57, %c0_58] : memref<1x128x512xbf16, #tpu.memory_space<vmem>>, vector<1x128x512xbf16>
    %170 = vector.shape_cast %169 : vector<1x128x512xbf16> to vector<128x512xbf16>
    %cst_59 = arith.constant dense<0.000000e+00> : vector<48x512xf32>
    %171 = tpu.matmul %168, %170, %cst_59 {dimension_numbers = #tpu.dot_dimension_numbers<[1], [0], [0], [1], [0, 0, 1, 1], [], []>} : vector<48x128xbf16>, vector<128x512xbf16>, vector<48x512xf32> -> vector<48x512xf32>
    %c0_60 = arith.constant 0 : index
    %c0_61 = arith.constant 0 : index
    %c0_62 = arith.constant 0 : index
    %172 = vector.load %arg7[%c0_60, %c0_61, %c0_62] : memref<1x1x512xf32, #tpu.memory_space<vmem>>, vector<1x1x512xf32>
    %173 = vector.shape_cast %172 : vector<1x1x512xf32> to vector<1x512xf32>
    %174 = vector.broadcast %173 : vector<1x512xf32> to vector<48x512xf32>
    %175 = arith.addf %171, %174 : vector<48x512xf32>
    %cst_63 = arith.constant 1.702000e+00 : f32
    %176 = vector.broadcast %cst_63 : f32 to vector<48x512xf32>
    %177 = arith.mulf %176, %175 : vector<48x512xf32>
    %178 = arith.negf %177 : vector<48x512xf32>
    %179 = math.exp %178 : vector<48x512xf32>
    %cst_64 = arith.constant 1.000000e+00 : f32
    %180 = vector.broadcast %cst_64 : f32 to vector<48x512xf32>
    %181 = arith.addf %180, %179 : vector<48x512xf32>
    %182 = arith.divf %180, %181 : vector<48x512xf32>
    %183 = arith.mulf %175, %182 : vector<48x512xf32>
    %184 = arith.truncf %183 : vector<48x512xf32> to vector<48x512xbf16>
    %c0_65 = arith.constant 0 : index
    %c0_66 = arith.constant 0 : index
    %c0_67 = arith.constant 0 : index
    %185 = vector.load %arg11[%c0_65, %c0_66, %c0_67] : memref<1x512x128xbf16, #tpu.memory_space<vmem>>, vector<1x512x128xbf16>
    %186 = vector.shape_cast %185 : vector<1x512x128xbf16> to vector<512x128xbf16>
    %cst_68 = arith.constant dense<0.000000e+00> : vector<48x128xf32>
    %187 = tpu.matmul %184, %186, %cst_68 {dimension_numbers = #tpu.dot_dimension_numbers<[1], [0], [0], [1], [0, 0, 1, 1], [], []>} : vector<48x512xbf16>, vector<512x128xbf16>, vector<48x128xf32> -> vector<48x128xf32>
    %188 = arith.addf %147, %187 : vector<48x128xf32>
    %189 = vector.broadcast %15 : vector<1x128xf32> to vector<48x128xf32>
    %190 = arith.addf %188, %189 : vector<48x128xf32>
    %c0_69 = arith.constant 0 : index
    %c0_70 = arith.constant 0 : index
    %191 = vector.load %arg18[%c0_69, %c0_70] : memref<48x128xf32, #tpu.memory_space<vmem>>, vector<48x128xf32>
    tpu.vector_store %arg18[%c0_69, %c0_70], %190 {strides = array<i32>} : memref<48x128xf32, #tpu.memory_space<vmem>>, vector<48x128xf32>,
    %c1_i32 = arith.constant 1 : i32
    %192 = arith.cmpi eq, %arg0, %c1_i32 : i32
    %193 = arith.extui %192 : i1 to i32
    %c0_i32_71 = arith.constant 0 : i32
    %194 = arith.cmpi ne, %193, %c0_i32_71 : i32
    scf.if %194 {
      %195 = arith.truncf %190 : vector<48x128xf32> to vector<48x128xbf16>
      %c0_72 = arith.constant 0 : index
      %c0_73 = arith.constant 0 : index
      %196 = vector.load %arg12[%c0_72, %c0_73] : memref<128x256xbf16, #tpu.memory_space<vmem>>, vector<128x256xbf16>
      %cst_74 = arith.constant dense<0.000000e+00> : vector<48x256xf32>
      %197 = tpu.matmul %195, %196, %cst_74 {dimension_numbers = #tpu.dot_dimension_numbers<[1], [0], [0], [1], [0, 0, 1, 1], [], []>} : vector<48x128xbf16>, vector<128x256xbf16>, vector<48x256xf32> -> vector<48x256xf32>
      %c9 = arith.constant 9 : index
      %c0_75 = arith.constant 0 : index
      %198 = vector.load %arg14[%c9, %c0_75] : memref<12x256xf32, #tpu.memory_space<vmem>>, vector<1x256xf32>
      %199 = vector.broadcast %198 : vector<1x256xf32> to vector<48x256xf32>
      %200 = arith.addf %197, %199 : vector<48x256xf32>
      %cst_76 = arith.constant 5.000000e-01 : f32
      %201 = vector.broadcast %cst_76 : f32 to vector<48x256xf32>
      %202 = arith.mulf %201, %200 : vector<48x256xf32>
      %cst_77 = arith.constant 0.707106769 : f32
      %203 = vector.broadcast %cst_77 : f32 to vector<48x256xf32>
      %204 = arith.mulf %200, %203 : vector<48x256xf32>
      %cst_78 = arith.constant 0.000000e+00 : f32
      %205 = vector.broadcast %cst_78 : f32 to vector<48x256xf32>
      %206 = arith.cmpf oge, %204, %205 : vector<48x256xf32>
      %cst_79 = arith.constant 1.000000e+00 : f32
      %cst_80 = arith.constant -1.000000e+00 : f32
      %207 = vector.broadcast %cst_79 : f32 to vector<48x256xf32>
      %208 = vector.broadcast %cst_80 : f32 to vector<48x256xf32>
      %209 = arith.select %206, %207, %208 : vector<48x256xi1>, vector<48x256xf32>
      %210 = math.absf %204 : vector<48x256xf32>
      %cst_81 = arith.constant 0.327591091 : f32
      %211 = vector.broadcast %cst_81 : f32 to vector<48x256xf32>
      %212 = arith.mulf %211, %210 : vector<48x256xf32>
      %cst_82 = arith.constant 1.000000e+00 : f32
      %213 = vector.broadcast %cst_82 : f32 to vector<48x256xf32>
      %214 = arith.addf %213, %212 : vector<48x256xf32>
      %cst_83 = arith.constant 1.000000e+00 : f32
      %215 = vector.broadcast %cst_83 : f32 to vector<48x256xf32>
      %216 = arith.divf %215, %214 : vector<48x256xf32>
      %cst_84 = arith.constant 1.06140542 : f32
      %217 = vector.broadcast %cst_84 : f32 to vector<48x256xf32>
      %218 = arith.mulf %217, %216 : vector<48x256xf32>
      %cst_85 = arith.constant -1.45315206 : f32
      %219 = vector.broadcast %cst_85 : f32 to vector<48x256xf32>
      %220 = arith.addf %218, %219 : vector<48x256xf32>
      %221 = arith.mulf %220, %216 : vector<48x256xf32>
      %cst_86 = arith.constant 1.42141378 : f32
      %222 = vector.broadcast %cst_86 : f32 to vector<48x256xf32>
      %223 = arith.addf %221, %222 : vector<48x256xf32>
      %224 = arith.mulf %223, %216 : vector<48x256xf32>
      %cst_87 = arith.constant -0.284496725 : f32
      %225 = vector.broadcast %cst_87 : f32 to vector<48x256xf32>
      %226 = arith.addf %224, %225 : vector<48x256xf32>
      %227 = arith.mulf %226, %216 : vector<48x256xf32>
      %cst_88 = arith.constant 0.254829586 : f32
      %228 = vector.broadcast %cst_88 : f32 to vector<48x256xf32>
      %229 = arith.addf %227, %228 : vector<48x256xf32>
      %230 = arith.mulf %229, %216 : vector<48x256xf32>
      %cst_89 = arith.constant 0.000000e+00 : f32
      %231 = vector.broadcast %cst_89 : f32 to vector<48x256xf32>
      %232 = arith.subf %231, %210 : vector<48x256xf32>
      %233 = arith.mulf %232, %210 : vector<48x256xf32>
      %234 = math.exp %233 : vector<48x256xf32>
      %235 = arith.mulf %230, %234 : vector<48x256xf32>
      %cst_90 = arith.constant 1.000000e+00 : f32
      %236 = vector.broadcast %cst_90 : f32 to vector<48x256xf32>
      %237 = arith.subf %236, %235 : vector<48x256xf32>
      %238 = arith.mulf %209, %237 : vector<48x256xf32>
      %cst_91 = arith.constant 1.000000e+00 : f32
      %239 = vector.broadcast %cst_91 : f32 to vector<48x256xf32>
      %240 = arith.addf %239, %238 : vector<48x256xf32>
      %241 = arith.mulf %202, %240 : vector<48x256xf32>
      %242 = arith.truncf %241 : vector<48x256xf32> to vector<48x256xbf16>
      %c0_92 = arith.constant 0 : index
      %c0_93 = arith.constant 0 : index
      %243 = vector.load %arg13[%c0_92, %c0_93] : memref<256x256xbf16, #tpu.memory_space<vmem>>, vector<256x256xbf16>
      %cst_94 = arith.constant dense<0.000000e+00> : vector<48x256xf32>
      %244 = tpu.matmul %242, %243, %cst_94 {dimension_numbers = #tpu.dot_dimension_numbers<[1], [0], [0], [1], [0, 0, 1, 1], [], []>} : vector<48x256xbf16>, vector<256x256xbf16>, vector<48x256xf32> -> vector<48x256xf32>
      %c10 = arith.constant 10 : index
      %c0_95 = arith.constant 0 : index
      %245 = vector.load %arg14[%c10, %c0_95] : memref<12x256xf32, #tpu.memory_space<vmem>>, vector<1x256xf32>
      %246 = vector.broadcast %245 : vector<1x256xf32> to vector<48x256xf32>
      %247 = arith.addf %244, %246 : vector<48x256xf32>
      %c0_96 = arith.constant 0 : index
      %c0_97 = arith.constant 0 : index
      %248 = vector.load %arg15[%c0_96, %c0_97] : memref<8x48xf32, #tpu.memory_space<vmem>>, vector<8x48xf32>
      %cst_98 = arith.constant dense<0.000000e+00> : vector<8x256xf32>
      %249 = tpu.matmul %248, %247, %cst_98 {dimension_numbers = #tpu.dot_dimension_numbers<[1], [0], [0], [1], [0, 0, 1, 1], [], []>} : vector<8x48xf32>, vector<48x256xf32>, vector<8x256xf32> -> vector<8x256xf32>
      %c0_99 = arith.constant 0 : index
      %c0_100 = arith.constant 0 : index
      %250 = vector.load %arg16[%c0_99, %c0_100] : memref<72x8xf32, #tpu.memory_space<vmem>>, vector<72x8xf32>
      %cst_101 = arith.constant dense<0.000000e+00> : vector<72x256xf32>
      %251 = tpu.matmul %250, %249, %cst_101 {dimension_numbers = #tpu.dot_dimension_numbers<[1], [0], [0], [1], [0, 0, 1, 1], [], []>} : vector<72x8xf32>, vector<8x256xf32>, vector<72x256xf32> -> vector<72x256xf32>
      %c11 = arith.constant 11 : index
      %c0_102 = arith.constant 0 : index
      %252 = vector.load %arg14[%c11, %c0_102] : memref<12x256xf32, #tpu.memory_space<vmem>>, vector<1x256xf32>
      %253 = vector.broadcast %252 : vector<1x256xf32> to vector<8x256xf32>
      %254 = arith.addf %249, %253 : vector<8x256xf32>
      %255 = vector.extract_strided_slice %251 {offsets = [0, 0], sizes = [8, 256], strides = [1, 1]} : vector<72x256xf32> to vector<8x256xf32>
      %c0_103 = arith.constant 0 : index
      %c0_104 = arith.constant 0 : index
      %256 = vector.load %arg14[%c0_103, %c0_104] : memref<12x256xf32, #tpu.memory_space<vmem>>, vector<1x256xf32>
      %257 = vector.broadcast %256 : vector<1x256xf32> to vector<8x256xf32>
      %258 = arith.mulf %255, %257 : vector<8x256xf32>
      %259 = arith.addf %254, %258 : vector<8x256xf32>
      %260 = vector.extract_strided_slice %251 {offsets = [8, 0], sizes = [8, 256], strides = [1, 1]} : vector<72x256xf32> to vector<8x256xf32>
      %c1_105 = arith.constant 1 : index
      %c0_106 = arith.constant 0 : index
      %261 = vector.load %arg14[%c1_105, %c0_106] : memref<12x256xf32, #tpu.memory_space<vmem>>, vector<1x256xf32>
      %262 = vector.broadcast %261 : vector<1x256xf32> to vector<8x256xf32>
      %263 = arith.mulf %260, %262 : vector<8x256xf32>
      %264 = arith.addf %259, %263 : vector<8x256xf32>
      %265 = vector.extract_strided_slice %251 {offsets = [16, 0], sizes = [8, 256], strides = [1, 1]} : vector<72x256xf32> to vector<8x256xf32>
      %c2_107 = arith.constant 2 : index
      %c0_108 = arith.constant 0 : index
      %266 = vector.load %arg14[%c2_107, %c0_108] : memref<12x256xf32, #tpu.memory_space<vmem>>, vector<1x256xf32>
      %267 = vector.broadcast %266 : vector<1x256xf32> to vector<8x256xf32>
      %268 = arith.mulf %265, %267 : vector<8x256xf32>
      %269 = arith.addf %264, %268 : vector<8x256xf32>
      %270 = vector.extract_strided_slice %251 {offsets = [24, 0], sizes = [8, 256], strides = [1, 1]} : vector<72x256xf32> to vector<8x256xf32>
      %c3_109 = arith.constant 3 : index
      %c0_110 = arith.constant 0 : index
      %271 = vector.load %arg14[%c3_109, %c0_110] : memref<12x256xf32, #tpu.memory_space<vmem>>, vector<1x256xf32>
      %272 = vector.broadcast %271 : vector<1x256xf32> to vector<8x256xf32>
      %273 = arith.mulf %270, %272 : vector<8x256xf32>
      %274 = arith.addf %269, %273 : vector<8x256xf32>
      %275 = vector.extract_strided_slice %251 {offsets = [32, 0], sizes = [8, 256], strides = [1, 1]} : vector<72x256xf32> to vector<8x256xf32>
      %c4_111 = arith.constant 4 : index
      %c0_112 = arith.constant 0 : index
      %276 = vector.load %arg14[%c4_111, %c0_112] : memref<12x256xf32, #tpu.memory_space<vmem>>, vector<1x256xf32>
      %277 = vector.broadcast %276 : vector<1x256xf32> to vector<8x256xf32>
      %278 = arith.mulf %275, %277 : vector<8x256xf32>
      %279 = arith.addf %274, %278 : vector<8x256xf32>
      %280 = vector.extract_strided_slice %251 {offsets = [40, 0], sizes = [8, 256], strides = [1, 1]} : vector<72x256xf32> to vector<8x256xf32>
      %c5_113 = arith.constant 5 : index
      %c0_114 = arith.constant 0 : index
      %281 = vector.load %arg14[%c5_113, %c0_114] : memref<12x256xf32, #tpu.memory_space<vmem>>, vector<1x256xf32>
      %282 = vector.broadcast %281 : vector<1x256xf32> to vector<8x256xf32>
      %283 = arith.mulf %280, %282 : vector<8x256xf32>
      %284 = arith.addf %279, %283 : vector<8x256xf32>
      %285 = vector.extract_strided_slice %251 {offsets = [48, 0], sizes = [8, 256], strides = [1, 1]} : vector<72x256xf32> to vector<8x256xf32>
      %c6 = arith.constant 6 : index
      %c0_115 = arith.constant 0 : index
      %286 = vector.load %arg14[%c6, %c0_115] : memref<12x256xf32, #tpu.memory_space<vmem>>, vector<1x256xf32>
      %287 = vector.broadcast %286 : vector<1x256xf32> to vector<8x256xf32>
      %288 = arith.mulf %285, %287 : vector<8x256xf32>
      %289 = arith.addf %284, %288 : vector<8x256xf32>
      %290 = vector.extract_strided_slice %251 {offsets = [56, 0], sizes = [8, 256], strides = [1, 1]} : vector<72x256xf32> to vector<8x256xf32>
      %c7 = arith.constant 7 : index
      %c0_116 = arith.constant 0 : index
      %291 = vector.load %arg14[%c7, %c0_116] : memref<12x256xf32, #tpu.memory_space<vmem>>, vector<1x256xf32>
      %292 = vector.broadcast %291 : vector<1x256xf32> to vector<8x256xf32>
      %293 = arith.mulf %290, %292 : vector<8x256xf32>
      %294 = arith.addf %289, %293 : vector<8x256xf32>
      %295 = vector.extract_strided_slice %251 {offsets = [64, 0], sizes = [8, 256], strides = [1, 1]} : vector<72x256xf32> to vector<8x256xf32>
      %c8 = arith.constant 8 : index
      %c0_117 = arith.constant 0 : index
      %296 = vector.load %arg14[%c8, %c0_117] : memref<12x256xf32, #tpu.memory_space<vmem>>, vector<1x256xf32>
      %297 = vector.broadcast %296 : vector<1x256xf32> to vector<8x256xf32>
      %298 = arith.mulf %295, %297 : vector<8x256xf32>
      %299 = arith.addf %294, %298 : vector<8x256xf32>
      %c0_118 = arith.constant 0 : index
      %c0_119 = arith.constant 0 : index
      %300 = vector.load %arg17[%c0_118, %c0_119] : memref<8x256xf32, #tpu.memory_space<vmem>>, vector<8x256xf32>
      tpu.vector_store %arg17[%c0_118, %c0_119], %299 {strides = array<i32>} : memref<8x256xf32, #tpu.memory_space<vmem>>, vector<8x256xf32>,
    } else {
    }
    return
  }
  func.func @transform_0(%arg0: i32) -> (i32, i32) {
    %c0_i32 = arith.constant 0 : i32
    %c0_i32_0 = arith.constant 0 : i32
    %c0_i32_1 = arith.constant 0 : i32
    return %c0_i32, %c0_i32_0 : i32, i32
  }
  func.func @transform_1(%arg0: i32) -> (i32, i32) {
    %c0_i32 = arith.constant 0 : i32
    %c0_i32_0 = arith.constant 0 : i32
    %c0_i32_1 = arith.constant 0 : i32
    return %c0_i32, %c0_i32_0 : i32, i32
  }
  func.func @transform_2(%arg0: i32) -> (i32, i32) {
    %c0_i32 = arith.constant 0 : i32
    %c0_i32_0 = arith.constant 0 : i32
    %c0_i32_1 = arith.constant 0 : i32
    return %c0_i32, %c0_i32_0 : i32, i32
  }
  func.func @transform_3(%arg0: i32) -> (i32, i32) {
    %c0_i32 = arith.constant 0 : i32
    %c0_i32_0 = arith.constant 0 : i32
    %c0_i32_1 = arith.constant 0 : i32
    return %c0_i32, %c0_i32_0 : i32, i32
  }
  func.func @transform_4(%arg0: i32) -> (i32, i32, i32) {
    %c0_i32 = arith.constant 0 : i32
    %c0_i32_0 = arith.constant 0 : i32
    %c0_i32_1 = arith.constant 0 : i32
    return %arg0, %c0_i32, %c0_i32_0 : i32, i32, i32
  }
  func.func @transform_5(%arg0: i32) -> (i32, i32, i32) {
    %c0_i32 = arith.constant 0 : i32
    %c0_i32_0 = arith.constant 0 : i32
    %c0_i32_1 = arith.constant 0 : i32
    return %arg0, %c0_i32, %c0_i32_0 : i32, i32, i32
  }
  func.func @transform_6(%arg0: i32) -> (i32, i32, i32) {
    %c0_i32 = arith.constant 0 : i32
    %c0_i32_0 = arith.constant 0 : i32
    %c0_i32_1 = arith.constant 0 : i32
    return %arg0, %c0_i32, %c0_i32_0 : i32, i32, i32
  }
  func.func @transform_7(%arg0: i32) -> (i32, i32, i32) {
    %c0_i32 = arith.constant 0 : i32
    %c0_i32_0 = arith.constant 0 : i32
    %c0_i32_1 = arith.constant 0 : i32
    return %arg0, %c0_i32, %c0_i32_0 : i32, i32, i32
  }
  func.func @transform_8(%arg0: i32) -> (i32, i32, i32) {
    %c0_i32 = arith.constant 0 : i32
    %c0_i32_0 = arith.constant 0 : i32
    %c0_i32_1 = arith.constant 0 : i32
    return %arg0, %c0_i32, %c0_i32_0 : i32, i32, i32
  }
  func.func @transform_9(%arg0: i32) -> (i32, i32, i32) {
    %c0_i32 = arith.constant 0 : i32
    %c0_i32_0 = arith.constant 0 : i32
    %c0_i32_1 = arith.constant 0 : i32
    return %arg0, %c0_i32, %c0_i32_0 : i32, i32, i32
  }
  func.func @transform_10(%arg0: i32) -> (i32, i32, i32) {
    %c0_i32 = arith.constant 0 : i32
    %c0_i32_0 = arith.constant 0 : i32
    %c0_i32_1 = arith.constant 0 : i32
    return %arg0, %c0_i32, %c0_i32_0 : i32, i32, i32
  }
  func.func @transform_11(%arg0: i32) -> (i32, i32) {
    %c0_i32 = arith.constant 0 : i32
    %c0_i32_0 = arith.constant 0 : i32
    %c0_i32_1 = arith.constant 0 : i32
    return %c0_i32, %c0_i32_0 : i32, i32
  }
  func.func @transform_12(%arg0: i32) -> (i32, i32) {
    %c0_i32 = arith.constant 0 : i32
    %c0_i32_0 = arith.constant 0 : i32
    %c0_i32_1 = arith.constant 0 : i32
    return %c0_i32, %c0_i32_0 : i32, i32
  }
  func.func @transform_13(%arg0: i32) -> (i32, i32) {
    %c0_i32 = arith.constant 0 : i32
    %c0_i32_0 = arith.constant 0 : i32
    %c0_i32_1 = arith.constant 0 : i32
    return %c0_i32, %c0_i32_0 : i32, i32
  }
  func.func @transform_14(%arg0: i32) -> (i32, i32) {
    %c0_i32 = arith.constant 0 : i32
    %c0_i32_0 = arith.constant 0 : i32
    %c0_i32_1 = arith.constant 0 : i32
    return %c0_i32, %c0_i32_0 : i32, i32
  }
  func.func @transform_15(%arg0: i32) -> (i32, i32) {
    %c0_i32 = arith.constant 0 : i32
    %c0_i32_0 = arith.constant 0 : i32
    %c0_i32_1 = arith.constant 0 : i32
    return %c0_i32, %c0_i32_0 : i32, i32
  }
  func.func @transform_16(%arg0: i32) -> (i32, i32) {
    %c0_i32 = arith.constant 0 : i32
    %c0_i32_0 = arith.constant 0 : i32
    %c0_i32_1 = arith.constant 0 : i32
    return %c0_i32, %c0_i32_0 : i32, i32
  }
}

</mosaic_0001>

<llo_original>
// kernel: tpu_custom_call.1
$region0: #{tpu_custom_call.1}
  #allocation0 [shape = 'u32[]', space=smem, size = 0x4, offset = 0x4, fixed_abs, tag = 'smem constant byte address 0x4 - core index']
  #allocation1 [shape = 'u32[144,128]{1,0:T(1,128)}', space=vmem, size = 0x12000, scoped, tag = 'internal scratch']
  #allocation2 [shape = 'f32[48,128]{1,0:T(8,128)}', space=vmem, size = 0x6000, scoped, tag = 'scratch operand']
  %s0 = inlined_call_operand.vmem [shape: f32[48,48], index: 0, kind: input, shape index: {}]
  %s1 = inlined_call_operand.hbm [shape: bf16[48,128], index: 1, kind: input, shape index: {}]
  %s2 = inlined_call_operand.hbm [shape: f32[48,128], index: 2, kind: input, shape index: {}]
  %s3 = inlined_call_operand.vmem [shape: f32[2,128], index: 3, kind: input, shape index: {}]
  %s4 = inlined_call_operand.hbm [shape: f32[2,8,128], index: 4, kind: input, shape index: {}]
  %s5 = inlined_call_operand.hbm [shape: f32[2,1,384], index: 5, kind: input, shape index: {}]
  %s6 = inlined_call_operand.vmem [shape: f32[2,1,512], index: 6, kind: input, shape index: {}]
  %s7 = inlined_call_operand.hbm [shape: bf16[2,128,384], index: 7, kind: input, shape index: {}]
  %s8 = inlined_call_operand.hbm [shape: bf16[2,128,128], index: 8, kind: input, shape index: {}]
  %s9 = inlined_call_operand.hbm [shape: bf16[2,128,512], index: 9, kind: input, shape index: {}]
  %s10 = inlined_call_operand.hbm [shape: bf16[2,512,128], index: 10, kind: input, shape index: {}]
  %s11 = inlined_call_operand.hbm [shape: bf16[128,256], index: 11, kind: input, shape index: {}]
  %s12 = inlined_call_operand.hbm [shape: bf16[256,256], index: 12, kind: input, shape index: {}]
  %s13 = inlined_call_operand.vmem [shape: f32[12,256], index: 13, kind: input, shape index: {}]
  %s14 = inlined_call_operand.vmem [shape: f32[8,48], index: 14, kind: input, shape index: {}]
  %s15 = inlined_call_operand.vmem [shape: f32[72,8], index: 15, kind: input, shape index: {}]
  %s16 = inlined_call_operand.hbm [shape: f32[8,256], index: 16, kind: output, shape index: {}]
  %s17 = sld [smem:[#allocation0]]
  $region145: #{tpu_custom_call.1} parent=0
    _
  %s19 = ssub.s32 1, %s17
  %s20 = scalar_select 0, %s19, %s17
  $region1: #{tpu_custom_call.1} parent=0
    #allocation3 [shape = 'u8[12288]{0}', space=vmem, size = 0x3000, scoped, tag = 'input window, operand 1, single buffered']
    #allocation4 [shape = 's32[2]{0}', space=sflag, size = 0x8, scoped, tag = 'scoped memory for tpu_custom_call.1']
    #allocation5 [shape = 's32[2]{0}', space=sflag, size = 0x8, scoped, tag = 'scoped memory for tpu_custom_call.1']
    #allocation6 [shape = 'u8[24576]{0}', space=vmem, size = 0x6000, scoped, tag = 'input window, operand 2, single buffered']
    #allocation7 [shape = 's32[1]{0}', space=sflag, size = 0x4, scoped, tag = 'scoped memory for tpu_custom_call.1']
    #allocation8 [shape = 'u8[8192]{0}', space=vmem, size = 0x2000, scoped, tag = 'input window, operand 4']
    #allocation9 [shape = 'u8[3072]{0}', space=vmem, size = 0xc00, scoped, tag = 'input window, operand 5']
    #allocation10 [shape = 'u8[196608]{0}', space=vmem, size = 0x30000, scoped, tag = 'input window, operand 7']
    #allocation11 [shape = 'u8[65536]{0}', space=vmem, size = 0x10000, scoped, tag = 'input window, operand 8']
    #allocation12 [shape = 'u8[262144]{0}', space=vmem, size = 0x40000, scoped, tag = 'input window, operand 9']
    #allocation13 [shape = 'u8[262144]{0}', space=vmem, size = 0x40000, scoped, tag = 'input window, operand 10']
    #allocation14 [shape = 'u8[65536]{0}', space=vmem, size = 0x10000, scoped, tag = 'input window, operand 11, single buffered']
    #allocation15 [shape = 'u8[131072]{0}', space=vmem, size = 0x20000, scoped, tag = 'input window, operand 12, single buffered']
    #allocation16 [shape = 's32[1]{0}', space=sflag, size = 0x4, scoped, tag = 'scoped memory for tpu_custom_call.1']
    #allocation17 [shape = 'u8[8192]{0}', space=vmem, size = 0x2000, scoped, tag = 'output window, operand 0, single buffered']
    %21 = vsyncpa [#allocation4], 0
    %22 = vsyncpa [#allocation7], 0
    %23 = vsyncpa [#allocation16], 0
    %24 = vsyncpa [#allocation5], 0
    loop: start=0, step=1, limit=4
    $region2: #{tpu_custom_call.1} parent=1 // loop_pre_header
      _
    $region3: #{tpu_custom_call.1} parent=1 // loop_header
      %s26 = sphi 0, %s30
      %p27 = scmp.ge.s32.totalorder %s26, 4
      %s34 = sphi 0, %s34
      %s36 = sphi 0, %s34
      %s37 = sphi 0, %s36
      %s51 = sphi 0, %s37
      %s55 = sphi 0, %s55
      %s57 = sphi 0, %s55
      %s58 = sphi 0, %s57
      %s72 = sphi 0, %s58
      %s76 = sphi 0, %s76
      %s78 = sphi 0, %s76
      %s79 = sphi 0, %s78
      %s93 = sphi 0, %s79
      %s97 = sphi 0, %s97
      %s99 = sphi 0, %s97
      %s100 = sphi 0, %s99
      %s114 = sphi 0, %s100
      %s120 = sphi 0, %s122
      %s123 = sphi 0, %s120
      %s124 = sphi 0, %s123
      %s140 = sphi 0, %s124
      %s146 = sphi 0, %s148
      %s149 = sphi 0, %s146
      %s150 = sphi 0, %s149
      %s166 = sphi 0, %s150
      %s172 = sphi 0, %s174
      %s175 = sphi 0, %s172
      %s176 = sphi 0, %s175
      %s192 = sphi 0, %s176
      %s198 = sphi 0, %s200
      %s201 = sphi 0, %s198
      %s202 = sphi 0, %s201
      %s218 = sphi 0, %s202
      %s224 = sphi 0, %s226
      %s227 = sphi 0, %s224
      %s228 = sphi 0, %s227
      %s244 = sphi 0, %s228
      %s250 = sphi 0, %s252
      %s253 = sphi 0, %s250
      %s254 = sphi 0, %s253
      %s270 = sphi 0, %s254
      %s276 = sphi 0, %s278
      %s279 = sphi 0, %s276
      %s280 = sphi 0, %s279
      %s296 = sphi 0, %s280
      %s300 = sphi 0, %s300
      %s302 = sphi 0, %s300
      %s303 = sphi 0, %s302
      %s317 = sphi 0, %s303
      %s321 = sphi 0, %s321
      %s323 = sphi 0, %s321
      %s324 = sphi 0, %s323
      %s338 = sphi 0, %s324
      %s342 = sphi 0, %s342
      %s344 = sphi 0, %s342
      %s345 = sphi 0, %s344
      %s359 = sphi 0, %s345
      %s363 = sphi 0, %s363
      %s365 = sphi 0, %s363
      %s366 = sphi 0, %s365
      %s380 = sphi 0, %s366
      %s384 = sphi 0, %s384
      %s386 = sphi 0, %s384
      %s387 = sphi 0, %s386
      %s401 = sphi 0, %s387
      %s405 = sphi 0, %s405
      %s407 = sphi 0, %s405
      %s408 = sphi 0, %s407
      %s422 = sphi 0, %s408
    $region4: #{tpu_custom_call.1} parent=1 // loop_header_branch
      %29 = sbr.rel (%p27) target = $region8
    $region5: #{tpu_custom_call.1} parent=1 // loop_body
      %s31 = ssub.s32 %s26, 1
      %s32 = ssub.s32 %s26, 2
      %s33 = sadd.s32 %s26, 1
      %s35 = sadd.s32 %s34, 1
      %p38 = scmp.eq.s32.totalorder %s26, 1
      %p39 = scmp.ne.s32.totalorder %s34, %s36
      %p40 = scmp.eq.s32.totalorder %s26, 0
      %p41 = por %p39, %p40
      %p42 = scmp.ne.s32.totalorder %s34, %s36
      %p43 = scmp.eq.s32.totalorder %s31, 1
      %p44 = por %p42, %p43
      %p45 = scmp.ne.s32.totalorder %s36, %s37
      %p46 = scmp.eq.s32.totalorder %s31, 0
      %p47 = por %p45, %p46
      %p48 = scmp.ne.s32.totalorder %s36, %s37
      %p49 = scmp.eq.s32.totalorder %s32, 1
      %p50 = por %p48, %p49
      %p52 = scmp.ne.s32.totalorder %s37, %s51
      %p53 = scmp.eq.s32.totalorder %s32, 0
      %p54 = por %p52, %p53
      %s56 = sadd.s32 %s55, 1
      %p59 = scmp.eq.s32.totalorder %s26, 1
      %p60 = scmp.ne.s32.totalorder %s55, %s57
      %p61 = scmp.eq.s32.totalorder %s26, 0
      %p62 = por %p60, %p61
      %p63 = scmp.ne.s32.totalorder %s55, %s57
      %p64 = scmp.eq.s32.totalorder %s31, 1
      %p65 = por %p63, %p64
      %p66 = scmp.ne.s32.totalorder %s57, %s58
      %p67 = scmp.eq.s32.totalorder %s31, 0
      %p68 = por %p66, %p67
      %p69 = scmp.ne.s32.totalorder %s57, %s58
      %p70 = scmp.eq.s32.totalorder %s32, 1
      %p71 = por %p69, %p70
      %p73 = scmp.ne.s32.totalorder %s58, %s72
      %p74 = scmp.eq.s32.totalorder %s32, 0
      %p75 = por %p73, %p74
      %s77 = sadd.s32 %s76, 1
      %p80 = scmp.eq.s32.totalorder %s26, 1
      %p81 = scmp.ne.s32.totalorder %s76, %s78
      %p82 = scmp.eq.s32.totalorder %s26, 0
      %p83 = por %p81, %p82
      %p84 = scmp.ne.s32.totalorder %s76, %s78
      %p85 = scmp.eq.s32.totalorder %s31, 1
      %p86 = por %p84, %p85
      %p87 = scmp.ne.s32.totalorder %s78, %s79
      %p88 = scmp.eq.s32.totalorder %s31, 0
      %p89 = por %p87, %p88
      %p90 = scmp.ne.s32.totalorder %s78, %s79
      %p91 = scmp.eq.s32.totalorder %s32, 1
      %p92 = por %p90, %p91
      %p94 = scmp.ne.s32.totalorder %s79, %s93
      %p95 = scmp.eq.s32.totalorder %s32, 0
      %p96 = por %p94, %p95
      %s98 = sadd.s32 %s97, 1
      %p101 = scmp.eq.s32.totalorder %s26, 1
      %p102 = scmp.ne.s32.totalorder %s97, %s99
      %p103 = scmp.eq.s32.totalorder %s26, 0
      %p104 = por %p102, %p103
      %p105 = scmp.ne.s32.totalorder %s97, %s99
      %p106 = scmp.eq.s32.totalorder %s31, 1
      %p107 = por %p105, %p106
      %p108 = scmp.ne.s32.totalorder %s99, %s100
      %p109 = scmp.eq.s32.totalorder %s31, 0
      %p110 = por %p108, %p109
      %p111 = scmp.ne.s32.totalorder %s99, %s100
      %p112 = scmp.eq.s32.totalorder %s32, 1
      %p113 = por %p111, %p112
      %p115 = scmp.ne.s32.totalorder %s100, %s114
      %p116 = scmp.eq.s32.totalorder %s32, 0
      %p117 = por %p115, %p116
      %s118 = ssub.s32 %s26, %s33
      %p119 = scmp.eq.s32.totalorder %s118, 0
      %s121 = sadd.s32 %s120, 1
      %s122 = scalar_select %p119, %s120, %s121
      %p125 = pneg %p119
      %p126 = scmp.eq.s32.totalorder %s26, 1
      %p127 = por %p125, %p126
      %p128 = scmp.ne.s32.totalorder %s120, %s123
      %p129 = scmp.eq.s32.totalorder %s26, 0
      %p130 = por %p128, %p129
      %p131 = scmp.ne.s32.totalorder %s120, %s123
      %p132 = scmp.eq.s32.totalorder %s31, 1
      %p133 = por %p131, %p132
      %p134 = scmp.ne.s32.totalorder %s123, %s124
      %p135 = scmp.eq.s32.totalorder %s31, 0
      %p136 = por %p134, %p135
      %p137 = scmp.ne.s32.totalorder %s123, %s124
      %p138 = scmp.eq.s32.totalorder %s32, 1
      %p139 = por %p137, %p138
      %p141 = scmp.ne.s32.totalorder %s124, %s140
      %p142 = scmp.eq.s32.totalorder %s32, 0
      %p143 = por %p141, %p142
      %s144 = ssub.s32 %s26, %s33
      %p145 = scmp.eq.s32.totalorder %s144, 0
      %s147 = sadd.s32 %s146, 1
      %s148 = scalar_select %p145, %s146, %s147
      %p151 = pneg %p145
      %p152 = scmp.eq.s32.totalorder %s26, 1
      %p153 = por %p151, %p152
      %p154 = scmp.ne.s32.totalorder %s146, %s149
      %p155 = scmp.eq.s32.totalorder %s26, 0
      %p156 = por %p154, %p155
      %p157 = scmp.ne.s32.totalorder %s146, %s149
      %p158 = scmp.eq.s32.totalorder %s31, 1
      %p159 = por %p157, %p158
      %p160 = scmp.ne.s32.totalorder %s149, %s150
      %p161 = scmp.eq.s32.totalorder %s31, 0
      %p162 = por %p160, %p161
      %p163 = scmp.ne.s32.totalorder %s149, %s150
      %p164 = scmp.eq.s32.totalorder %s32, 1
      %p165 = por %p163, %p164
      %p167 = scmp.ne.s32.totalorder %s150, %s166
      %p168 = scmp.eq.s32.totalorder %s32, 0
      %p169 = por %p167, %p168
      %s170 = ssub.s32 %s26, %s33
      %p171 = scmp.eq.s32.totalorder %s170, 0
      %s173 = sadd.s32 %s172, 1
      %s174 = scalar_select %p171, %s172, %s173
      %p177 = pneg %p171
      %p178 = scmp.eq.s32.totalorder %s26, 1
      %p179 = por %p177, %p178
      %p180 = scmp.ne.s32.totalorder %s172, %s175
      %p181 = scmp.eq.s32.totalorder %s26, 0
      %p182 = por %p180, %p181
      %p183 = scmp.ne.s32.totalorder %s172, %s175
      %p184 = scmp.eq.s32.totalorder %s31, 1
      %p185 = por %p183, %p184
      %p186 = scmp.ne.s32.totalorder %s175, %s176
      %p187 = scmp.eq.s32.totalorder %s31, 0
      %p188 = por %p186, %p187
      %p189 = scmp.ne.s32.totalorder %s175, %s176
      %p190 = scmp.eq.s32.totalorder %s32, 1
      %p191 = por %p189, %p190
      %p193 = scmp.ne.s32.totalorder %s176, %s192
      %p194 = scmp.eq.s32.totalorder %s32, 0
      %p195 = por %p193, %p194
      %s196 = ssub.s32 %s26, %s33
      %p197 = scmp.eq.s32.totalorder %s196, 0
      %s199 = sadd.s32 %s198, 1
      %s200 = scalar_select %p197, %s198, %s199
      %p203 = pneg %p197
      %p204 = scmp.eq.s32.totalorder %s26, 1
      %p205 = por %p203, %p204
      %p206 = scmp.ne.s32.totalorder %s198, %s201
      %p207 = scmp.eq.s32.totalorder %s26, 0
      %p208 = por %p206, %p207
      %p209 = scmp.ne.s32.totalorder %s198, %s201
      %p210 = scmp.eq.s32.totalorder %s31, 1
      %p211 = por %p209, %p210
      %p212 = scmp.ne.s32.totalorder %s201, %s202
      %p213 = scmp.eq.s32.totalorder %s31, 0
      %p214 = por %p212, %p213
      %p215 = scmp.ne.s32.totalorder %s201, %s202
      %p216 = scmp.eq.s32.totalorder %s32, 1
      %p217 = por %p215, %p216
      %p219 = scmp.ne.s32.totalorder %s202, %s218
      %p220 = scmp.eq.s32.totalorder %s32, 0
      %p221 = por %p219, %p220
      %s222 = ssub.s32 %s26, %s33
      %p223 = scmp.eq.s32.totalorder %s222, 0
      %s225 = sadd.s32 %s224, 1
      %s226 = scalar_select %p223, %s224, %s225
      %p229 = pneg %p223
      %p230 = scmp.eq.s32.totalorder %s26, 1
      %p231 = por %p229, %p230
      %p232 = scmp.ne.s32.totalorder %s224, %s227
      %p233 = scmp.eq.s32.totalorder %s26, 0
      %p234 = por %p232, %p233
      %p235 = scmp.ne.s32.totalorder %s224, %s227
      %p236 = scmp.eq.s32.totalorder %s31, 1
      %p237 = por %p235, %p236
      %p238 = scmp.ne.s32.totalorder %s227, %s228
      %p239 = scmp.eq.s32.totalorder %s31, 0
      %p240 = por %p238, %p239
      %p241 = scmp.ne.s32.totalorder %s227, %s228
      %p242 = scmp.eq.s32.totalorder %s32, 1
      %p243 = por %p241, %p242
      %p245 = scmp.ne.s32.totalorder %s228, %s244
      %p246 = scmp.eq.s32.totalorder %s32, 0
      %p247 = por %p245, %p246
      %s248 = ssub.s32 %s26, %s33
      %p249 = scmp.eq.s32.totalorder %s248, 0
      %s251 = sadd.s32 %s250, 1
      %s252 = scalar_select %p249, %s250, %s251
      %p255 = pneg %p249
      %p256 = scmp.eq.s32.totalorder %s26, 1
      %p257 = por %p255, %p256
      %p258 = scmp.ne.s32.totalorder %s250, %s253
      %p259 = scmp.eq.s32.totalorder %s26, 0
      %p260 = por %p258, %p259
      %p261 = scmp.ne.s32.totalorder %s250, %s253
      %p262 = scmp.eq.s32.totalorder %s31, 1
      %p263 = por %p261, %p262
      %p264 = scmp.ne.s32.totalorder %s253, %s254
      %p265 = scmp.eq.s32.totalorder %s31, 0
      %p266 = por %p264, %p265
      %p267 = scmp.ne.s32.totalorder %s253, %s254
      %p268 = scmp.eq.s32.totalorder %s32, 1
      %p269 = por %p267, %p268
      %p271 = scmp.ne.s32.totalorder %s254, %s270
      %p272 = scmp.eq.s32.totalorder %s32, 0
      %p273 = por %p271, %p272
      %s274 = ssub.s32 %s26, %s33
      %p275 = scmp.eq.s32.totalorder %s274, 0
      %s277 = sadd.s32 %s276, 1
      %s278 = scalar_select %p275, %s276, %s277
      %p281 = pneg %p275
      %p282 = scmp.eq.s32.totalorder %s26, 1
      %p283 = por %p281, %p282
      %p284 = scmp.ne.s32.totalorder %s276, %s279
      %p285 = scmp.eq.s32.totalorder %s26, 0
      %p286 = por %p284, %p285
      %p287 = scmp.ne.s32.totalorder %s276, %s279
      %p288 = scmp.eq.s32.totalorder %s31, 1
      %p289 = por %p287, %p288
      %p290 = scmp.ne.s32.totalorder %s279, %s280
      %p291 = scmp.eq.s32.totalorder %s31, 0
      %p292 = por %p290, %p291
      %p293 = scmp.ne.s32.totalorder %s279, %s280
      %p294 = scmp.eq.s32.totalorder %s32, 1
      %p295 = por %p293, %p294
      %p297 = scmp.ne.s32.totalorder %s280, %s296
      %p298 = scmp.eq.s32.totalorder %s32, 0
      %p299 = por %p297, %p298
      %s301 = sadd.s32 %s300, 1
      %p304 = scmp.eq.s32.totalorder %s26, 1
      %p305 = scmp.ne.s32.totalorder %s300, %s302
      %p306 = scmp.eq.s32.totalorder %s26, 0
      %p307 = por %p305, %p306
      %p308 = scmp.ne.s32.totalorder %s300, %s302
      %p309 = scmp.eq.s32.totalorder %s31, 1
      %p310 = por %p308, %p309
      %p311 = scmp.ne.s32.totalorder %s302, %s303
      %p312 = scmp.eq.s32.totalorder %s31, 0
      %p313 = por %p311, %p312
      %p314 = scmp.ne.s32.totalorder %s302, %s303
      %p315 = scmp.eq.s32.totalorder %s32, 1
      %p316 = por %p314, %p315
      %p318 = scmp.ne.s32.totalorder %s303, %s317
      %p319 = scmp.eq.s32.totalorder %s32, 0
      %p320 = por %p318, %p319
      %s322 = sadd.s32 %s321, 1
      %p325 = scmp.eq.s32.totalorder %s26, 1
      %p326 = scmp.ne.s32.totalorder %s321, %s323
      %p327 = scmp.eq.s32.totalorder %s26, 0
      %p328 = por %p326, %p327
      %p329 = scmp.ne.s32.totalorder %s321, %s323
      %p330 = scmp.eq.s32.totalorder %s31, 1
      %p331 = por %p329, %p330
      %p332 = scmp.ne.s32.totalorder %s323, %s324
      %p333 = scmp.eq.s32.totalorder %s31, 0
      %p334 = por %p332, %p333
      %p335 = scmp.ne.s32.totalorder %s323, %s324
      %p336 = scmp.eq.s32.totalorder %s32, 1
      %p337 = por %p335, %p336
      %p339 = scmp.ne.s32.totalorder %s324, %s338
      %p340 = scmp.eq.s32.totalorder %s32, 0
      %p341 = por %p339, %p340
      %s343 = sadd.s32 %s342, 1
      %p346 = scmp.eq.s32.totalorder %s26, 1
      %p347 = scmp.ne.s32.totalorder %s342, %s344
      %p348 = scmp.eq.s32.totalorder %s26, 0
      %p349 = por %p347, %p348
      %p350 = scmp.ne.s32.totalorder %s342, %s344
      %p351 = scmp.eq.s32.totalorder %s31, 1
      %p352 = por %p350, %p351
      %p353 = scmp.ne.s32.totalorder %s344, %s345
      %p354 = scmp.eq.s32.totalorder %s31, 0
      %p355 = por %p353, %p354
      %p356 = scmp.ne.s32.totalorder %s344, %s345
      %p357 = scmp.eq.s32.totalorder %s32, 1
      %p358 = por %p356, %p357
      %p360 = scmp.ne.s32.totalorder %s345, %s359
      %p361 = scmp.eq.s32.totalorder %s32, 0
      %p362 = por %p360, %p361
      %s364 = sadd.s32 %s363, 1
      %p367 = scmp.eq.s32.totalorder %s26, 1
      %p368 = scmp.ne.s32.totalorder %s363, %s365
      %p369 = scmp.eq.s32.totalorder %s26, 0
      %p370 = por %p368, %p369
      %p371 = scmp.ne.s32.totalorder %s363, %s365
      %p372 = scmp.eq.s32.totalorder %s31, 1
      %p373 = por %p371, %p372
      %p374 = scmp.ne.s32.totalorder %s365, %s366
      %p375 = scmp.eq.s32.totalorder %s31, 0
      %p376 = por %p374, %p375
      %p377 = scmp.ne.s32.totalorder %s365, %s366
      %p378 = scmp.eq.s32.totalorder %s32, 1
      %p379 = por %p377, %p378
      %p381 = scmp.ne.s32.totalorder %s366, %s380
      %p382 = scmp.eq.s32.totalorder %s32, 0
      %p383 = por %p381, %p382
      %s385 = sadd.s32 %s384, 1
      %p388 = scmp.eq.s32.totalorder %s26, 1
      %p389 = scmp.ne.s32.totalorder %s384, %s386
      %p390 = scmp.eq.s32.totalorder %s26, 0
      %p391 = por %p389, %p390
      %p392 = scmp.ne.s32.totalorder %s384, %s386
      %p393 = scmp.eq.s32.totalorder %s31, 1
      %p394 = por %p392, %p393
      %p395 = scmp.ne.s32.totalorder %s386, %s387
      %p396 = scmp.eq.s32.totalorder %s31, 0
      %p397 = por %p395, %p396
      %p398 = scmp.ne.s32.totalorder %s386, %s387
      %p399 = scmp.eq.s32.totalorder %s32, 1
      %p400 = por %p398, %p399
      %p402 = scmp.ne.s32.totalorder %s387, %s401
      %p403 = scmp.eq.s32.totalorder %s32, 0
      %p404 = por %p402, %p403
      %s406 = sadd.s32 %s405, 1
      %p409 = scmp.eq.s32.totalorder %s26, 1
      %p410 = scmp.ne.s32.totalorder %s405, %s407
      %p411 = scmp.eq.s32.totalorder %s26, 0
      %p412 = por %p410, %p411
      %p413 = scmp.ne.s32.totalorder %s405, %s407
      %p414 = scmp.eq.s32.totalorder %s31, 1
      %p415 = por %p413, %p414
      %p416 = scmp.ne.s32.totalorder %s407, %s408
      %p417 = scmp.eq.s32.totalorder %s31, 0
      %p418 = por %p416, %p417
      %p419 = scmp.ne.s32.totalorder %s407, %s408
      %p420 = scmp.eq.s32.totalorder %s32, 1
      %p421 = por %p419, %p420
      %p423 = scmp.ne.s32.totalorder %s408, %s422
      %p424 = scmp.eq.s32.totalorder %s32, 0
      %p425 = por %p423, %p424
      %p426 = scmp.le.s32.totalorder 1, %s26
      %p427 = scmp.lt.s32.totalorder %s26, 3
      %p428 = pnand %p426, %p427
      %p429 = pneg %p428
      // Predicated region
      $region9: #{tpu_custom_call.1} parent=5 // pred_check
        _
      $region10: #{tpu_custom_call.1} parent=5 // pred_check_branch
        %431 = sbr.rel (%p428) target = $region12
      $region11: #{tpu_custom_call.1} parent=5 // pred_region
        %s432 = ssub.s32 %s26, 1
        // Predicated region
        $region13: #{tpu_custom_call.1} parent=11 // pred_check
          %p433 = pneg %p47
        $region14: #{tpu_custom_call.1} parent=11 // pred_check_branch
          %435 = sbr.rel (%p433) target = $region16
        $region15: #{tpu_custom_call.1} parent=11 // pred_region
          _
        $region16: #{tpu_custom_call.1} parent=11 // pred_fallthru
          _
        // Predicated region
        $region17: #{tpu_custom_call.1} parent=11 // pred_check
          %p436 = pneg %p68
        $region18: #{tpu_custom_call.1} parent=11 // pred_check_branch
          %438 = sbr.rel (%p436) target = $region20
        $region19: #{tpu_custom_call.1} parent=11 // pred_region
          %s440 = ssub.s32 384, 384
          %441 = vsyncadd [#allocation4], %s440
          %s442 = sshll.u32 [#allocation3], 4
          %s443 = int_to_ptr.vmem [resolvable:$true] %s442
          %448 = dma.hbm_to_vmem [thread:$0]  %s1, 384, %s443, [#allocation4], 64, 64, 4
        $region20: #{tpu_custom_call.1} parent=11 // pred_fallthru
          _
        // Predicated region
        $region21: #{tpu_custom_call.1} parent=11 // pred_check
          %p449 = pneg %p89
        $region22: #{tpu_custom_call.1} parent=11 // pred_check_branch
          %451 = sbr.rel (%p449) target = $region24
        $region23: #{tpu_custom_call.1} parent=11 // pred_region
          %s453 = ssub.s32 768, 768
          %454 = vsyncadd [#allocation7], %s453
          %s455 = sshll.u32 [#allocation6], 4
          %s456 = int_to_ptr.vmem [resolvable:$true] %s455
          %461 = dma.hbm_to_vmem [thread:$0]  %s2, 768, %s456, [#allocation7], 128, 128, 8
        $region24: #{tpu_custom_call.1} parent=11 // pred_fallthru
          _
        // Predicated region
        $region25: #{tpu_custom_call.1} parent=11 // pred_check
          %p462 = pneg %p110
        $region26: #{tpu_custom_call.1} parent=11 // pred_check_branch
          %464 = sbr.rel (%p462) target = $region28
        $region27: #{tpu_custom_call.1} parent=11 // pred_region
          _
        $region28: #{tpu_custom_call.1} parent=11 // pred_fallthru
          _
        // Predicated region
        $region29: #{tpu_custom_call.1} parent=11 // pred_check
          %p465 = pneg %p313
        $region30: #{tpu_custom_call.1} parent=11 // pred_check_branch
          %467 = sbr.rel (%p465) target = $region32
        $region31: #{tpu_custom_call.1} parent=11 // pred_region
          %s469 = ssub.s32 2048, 2048
          %470 = vsyncadd [#allocation7], %s469
          %s471 = sshll.u32 [#allocation14], 4
          %s472 = int_to_ptr.vmem [resolvable:$true] %s471
          %477 = dma.hbm_to_vmem [thread:$0]  %s11, 2048, %s472, [#allocation7], 128, 128, 8
        $region32: #{tpu_custom_call.1} parent=11 // pred_fallthru
          _
        // Predicated region
        $region33: #{tpu_custom_call.1} parent=11 // pred_check
          %p478 = pneg %p334
        $region34: #{tpu_custom_call.1} parent=11 // pred_check_branch
          %480 = sbr.rel (%p478) target = $region36
        $region35: #{tpu_custom_call.1} parent=11 // pred_region
          %s482 = ssub.s32 4096, 4096
          %483 = vsyncadd [#allocation16], %s482
          %s484 = sshll.u32 [#allocation15], 4
          %s485 = int_to_ptr.vmem [resolvable:$true] %s484
          %490 = dma.hbm_to_vmem [thread:$0]  %s12, 4096, %s485, [#allocation16], 128, 128, 8
        $region36: #{tpu_custom_call.1} parent=11 // pred_fallthru
          _
        // Predicated region
        $region37: #{tpu_custom_call.1} parent=11 // pred_check
          %p491 = pneg %p355
        $region38: #{tpu_custom_call.1} parent=11 // pred_check_branch
          %493 = sbr.rel (%p491) target = $region40
        $region39: #{tpu_custom_call.1} parent=11 // pred_region
          _
        $region40: #{tpu_custom_call.1} parent=11 // pred_fallthru
          _
        // Predicated region
        $region41: #{tpu_custom_call.1} parent=11 // pred_check
          %p494 = pneg %p376
        $region42: #{tpu_custom_call.1} parent=11 // pred_check_branch
          %496 = sbr.rel (%p494) target = $region44
        $region43: #{tpu_custom_call.1} parent=11 // pred_region
          _
        $region44: #{tpu_custom_call.1} parent=11 // pred_fallthru
          _
        // Predicated region
        $region45: #{tpu_custom_call.1} parent=11 // pred_check
          %p497 = pneg %p397
        $region46: #{tpu_custom_call.1} parent=11 // pred_check_branch
          %499 = sbr.rel (%p497) target = $region48
        $region47: #{tpu_custom_call.1} parent=11 // pred_region
          _
        $region48: #{tpu_custom_call.1} parent=11 // pred_fallthru
          _
      $region12: #{tpu_custom_call.1} parent=5 // pred_fallthru
        _
      %p500 = scmp.lt.s32.totalorder %s26, 2
      // Predicated region
      $region49: #{tpu_custom_call.1} parent=5 // pred_check
        %p501 = pneg %p500
      $region50: #{tpu_custom_call.1} parent=5 // pred_check_branch
        %503 = sbr.rel (%p501) target = $region52
      $region51: #{tpu_custom_call.1} parent=5 // pred_region
        // Predicated region
        $region53: #{tpu_custom_call.1} parent=51 // pred_check
          %p504 = pneg %p130
        $region54: #{tpu_custom_call.1} parent=51 // pred_check_branch
          %506 = sbr.rel (%p504) target = $region56
        $region55: #{tpu_custom_call.1} parent=51 // pred_region
          %s507 = sand.u32 %s26, 1
          %s508 = scalar_lea.sflag [#allocation4], %s507
          %s509 = sand.u32 %s120, 1
          %s510 = smul.addr %s509, 8
          %s511 = scalar_lea.vmem [#allocation8], %s510
          %s513 = ssub.s32 128, 128
          %514 = vsyncadd %s508, %s513
          %s515 = smul.addr %s26, 128
          %s516 = scalar_lea.hbm %s4, %s515
          %s518 = sshll.u32 %s511, 4
          %s519 = int_to_ptr.vmem [resolvable:$true] %s518
          %521 = dma.hbm_to_vmem [thread:$0]  %s516, 128, %s519, %s508
        $region56: #{tpu_custom_call.1} parent=51 // pred_fallthru
          _
        // Predicated region
        $region57: #{tpu_custom_call.1} parent=51 // pred_check
          %p522 = pneg %p156
        $region58: #{tpu_custom_call.1} parent=51 // pred_check_branch
          %524 = sbr.rel (%p522) target = $region60
        $region59: #{tpu_custom_call.1} parent=51 // pred_region
          %s525 = sand.u32 %s26, 1
          %s526 = scalar_lea.sflag [#allocation4], %s525
          %s527 = sand.u32 %s146, 1
          %s528 = smul.addr %s527, 3
          %s529 = scalar_lea.vmem [#allocation9], %s528
          %s531 = ssub.s32 48, 48
          %532 = vsyncadd %s526, %s531
          %s533 = smul.addr %s26, 3
          %s534 = smul.addr %s533, 16
          %s535 = scalar_lea.hbm %s5, %s534
          %s537 = sshll.u32 %s529, 4
          %s538 = int_to_ptr.vmem [resolvable:$true] %s537
          %540 = dma.hbm_to_vmem [thread:$0]  %s535, 48, %s538, %s526
        $region60: #{tpu_custom_call.1} parent=51 // pred_fallthru
          _
        // Predicated region
        $region61: #{tpu_custom_call.1} parent=51 // pred_check
          %p541 = pneg %p182
        $region62: #{tpu_custom_call.1} parent=51 // pred_check_branch
          %543 = sbr.rel (%p541) target = $region64
        $region63: #{tpu_custom_call.1} parent=51 // pred_region
          %p544 = scmp.lt.s32.totalorder %s26, 1
          %s545 = scalar_select %p544, %s26, 1
          %s546 = smul.addr %s545, 4
          %s547 = scalar_lea.vmem %s6, %s546
        $region64: #{tpu_custom_call.1} parent=51 // pred_fallthru
          _
        // Predicated region
        $region65: #{tpu_custom_call.1} parent=51 // pred_check
          %p548 = pneg %p208
        $region66: #{tpu_custom_call.1} parent=51 // pred_check_branch
          %550 = sbr.rel (%p548) target = $region68
        $region67: #{tpu_custom_call.1} parent=51 // pred_region
          %s551 = sand.u32 %s26, 1
          %s552 = scalar_lea.sflag [#allocation4], %s551
          %s553 = sand.u32 %s198, 1
          %s554 = smul.addr %s553, 192
          %s555 = scalar_lea.vmem [#allocation10], %s554
          %s557 = ssub.s32 3072, 3072
          %558 = vsyncadd %s552, %s557
          %s559 = smul.addr %s26, 48
          %s560 = smul.addr %s559, 64
          %s561 = scalar_lea.hbm %s7, %s560
          %s562 = sshll.u32 %s555, 4
          %s563 = int_to_ptr.vmem [resolvable:$true] %s562
          %568 = dma.hbm_to_vmem [thread:$0]  %s561, 3072, %s563, %s552, 192, 192, 12
        $region68: #{tpu_custom_call.1} parent=51 // pred_fallthru
          _
        // Predicated region
        $region69: #{tpu_custom_call.1} parent=51 // pred_check
          %p569 = pneg %p234
        $region70: #{tpu_custom_call.1} parent=51 // pred_check_branch
          %571 = sbr.rel (%p569) target = $region72
        $region71: #{tpu_custom_call.1} parent=51 // pred_region
          %s572 = sand.u32 %s26, 1
          %s573 = scalar_lea.sflag [#allocation4], %s572
          %s574 = sand.u32 %s224, 1
          %s575 = smul.addr %s574, 64
          %s576 = scalar_lea.vmem [#allocation11], %s575
          %s578 = ssub.s32 1024, 1024
          %579 = vsyncadd %s573, %s578
          %s580 = smul.addr %s26, 16
          %s581 = smul.addr %s580, 64
          %s582 = scalar_lea.hbm %s8, %s581
          %s583 = sshll.u32 %s576, 4
          %s584 = int_to_ptr.vmem [resolvable:$true] %s583
          %589 = dma.hbm_to_vmem [thread:$0]  %s582, 1024, %s584, %s573, 64, 64, 4
        $region72: #{tpu_custom_call.1} parent=51 // pred_fallthru
          _
        // Predicated region
        $region73: #{tpu_custom_call.1} parent=51 // pred_check
          %p590 = pneg %p260
        $region74: #{tpu_custom_call.1} parent=51 // pred_check_branch
          %592 = sbr.rel (%p590) target = $region76
        $region75: #{tpu_custom_call.1} parent=51 // pred_region
          %s593 = sand.u32 %s26, 1
          %s594 = scalar_lea.sflag [#allocation4], %s593
          %s595 = sand.u32 %s250, 1
          %s596 = smul.addr %s595, 256
          %s597 = scalar_lea.vmem [#allocation12], %s596
          %s599 = ssub.s32 4096, 4096
          %600 = vsyncadd %s594, %s599
          %s601 = smul.addr %s26, 64
          %s602 = smul.addr %s601, 64
          %s603 = scalar_lea.hbm %s9, %s602
          %s604 = sshll.u32 %s597, 4
          %s605 = int_to_ptr.vmem [resolvable:$true] %s604
          %610 = dma.hbm_to_vmem [thread:$0]  %s603, 4096, %s605, %s594, 256, 256, 16
        $region76: #{tpu_custom_call.1} parent=51 // pred_fallthru
          _
        // Predicated region
        $region77: #{tpu_custom_call.1} parent=51 // pred_check
          %p611 = pneg %p286
        $region78: #{tpu_custom_call.1} parent=51 // pred_check_branch
          %613 = sbr.rel (%p611) target = $region80
        $region79: #{tpu_custom_call.1} parent=51 // pred_region
          %s614 = sand.u32 %s26, 1
          %s615 = scalar_lea.sflag [#allocation4], %s614
          %s616 = sand.u32 %s276, 1
          %s617 = smul.addr %s616, 256
          %s618 = scalar_lea.vmem [#allocation13], %s617
          %s620 = ssub.s32 4096, 4096
          %621 = vsyncadd %s615, %s620
          %s622 = smul.addr %s26, 64
          %s623 = smul.addr %s622, 64
          %s624 = scalar_lea.hbm %s10, %s623
          %s625 = sshll.u32 %s618, 4
          %s626 = int_to_ptr.vmem [resolvable:$true] %s625
          %631 = dma.hbm_to_vmem [thread:$0]  %s624, 4096, %s626, %s615, 64, 64, 4
        $region80: #{tpu_custom_call.1} parent=51 // pred_fallthru
          _
      $region52: #{tpu_custom_call.1} parent=5 // pred_fallthru
        _
      %p632 = scmp.le.s32.totalorder 1, %s26
      %p633 = scmp.lt.s32.totalorder %s26, 3
      %p634 = pnand %p632, %p633
      %p635 = pneg %p634
      // Predicated region
      $region81: #{tpu_custom_call.1} parent=5 // pred_check
        _
      $region82: #{tpu_custom_call.1} parent=5 // pred_check_branch
        %637 = sbr.rel (%p634) target = $region84
      $region83: #{tpu_custom_call.1} parent=5 // pred_region
        %s638 = ssub.s32 %s26, 1
        // Predicated region
        $region85: #{tpu_custom_call.1} parent=83 // pred_check
          %p639 = pneg %p68
        $region86: #{tpu_custom_call.1} parent=83 // pred_check_branch
          %641 = sbr.rel (%p639) target = $region88
        $region87: #{tpu_custom_call.1} parent=83 // pred_region
          %642 = dma.done [#allocation4], 384
        $region88: #{tpu_custom_call.1} parent=83 // pred_fallthru
          _
        // Predicated region
        $region89: #{tpu_custom_call.1} parent=83 // pred_check
          %p643 = pneg %p89
        $region90: #{tpu_custom_call.1} parent=83 // pred_check_branch
          %645 = sbr.rel (%p643) target = $region92
        $region91: #{tpu_custom_call.1} parent=83 // pred_region
          %646 = dma.done [#allocation7], 768
        $region92: #{tpu_custom_call.1} parent=83 // pred_fallthru
          _
        %s647 = sand.u32 %s31, 1
        %s648 = scalar_lea.sflag [#allocation4], %s647
        %s649 = sand.u32 %s123, 1
        %s650 = smul.addr %s649, 8
        %s651 = scalar_lea.vmem [#allocation8], %s650
        // Predicated region
        $region93: #{tpu_custom_call.1} parent=83 // pred_check
          %p652 = pneg %p136
        $region94: #{tpu_custom_call.1} parent=83 // pred_check_branch
          %654 = sbr.rel (%p652) target = $region96
        $region95: #{tpu_custom_call.1} parent=83 // pred_region
          %655 = dma.done %s648, 128
        $region96: #{tpu_custom_call.1} parent=83 // pred_fallthru
          _
        %s656 = sand.u32 %s31, 1
        %s657 = scalar_lea.sflag [#allocation4], %s656
        %s658 = sand.u32 %s149, 1
        %s659 = smul.addr %s658, 3
        %s660 = scalar_lea.vmem [#allocation9], %s659
        // Predicated region
        $region97: #{tpu_custom_call.1} parent=83 // pred_check
          %p661 = pneg %p162
        $region98: #{tpu_custom_call.1} parent=83 // pred_check_branch
          %663 = sbr.rel (%p661) target = $region100
        $region99: #{tpu_custom_call.1} parent=83 // pred_region
          %664 = dma.done %s657, 48
        $region100: #{tpu_custom_call.1} parent=83 // pred_fallthru
          _
        %s665 = sand.u32 %s31, 1
        %s666 = scalar_lea.sflag [#allocation4], %s665
        %s667 = sand.u32 %s201, 1
        %s668 = smul.addr %s667, 192
        %s669 = scalar_lea.vmem [#allocation10], %s668
        // Predicated region
        $region101: #{tpu_custom_call.1} parent=83 // pred_check
          %p670 = pneg %p214
        $region102: #{tpu_custom_call.1} parent=83 // pred_check_branch
          %672 = sbr.rel (%p670) target = $region104
        $region103: #{tpu_custom_call.1} parent=83 // pred_region
          %673 = dma.done %s666, 3072
        $region104: #{tpu_custom_call.1} parent=83 // pred_fallthru
          _
        %s674 = sand.u32 %s31, 1
        %s675 = scalar_lea.sflag [#allocation4], %s674
        %s676 = sand.u32 %s227, 1
        %s677 = smul.addr %s676, 64
        %s678 = scalar_lea.vmem [#allocation11], %s677
        // Predicated region
        $region105: #{tpu_custom_call.1} parent=83 // pred_check
          %p679 = pneg %p240
        $region106: #{tpu_custom_call.1} parent=83 // pred_check_branch
          %681 = sbr.rel (%p679) target = $region108
        $region107: #{tpu_custom_call.1} parent=83 // pred_region
          %682 = dma.done %s675, 1024
        $region108: #{tpu_custom_call.1} parent=83 // pred_fallthru
          _
        %s683 = sand.u32 %s31, 1
        %s684 = scalar_lea.sflag [#allocation4], %s683
        %s685 = sand.u32 %s253, 1
        %s686 = smul.addr %s685, 256
        %s687 = scalar_lea.vmem [#allocation12], %s686
        // Predicated region
        $region109: #{tpu_custom_call.1} parent=83 // pred_check
          %p688 = pneg %p266
        $region110: #{tpu_custom_call.1} parent=83 // pred_check_branch
          %690 = sbr.rel (%p688) target = $region112
        $region111: #{tpu_custom_call.1} parent=83 // pred_region
          %691 = dma.done %s684, 4096
        $region112: #{tpu_custom_call.1} parent=83 // pred_fallthru
          _
        %s692 = sand.u32 %s31, 1
        %s693 = scalar_lea.sflag [#allocation4], %s692
        %s694 = sand.u32 %s279, 1
        %s695 = smul.addr %s694, 256
        %s696 = scalar_lea.vmem [#allocation13], %s695
        // Predicated region
        $region113: #{tpu_custom_call.1} parent=83 // pred_check
          %p697 = pneg %p292
        $region114: #{tpu_custom_call.1} parent=83 // pred_check_branch
          %699 = sbr.rel (%p697) target = $region116
        $region115: #{tpu_custom_call.1} parent=83 // pred_region
          %700 = dma.done %s693, 4096
        $region116: #{tpu_custom_call.1} parent=83 // pred_fallthru
          _
        // Predicated region
        $region117: #{tpu_custom_call.1} parent=83 // pred_check
          %p701 = pneg %p313
        $region118: #{tpu_custom_call.1} parent=83 // pred_check_branch
          %703 = sbr.rel (%p701) target = $region120
        $region119: #{tpu_custom_call.1} parent=83 // pred_region
          %704 = dma.done [#allocation7], 2048
        $region120: #{tpu_custom_call.1} parent=83 // pred_fallthru
          _
        // Predicated region
        $region121: #{tpu_custom_call.1} parent=83 // pred_check
          %p705 = pneg %p334
        $region122: #{tpu_custom_call.1} parent=83 // pred_check_branch
          %707 = sbr.rel (%p705) target = $region124
        $region123: #{tpu_custom_call.1} parent=83 // pred_region
          %708 = dma.done [#allocation16], 4096
        $region124: #{tpu_custom_call.1} parent=83 // pred_fallthru
          _
        %p709 = pneg %p47
        %p710 = pneg %p44
        %p711 = pneg %p68
        %p712 = pneg %p65
        %p713 = pneg %p89
        %p714 = pneg %p86
        %p715 = pneg %p110
        %p716 = pneg %p107
        %s717 = sand.u32 %s31, 1
        %s718 = scalar_lea.sflag [#allocation4], %s717
        %s719 = sand.u32 %s123, 1
        %s720 = smul.addr %s719, 8
        %s721 = scalar_lea.vmem [#allocation8], %s720
        %p722 = pneg %p136
        %p723 = pneg %p133
        %s724 = sand.u32 %s31, 1
        %s725 = scalar_lea.sflag [#allocation4], %s724
        %s726 = sand.u32 %s149, 1
        %s727 = smul.addr %s726, 3
        %s728 = scalar_lea.vmem [#allocation9], %s727
        %p729 = pneg %p162
        %p730 = pneg %p159
        %p731 = scmp.lt.s32.totalorder %s31, 1
        %s732 = scalar_select %p731, %s31, 1
        %s733 = smul.addr %s732, 4
        %s734 = scalar_lea.vmem %s6, %s733
        %p735 = pneg %p188
        %p736 = pneg %p185
        %s737 = sand.u32 %s31, 1
        %s738 = scalar_lea.sflag [#allocation4], %s737
        %s739 = sand.u32 %s201, 1
        %s740 = smul.addr %s739, 192
        %s741 = scalar_lea.vmem [#allocation10], %s740
        %p742 = pneg %p214
        %p743 = pneg %p211
        %s744 = sand.u32 %s31, 1
        %s745 = scalar_lea.sflag [#allocation4], %s744
        %s746 = sand.u32 %s227, 1
        %s747 = smul.addr %s746, 64
        %s748 = scalar_lea.vmem [#allocation11], %s747
        %p749 = pneg %p240
        %p750 = pneg %p237
        %s751 = sand.u32 %s31, 1
        %s752 = scalar_lea.sflag [#allocation4], %s751
        %s753 = sand.u32 %s253, 1
        %s754 = smul.addr %s753, 256
        %s755 = scalar_lea.vmem [#allocation12], %s754
        %p756 = pneg %p266
        %p757 = pneg %p263
        %s758 = sand.u32 %s31, 1
        %s759 = scalar_lea.sflag [#allocation4], %s758
        %s760 = sand.u32 %s279, 1
        %s761 = smul.addr %s760, 256
        %s762 = scalar_lea.vmem [#allocation13], %s761
        %p763 = pneg %p292
        %p764 = pneg %p289
        %p765 = pneg %p313
        %p766 = pneg %p310
        %p767 = pneg %p334
        %p768 = pneg %p331
        %p769 = pneg %p355
        %p770 = pneg %p352
        %p771 = pneg %p376
        %p772 = pneg %p373
        %p773 = pneg %p397
        %p774 = pneg %p394
        %p775 = pneg %p418
        %p776 = pneg %p415
        %p777 = scmp.lt.s32.totalorder %s31, 1
        %s778 = scalar_select %p777, %s31, 1
        %s779 = smul.addr %s778, 4
        %s780 = scalar_lea.vmem %s6, %s779
        %p782 = scmp.eq.s32.totalorder %s31, 0
        // Predicated region
        $region125: #{tpu_custom_call.1} parent=83 // pred_check
          %p783 = pneg %p782
        $region126: #{tpu_custom_call.1} parent=83 // pred_check_branch
          %785 = sbr.rel (%p783) target = $region128
        $region127: #{tpu_custom_call.1} parent=83 // pred_region
          %v786 = vld [vmem:[%s0] sm:$0xff]
          %v787 = vld [vmem:[%s0 + $0x8] sm:$0xff]
          %v788 = vld [vmem:[%s0 + $0x10] sm:$0xff]
          %v789 = vld [vmem:[%s0 + $0x18] sm:$0xff]
          %v790 = vld [vmem:[%s0 + $0x20] sm:$0xff]
          %v791 = vld [vmem:[%s0 + $0x28] sm:$0xff]
          %v792 = vpack.c.bf16 %v787, %v786
          %v793 = vpack.c.bf16 %v789, %v788
          %v794 = vpack.c.bf16 %v791, %v790
          %v795 = vld [vmem:[#allocation3] sm:$0xf]
          %v796 = vld [vmem:[#allocation3 + $0x4] sm:$0xf]
          %v797 = vld [vmem:[#allocation3 + $0x8] sm:$0xf]
          %v798 = vld [vmem:[#allocation3 + $0xc] sm:$0xf]
          %v799 = vld [vmem:[#allocation3 + $0x10] sm:$0xf]
          %v800 = vld [vmem:[#allocation3 + $0x14] sm:$0xf]
          %v801 = vld [vmem:[#allocation6] sm:$0xff]
          %v802 = vld [vmem:[#allocation6 + $0x8] sm:$0xff]
          %v803 = vld [vmem:[#allocation6 + $0x10] sm:$0xff]
          %v804 = vld [vmem:[#allocation6 + $0x18] sm:$0xff]
          %v805 = vld [vmem:[#allocation6 + $0x20] sm:$0xff]
          %v806 = vld [vmem:[#allocation6 + $0x28] sm:$0xff]
          %v813 = vunpack.c.l.b16 %v795
          %v814 = vunpack.c.l.b16 %v796
          %v815 = vunpack.c.l.b16 %v797
          %v816 = vunpack.c.l.b16 %v798
          %v817 = vunpack.c.l.b16 %v799
          %v818 = vunpack.c.l.b16 %v800
          %v819 = vpack.c.b16 %v814, %v813
          %v820 = vpack.c.b16 %v816, %v815
          %v821 = vpack.c.b16 %v818, %v817
          %vm825 = vcmask 392192
          %v827 = vsel %vm825, %v792, 0
          %v830 = vsel %vm825, %v793, 0
          %v833 = vsel %vm825, %v794, 0
          %835 = vmatprep.subr.bf16.mxu0 0
          %836 = vmatpush1.bf16.msra.mxu0 %v819
          %837 = vmatprep.subr.bf16.mxu0 0
          %838 = vmatpush1.bf16.msra.mxu0 %v820
          %839 = vmatprep.subr.bf16.mxu0 0
          %840 = vmatpush1.bf16.msra.mxu0 %v821
          %841 = vmatprep.subr.bf16.mxu0 0
          %842 = vmatpush1.bf16.msra.mxu0 0
          %843 = vmatprep.subr.bf16.mxu0 0
          %844 = vmatpush1.bf16.msra.mxu0 0
          %845 = vmatprep.subr.bf16.mxu0 0
          %846 = vmatpush1.bf16.msra.mxu0 0
          %847 = vmatprep.subr.bf16.mxu0 0
          %848 = vmatpush1.bf16.msra.mxu0 0
          %849 = vmatprep.subr.bf16.mxu0 0
          %850 = vmatpush1.bf16.msra.mxu0 0
          %851 = vmatprep.subr.bf16.mxu0 0
          %852 = vmatpush1.bf16.msra.mxu0 0
          %853 = vmatprep.subr.bf16.mxu0 0
          %854 = vmatpush1.bf16.msra.mxu0 0
          %855 = vmatprep.subr.bf16.mxu0 0
          %856 = vmatpush1.bf16.msra.mxu0 0
          %857 = vmatprep.subr.bf16.mxu0 0
          %858 = vmatpush1.bf16.msra.mxu0 0
          %859 = vmatprep.subr.bf16.mxu0 0
          %860 = vmatpush1.bf16.msra.mxu0 0
          %861 = vmatprep.subr.bf16.mxu0 0
          %862 = vmatpush1.bf16.msra.mxu0 0
          %863 = vmatprep.subr.bf16.mxu0 0
          %864 = vmatpush1.bf16.msra.mxu0 0
          %865 = vmatprep.subr.bf16.mxu0 0
          %866 = vmatpush1.bf16.msra.mxu0 0
          %867 = vmatprep.mubr.bf16.mxu0 0
          %868 = vmatmul.mubr.bf16.gmra.mrb[0].mxu0 %v827
          %v869 = vpop.f32.mrb[0].mxu0
          %v870 = vadd.f32 %v801, %v869
          %v871 = vpop.f32.mrb[0].mxu0
          %v872 = vpop.f32.mrb[0].mxu0
          %v873 = vadd.f32 %v802, %v872
          %v874 = vpop.f32.mrb[0].mxu0
          %875 = vmatprep.mubr.bf16.mxu0 0
          %876 = vmatmul.mubr.bf16.gmra.mrb[0].mxu0 %v830
          %v877 = vpop.f32.mrb[0].mxu0
          %v878 = vadd.f32 %v803, %v877
          %v879 = vpop.f32.mrb[0].mxu0
          %v880 = vpop.f32.mrb[0].mxu0
          %v881 = vadd.f32 %v804, %v880
          %v882 = vpop.f32.mrb[0].mxu0
          %883 = vmatprep.mubr.bf16.mxu0 0
          %884 = vmatmul.mubr.bf16.gmra.mrb[0].mxu0 %v833
          %v885 = vpop.f32.mrb[0].mxu0
          %v886 = vadd.f32 %v805, %v885
          %v887 = vpop.f32.mrb[0].mxu0
          %v888 = vpop.f32.mrb[0].mxu0
          %v889 = vadd.f32 %v806, %v888
          %v890 = vpop.f32.mrb[0].mxu0
          %891 = vdwg.mxu0
          %v892 = vld [vmem:[%s3] sm:$0x1]
          %v893 = vld [vmem:[%s3 + $0x1] sm:$0x1]
          %894 = vadd.xlane.f32.xlu0 %v870
          %v895 = vpop.xlane.xlu0 %894
          %896 = vadd.xlane.f32.xlu0 %v873
          %v897 = vpop.xlane.xlu0 %896
          %898 = vadd.xlane.f32.xlu0 %v878
          %v899 = vpop.xlane.xlu0 %898
          %900 = vadd.xlane.f32.xlu0 %v881
          %v901 = vpop.xlane.xlu0 %900
          %902 = vadd.xlane.f32.xlu0 %v886
          %v903 = vpop.xlane.xlu0 %902
          %904 = vadd.xlane.f32.xlu0 %v889
          %v905 = vpop.xlane.xlu0 %904
          %v906 = vrcp.pop 128.0
          %v907 = vmul.f32 %v895, %v906
          %v908 = vmul.f32 %v897, %v906
          %v909 = vmul.f32 %v899, %v906
          %v910 = vmul.f32 %v901, %v906
          %v911 = vmul.f32 %v903, %v906
          %v912 = vmul.f32 %v905, %v906
          %v913 = vsub.f32 %v870, %v907
          %v914 = vsub.f32 %v873, %v908
          %v915 = vsub.f32 %v878, %v909
          %v916 = vsub.f32 %v881, %v910
          %v917 = vsub.f32 %v886, %v911
          %v918 = vsub.f32 %v889, %v912
          %v919 = vmul.f32 %v913, %v913
          %v920 = vmul.f32 %v914, %v914
          %v921 = vmul.f32 %v915, %v915
          %v922 = vmul.f32 %v916, %v916
          %v923 = vmul.f32 %v917, %v917
          %v924 = vmul.f32 %v918, %v918
          %925 = vadd.xlane.f32.xlu0 %v919
          %v926 = vpop.xlane.xlu0 %925
          %927 = vadd.xlane.f32.xlu0 %v920
          %v928 = vpop.xlane.xlu0 %927
          %929 = vadd.xlane.f32.xlu0 %v921
          %v930 = vpop.xlane.xlu0 %929
          %931 = vadd.xlane.f32.xlu0 %v922
          %v932 = vpop.xlane.xlu0 %931
          %933 = vadd.xlane.f32.xlu0 %v923
          %v934 = vpop.xlane.xlu0 %933
          %935 = vadd.xlane.f32.xlu0 %v924
          %v936 = vpop.xlane.xlu0 %935
          %v937 = vmul.f32 %v926, %v906
          %v938 = vmul.f32 %v928, %v906
          %v939 = vmul.f32 %v930, %v906
          %v940 = vmul.f32 %v932, %v906
          %v941 = vmul.f32 %v934, %v906
          %v942 = vmul.f32 %v936, %v906
          %v943 = vadd.f32 %v937, 1e-05
          %v944 = vadd.f32 %v938, 1e-05
          %v945 = vadd.f32 %v939, 1e-05
          %v946 = vadd.f32 %v940, 1e-05
          %v947 = vadd.f32 %v941, 1e-05
          %v948 = vadd.f32 %v942, 1e-05
          %v949 = vrsqrt.pop %v943
          %v950 = vrsqrt.pop %v944
          %v951 = vrsqrt.pop %v945
          %v952 = vrsqrt.pop %v946
          %v953 = vrsqrt.pop %v947
          %v954 = vrsqrt.pop %v948
          %v955 = vmul.f32 %v913, %v949
          %v956 = vmul.f32 %v914, %v950
          %v957 = vmul.f32 %v915, %v951
          %v958 = vmul.f32 %v916, %v952
          %v959 = vmul.f32 %v917, %v953
          %v960 = vmul.f32 %v918, %v954
          %v961 = vlaneseq
          %v962 = vshrl.u32 %v961, 7
          %v963 = vsub.s32 0, %v962
          %v964 = vrot.slane %v892, %v963
          %v965 = vmul.f32 %v955, %v964
          %v966 = vmul.f32 %v956, %v964
          %v967 = vmul.f32 %v957, %v964
          %v968 = vmul.f32 %v958, %v964
          %v969 = vmul.f32 %v959, %v964
          %v970 = vmul.f32 %v960, %v964
          %v971 = vlaneseq
          %v972 = vshrl.u32 %v971, 7
          %v973 = vsub.s32 0, %v972
          %v974 = vrot.slane %v893, %v973
          %v975 = vadd.f32 %v965, %v974
          %v976 = vadd.f32 %v966, %v974
          %v977 = vadd.f32 %v967, %v974
          %v978 = vadd.f32 %v968, %v974
          %v979 = vadd.f32 %v969, %v974
          %v980 = vadd.f32 %v970, %v974
          %981 = vst [vmem:[#allocation2] sm:$0xff] %v975
          %982 = vst [vmem:[#allocation2 + $0x8] sm:$0xff] %v976
          %983 = vst [vmem:[#allocation2 + $0x10] sm:$0xff] %v977
          %984 = vst [vmem:[#allocation2 + $0x18] sm:$0xff] %v978
          %985 = vst [vmem:[#allocation2 + $0x20] sm:$0xff] %v979
          %986 = vst [vmem:[#allocation2 + $0x28] sm:$0xff] %v980
        $region128: #{tpu_custom_call.1} parent=83 // pred_fallthru
          _
        %v987 = vld [vmem:[#allocation2] sm:$0xff]
        %v988 = vld [vmem:[#allocation2 + $0x8] sm:$0xff]
        %v989 = vld [vmem:[#allocation2 + $0x10] sm:$0xff]
        %v990 = vld [vmem:[#allocation2 + $0x18] sm:$0xff]
        %v991 = vld [vmem:[#allocation2 + $0x20] sm:$0xff]
        %v992 = vld [vmem:[#allocation2 + $0x28] sm:$0xff]
        %v993 = vld [vmem:[%s651] sm:$0x1]
        %v994 = vld [vmem:[%s651 + $0x1] sm:$0x1]
        %v995 = vld [vmem:[%s651 + $0x2] sm:$0x1]
        %v996 = vld [vmem:[%s651 + $0x3] sm:$0x1]
        %v997 = vld [vmem:[%s651 + $0x4] sm:$0x1]
        %v998 = vld [vmem:[%s651 + $0x5] sm:$0x1]
        %999 = vadd.xlane.f32.xlu0 %v987
        %v1000 = vpop.xlane.xlu0 %999
        %1001 = vadd.xlane.f32.xlu0 %v988
        %v1002 = vpop.xlane.xlu0 %1001
        %1003 = vadd.xlane.f32.xlu0 %v989
        %v1004 = vpop.xlane.xlu0 %1003
        %1005 = vadd.xlane.f32.xlu0 %v990
        %v1006 = vpop.xlane.xlu0 %1005
        %1007 = vadd.xlane.f32.xlu0 %v991
        %v1008 = vpop.xlane.xlu0 %1007
        %1009 = vadd.xlane.f32.xlu0 %v992
        %v1010 = vpop.xlane.xlu0 %1009
        %v1011 = vrcp.pop 128.0
        %v1012 = vmul.f32 %v1000, %v1011
        %v1013 = vmul.f32 %v1002, %v1011
        %v1014 = vmul.f32 %v1004, %v1011
        %v1015 = vmul.f32 %v1006, %v1011
        %v1016 = vmul.f32 %v1008, %v1011
        %v1017 = vmul.f32 %v1010, %v1011
        %v1018 = vsub.f32 %v987, %v1012
        %v1019 = vsub.f32 %v988, %v1013
        %v1020 = vsub.f32 %v989, %v1014
        %v1021 = vsub.f32 %v990, %v1015
        %v1022 = vsub.f32 %v991, %v1016
        %v1023 = vsub.f32 %v992, %v1017
        %v1024 = vmul.f32 %v1018, %v1018
        %v1025 = vmul.f32 %v1019, %v1019
        %v1026 = vmul.f32 %v1020, %v1020
        %v1027 = vmul.f32 %v1021, %v1021
        %v1028 = vmul.f32 %v1022, %v1022
        %v1029 = vmul.f32 %v1023, %v1023
        %1030 = vadd.xlane.f32.xlu0 %v1024
        %v1031 = vpop.xlane.xlu0 %1030
        %1032 = vadd.xlane.f32.xlu0 %v1025
        %v1033 = vpop.xlane.xlu0 %1032
        %1034 = vadd.xlane.f32.xlu0 %v1026
        %v1035 = vpop.xlane.xlu0 %1034
        %1036 = vadd.xlane.f32.xlu0 %v1027
        %v1037 = vpop.xlane.xlu0 %1036
        %1038 = vadd.xlane.f32.xlu0 %v1028
        %v1039 = vpop.xlane.xlu0 %1038
        %1040 = vadd.xlane.f32.xlu0 %v1029
        %v1041 = vpop.xlane.xlu0 %1040
        %v1042 = vmul.f32 %v1031, %v1011
        %v1043 = vmul.f32 %v1033, %v1011
        %v1044 = vmul.f32 %v1035, %v1011
        %v1045 = vmul.f32 %v1037, %v1011
        %v1046 = vmul.f32 %v1039, %v1011
        %v1047 = vmul.f32 %v1041, %v1011
        %v1048 = vadd.f32 %v1042, 1e-05
        %v1049 = vadd.f32 %v1043, 1e-05
        %v1050 = vadd.f32 %v1044, 1e-05
        %v1051 = vadd.f32 %v1045, 1e-05
        %v1052 = vadd.f32 %v1046, 1e-05
        %v1053 = vadd.f32 %v1047, 1e-05
        %v1054 = vrsqrt.pop %v1048
        %v1055 = vrsqrt.pop %v1049
        %v1056 = vrsqrt.pop %v1050
        %v1057 = vrsqrt.pop %v1051
        %v1058 = vrsqrt.pop %v1052
        %v1059 = vrsqrt.pop %v1053
        %v1060 = vmul.f32 %v1018, %v1054
        %v1061 = vmul.f32 %v1019, %v1055
        %v1062 = vmul.f32 %v1020, %v1056
        %v1063 = vmul.f32 %v1021, %v1057
        %v1064 = vmul.f32 %v1022, %v1058
        %v1065 = vmul.f32 %v1023, %v1059
        %v1066 = vlaneseq
        %v1067 = vshrl.u32 %v1066, 7
        %v1068 = vsub.s32 0, %v1067
        %v1069 = vrot.slane %v993, %v1068
        %v1070 = vmul.f32 %v1060, %v1069
        %v1071 = vmul.f32 %v1061, %v1069
        %v1072 = vmul.f32 %v1062, %v1069
        %v1073 = vmul.f32 %v1063, %v1069
        %v1074 = vmul.f32 %v1064, %v1069
        %v1075 = vmul.f32 %v1065, %v1069
        %v1076 = vlaneseq
        %v1077 = vshrl.u32 %v1076, 7
        %v1078 = vsub.s32 0, %v1077
        %v1079 = vrot.slane %v994, %v1078
        %v1080 = vadd.f32 %v1070, %v1079
        %v1081 = vadd.f32 %v1071, %v1079
        %v1082 = vadd.f32 %v1072, %v1079
        %v1083 = vadd.f32 %v1073, %v1079
        %v1084 = vadd.f32 %v1074, %v1079
        %v1085 = vadd.f32 %v1075, %v1079
        %v1086 = vpack.c.bf16 %v1081, %v1080
        %v1087 = vpack.c.bf16 %v1083, %v1082
        %v1088 = vpack.c.bf16 %v1085, %v1084
        %v1089 = vld [vmem:[%s669] sm:$0xff]
        %v1090 = vld [vmem:[%s669 + $0x8] sm:$0xf]
        %v1091 = vld [vmem:[%s669 + $0xc] sm:$0xff]
        %v1092 = vld [vmem:[%s669 + $0x14] sm:$0xf]
        %v1093 = vld [vmem:[%s669 + $0x18] sm:$0xff]
        %v1094 = vld [vmem:[%s669 + $0x20] sm:$0xf]
        %v1095 = vld [vmem:[%s669 + $0x24] sm:$0xff]
        %v1096 = vld [vmem:[%s669 + $0x2c] sm:$0xf]
        %v1097 = vld [vmem:[%s669 + $0x30] sm:$0xff]
        %v1098 = vld [vmem:[%s669 + $0x38] sm:$0xf]
        %v1099 = vld [vmem:[%s669 + $0x3c] sm:$0xff]
        %v1100 = vld [vmem:[%s669 + $0x44] sm:$0xf]
        %v1101 = vld [vmem:[%s669 + $0x48] sm:$0xff]
        %v1102 = vld [vmem:[%s669 + $0x50] sm:$0xf]
        %v1103 = vld [vmem:[%s669 + $0x54] sm:$0xff]
        %v1104 = vld [vmem:[%s669 + $0x5c] sm:$0xf]
        %v1105 = vld [vmem:[%s669 + $0x60] sm:$0xff]
        %v1106 = vld [vmem:[%s669 + $0x68] sm:$0xf]
        %v1107 = vld [vmem:[%s669 + $0x6c] sm:$0xff]
        %v1108 = vld [vmem:[%s669 + $0x74] sm:$0xf]
        %v1109 = vld [vmem:[%s669 + $0x78] sm:$0xff]
        %v1110 = vld [vmem:[%s669 + $0x80] sm:$0xf]
        %v1111 = vld [vmem:[%s669 + $0x84] sm:$0xff]
        %v1112 = vld [vmem:[%s669 + $0x8c] sm:$0xf]
        %v1113 = vld [vmem:[%s669 + $0x90] sm:$0xff]
        %v1114 = vld [vmem:[%s669 + $0x98] sm:$0xf]
        %v1115 = vld [vmem:[%s669 + $0x9c] sm:$0xff]
        %v1116 = vld [vmem:[%s669 + $0xa4] sm:$0xf]
        %v1117 = vld [vmem:[%s669 + $0xa8] sm:$0xff]
        %v1118 = vld [vmem:[%s669 + $0xb0] sm:$0xf]
        %v1119 = vld [vmem:[%s669 + $0xb4] sm:$0xff]
        %v1120 = vld [vmem:[%s669 + $0xbc] sm:$0xf]
        %v1121 = vld [vmem:[%s660] sm:$0x7]
        %v1123 = vlaneseq
        %v1124 = vshrl.u32 %v1123, 7
        %v1125 = vsub.s32 0, %v1124
        %v1126 = vrot.slane %v1121, %v1125
        %v1127 = vlaneseq
        %v1128 = vshrl.u32 %v1127, 7
        %v1129 = vsub.s32 1, %v1128
        %v1130 = vrot.slane %v1121, %v1129
        %v1131 = vlaneseq
        %v1132 = vshrl.u32 %v1131, 7
        %v1133 = vsub.s32 2, %v1132
        %v1134 = vrot.slane %v1121, %v1133
        %v1170 = vunpack.c.l.b16 %v1089
        %v1171 = vunpack.c.h.b16 %v1089
        %v1172 = vunpack.c.l.b16 %v1090
        %v1173 = vunpack.c.l.b16 %v1091
        %v1174 = vunpack.c.h.b16 %v1091
        %v1175 = vunpack.c.l.b16 %v1092
        %v1176 = vunpack.c.l.b16 %v1093
        %v1177 = vunpack.c.h.b16 %v1093
        %v1178 = vunpack.c.l.b16 %v1094
        %v1179 = vunpack.c.l.b16 %v1095
        %v1180 = vunpack.c.h.b16 %v1095
        %v1181 = vunpack.c.l.b16 %v1096
        %v1182 = vunpack.c.l.b16 %v1097
        %v1183 = vunpack.c.h.b16 %v1097
        %v1184 = vunpack.c.l.b16 %v1098
        %v1185 = vunpack.c.l.b16 %v1099
        %v1186 = vunpack.c.h.b16 %v1099
        %v1187 = vunpack.c.l.b16 %v1100
        %v1188 = vunpack.c.l.b16 %v1101
        %v1189 = vunpack.c.h.b16 %v1101
        %v1190 = vunpack.c.l.b16 %v1102
        %v1191 = vunpack.c.l.b16 %v1103
        %v1192 = vunpack.c.h.b16 %v1103
        %v1193 = vunpack.c.l.b16 %v1104
        %v1194 = vunpack.c.l.b16 %v1105
        %v1195 = vunpack.c.h.b16 %v1105
        %v1196 = vunpack.c.l.b16 %v1106
        %v1197 = vunpack.c.l.b16 %v1107
        %v1198 = vunpack.c.h.b16 %v1107
        %v1199 = vunpack.c.l.b16 %v1108
        %v1200 = vunpack.c.l.b16 %v1109
        %v1201 = vunpack.c.h.b16 %v1109
        %v1202 = vunpack.c.l.b16 %v1110
        %v1203 = vunpack.c.l.b16 %v1111
        %v1204 = vunpack.c.h.b16 %v1111
        %v1205 = vunpack.c.l.b16 %v1112
        %v1206 = vunpack.c.l.b16 %v1113
        %v1207 = vunpack.c.h.b16 %v1113
        %v1208 = vunpack.c.l.b16 %v1114
        %v1209 = vunpack.c.l.b16 %v1115
        %v1210 = vunpack.c.h.b16 %v1115
        %v1211 = vunpack.c.l.b16 %v1116
        %v1212 = vunpack.c.l.b16 %v1117
        %v1213 = vunpack.c.h.b16 %v1117
        %v1214 = vunpack.c.l.b16 %v1118
        %v1215 = vunpack.c.l.b16 %v1119
        %v1216 = vunpack.c.h.b16 %v1119
        %v1217 = vunpack.c.l.b16 %v1120
        %v1218 = vpack.c.b16 %v1173, %v1170
        %v1219 = vpack.c.b16 %v1174, %v1171
        %v1220 = vpack.c.b16 %v1175, %v1172
        %v1221 = vpack.c.b16 %v1179, %v1176
        %v1222 = vpack.c.b16 %v1180, %v1177
        %v1223 = vpack.c.b16 %v1181, %v1178
        %v1224 = vpack.c.b16 %v1185, %v1182
        %v1225 = vpack.c.b16 %v1186, %v1183
        %v1226 = vpack.c.b16 %v1187, %v1184
        %v1227 = vpack.c.b16 %v1191, %v1188
        %v1228 = vpack.c.b16 %v1192, %v1189
        %v1229 = vpack.c.b16 %v1193, %v1190
        %v1230 = vpack.c.b16 %v1197, %v1194
        %v1231 = vpack.c.b16 %v1198, %v1195
        %v1232 = vpack.c.b16 %v1199, %v1196
        %v1233 = vpack.c.b16 %v1203, %v1200
        %v1234 = vpack.c.b16 %v1204, %v1201
        %v1235 = vpack.c.b16 %v1205, %v1202
        %v1236 = vpack.c.b16 %v1209, %v1206
        %v1237 = vpack.c.b16 %v1210, %v1207
        %v1238 = vpack.c.b16 %v1211, %v1208
        %v1239 = vpack.c.b16 %v1215, %v1212
        %v1240 = vpack.c.b16 %v1216, %v1213
        %v1241 = vpack.c.b16 %v1217, %v1214
        %1266 = vmatprep.subr.bf16.mxu0 %v1219
        %1267 = vmatpush1.bf16.msra.mxu0 %v1218
        %1268 = vmatprep.subr.bf16.mxu0 %v1222
        %1269 = vmatpush1.bf16.msra.mxu0 %v1221
        %1270 = vmatprep.subr.bf16.mxu0 %v1225
        %1271 = vmatpush1.bf16.msra.mxu0 %v1224
        %1272 = vmatprep.subr.bf16.mxu0 %v1228
        %1273 = vmatpush1.bf16.msra.mxu0 %v1227
        %1274 = vmatprep.subr.bf16.mxu0 %v1231
        %1275 = vmatpush1.bf16.msra.mxu0 %v1230
        %1276 = vmatprep.subr.bf16.mxu0 %v1234
        %1277 = vmatpush1.bf16.msra.mxu0 %v1233
        %1278 = vmatprep.subr.bf16.mxu0 %v1237
        %1279 = vmatpush1.bf16.msra.mxu0 %v1236
        %1280 = vmatprep.subr.bf16.mxu0 %v1240
        %1281 = vmatpush1.bf16.msra.mxu0 %v1239
        %1282 = vmatprep.subr.bf16.mxu0 0
        %1283 = vmatpush1.bf16.msra.mxu0 0
        %1284 = vmatprep.subr.bf16.mxu0 0
        %1285 = vmatpush1.bf16.msra.mxu0 0
        %1286 = vmatprep.subr.bf16.mxu0 0
        %1287 = vmatpush1.bf16.msra.mxu0 0
        %1288 = vmatprep.subr.bf16.mxu0 0
        %1289 = vmatpush1.bf16.msra.mxu0 0
        %1290 = vmatprep.subr.bf16.mxu0 0
        %1291 = vmatpush1.bf16.msra.mxu0 0
        %1292 = vmatprep.subr.bf16.mxu0 0
        %1293 = vmatpush1.bf16.msra.mxu0 0
        %1294 = vmatprep.subr.bf16.mxu0 0
        %1295 = vmatpush1.bf16.msra.mxu0 0
        %1296 = vmatprep.subr.bf16.mxu0 0
        %1297 = vmatpush1.bf16.msra.mxu0 0
        %1298 = vmatprep.mubr.bf16.mxu0 0
        %1299 = vmatmul.mubr.bf16.gmra.mrb[0].mxu0 %v1086
        %v1300 = vpop.f32.mrb[0].mxu0
        %v1301 = vadd.f32 %v1126, %v1300
        %v1302 = vpop.f32.mrb[0].mxu0
        %v1303 = vadd.f32 %v1130, %v1302
        %v1304 = vpop.f32.mrb[0].mxu0
        %v1305 = vadd.f32 %v1126, %v1304
        %v1306 = vpop.f32.mrb[0].mxu0
        %v1307 = vadd.f32 %v1130, %v1306
        %1308 = vmatprep.mubr.bf16.mxu0 0
        %1309 = vmatmul.mubr.bf16.gmra.mrb[0].mxu0 %v1087
        %v1310 = vpop.f32.mrb[0].mxu0
        %v1311 = vadd.f32 %v1126, %v1310
        %v1312 = vpop.f32.mrb[0].mxu0
        %v1313 = vadd.f32 %v1130, %v1312
        %v1314 = vpop.f32.mrb[0].mxu0
        %v1315 = vadd.f32 %v1126, %v1314
        %v1316 = vpop.f32.mrb[0].mxu0
        %v1317 = vadd.f32 %v1130, %v1316
        %1318 = vmatprep.mubr.bf16.mxu0 0
        %1319 = vmatmul.mubr.bf16.gmra.mrb[0].mxu0 %v1088
        %v1320 = vpop.f32.mrb[0].mxu0
        %v1321 = vadd.f32 %v1126, %v1320
        %v1322 = vpop.f32.mrb[0].mxu0
        %v1323 = vadd.f32 %v1130, %v1322
        %v1324 = vpop.f32.mrb[0].mxu0
        %v1325 = vadd.f32 %v1126, %v1324
        %v1326 = vpop.f32.mrb[0].mxu0
        %v1327 = vadd.f32 %v1130, %v1326
        %1328 = vdwg.mxu0
        %1329 = vmatprep.subr.bf16.mxu0 0
        %1330 = vmatpush1.bf16.msra.mxu0 %v1220
        %1331 = vmatprep.subr.bf16.mxu0 0
        %1332 = vmatpush1.bf16.msra.mxu0 %v1223
        %1333 = vmatprep.subr.bf16.mxu0 0
        %1334 = vmatpush1.bf16.msra.mxu0 %v1226
        %1335 = vmatprep.subr.bf16.mxu0 0
        %1336 = vmatpush1.bf16.msra.mxu0 %v1229
        %1337 = vmatprep.subr.bf16.mxu0 0
        %1338 = vmatpush1.bf16.msra.mxu0 %v1232
        %1339 = vmatprep.subr.bf16.mxu0 0
        %1340 = vmatpush1.bf16.msra.mxu0 %v1235
        %1341 = vmatprep.subr.bf16.mxu0 0
        %1342 = vmatpush1.bf16.msra.mxu0 %v1238
        %1343 = vmatprep.subr.bf16.mxu0 0
        %1344 = vmatpush1.bf16.msra.mxu0 %v1241
        %1345 = vmatprep.subr.bf16.mxu0 0
        %1346 = vmatpush1.bf16.msra.mxu0 0
        %1347 = vmatprep.subr.bf16.mxu0 0
        %1348 = vmatpush1.bf16.msra.mxu0 0
        %1349 = vmatprep.subr.bf16.mxu0 0
        %1350 = vmatpush1.bf16.msra.mxu0 0
        %1351 = vmatprep.subr.bf16.mxu0 0
        %1352 = vmatpush1.bf16.msra.mxu0 0
        %1353 = vmatprep.subr.bf16.mxu0 0
        %1354 = vmatpush1.bf16.msra.mxu0 0
        %1355 = vmatprep.subr.bf16.mxu0 0
        %1356 = vmatpush1.bf16.msra.mxu0 0
        %1357 = vmatprep.subr.bf16.mxu0 0
        %1358 = vmatpush1.bf16.msra.mxu0 0
        %1359 = vmatprep.subr.bf16.mxu0 0
        %1360 = vmatpush1.bf16.msra.mxu0 0
        %1361 = vmatprep.mubr.bf16.mxu0 0
        %1362 = vmatmul.mubr.bf16.gmra.mrb[0].mxu0 %v1086
        %v1363 = vpop.f32.mrb[0].mxu0
        %v1364 = vadd.f32 %v1134, %v1363
        %v1365 = vpop.f32.mrb[0].mxu0
        %v1366 = vpop.f32.mrb[0].mxu0
        %v1367 = vadd.f32 %v1134, %v1366
        %v1368 = vpop.f32.mrb[0].mxu0
        %1369 = vmatprep.mubr.bf16.mxu0 0
        %1370 = vmatmul.mubr.bf16.gmra.mrb[0].mxu0 %v1087
        %v1371 = vpop.f32.mrb[0].mxu0
        %v1372 = vadd.f32 %v1134, %v1371
        %v1373 = vpop.f32.mrb[0].mxu0
        %v1374 = vpop.f32.mrb[0].mxu0
        %v1375 = vadd.f32 %v1134, %v1374
        %v1376 = vpop.f32.mrb[0].mxu0
        %1377 = vmatprep.mubr.bf16.mxu0 0
        %1378 = vmatmul.mubr.bf16.gmra.mrb[0].mxu0 %v1088
        %v1379 = vpop.f32.mrb[0].mxu0
        %v1380 = vadd.f32 %v1134, %v1379
        %v1381 = vpop.f32.mrb[0].mxu0
        %v1382 = vpop.f32.mrb[0].mxu0
        %v1383 = vadd.f32 %v1134, %v1382
        %v1384 = vpop.f32.mrb[0].mxu0
        %1385 = vdwg.mxu0
        %v1386 = vmul.f32 %v1301, 0.17677669
        %v1387 = vmul.f32 %v1305, 0.17677669
        %v1388 = vmul.f32 %v1311, 0.17677669
        %v1389 = vmul.f32 %v1315, 0.17677669
        %v1390 = vmul.f32 %v1321, 0.17677669
        %v1391 = vmul.f32 %v1325, 0.17677669
        %v1392 = vlaneseq
        %v1393 = vand.u32 %v1392, 127
        %vm1394 = vcmp.lt.s32.totalorder %v1393, 17
        %v1395 = vpack.c.bf16 %v1387, %v1386
        %v1396 = vpack.c.bf16 %v1388, %v1388
        %v1397 = vpack.c.bf16 %v1390, %v1389
        %v1398 = vpack.c.bf16 %v1391, %v1391
        %v1399 = vpack.c.bf16 %v1307, %v1303
        %v1400 = vpack.c.bf16 %v1313, %v1313
        %v1401 = vpack.c.bf16 %v1323, %v1317
        %v1402 = vpack.c.bf16 %v1327, %v1327
        %v1403 = vpack.c.bf16 %v1367, %v1364
        %v1404 = vpack.c.bf16 %v1372, %v1372
        %v1405 = vpack.c.bf16 %v1380, %v1375
        %v1406 = vpack.c.bf16 %v1383, %v1383
        %vm1407 = vcmask 261120
        %v1409 = vsel %vm1407, %v1395, 0
        %v1412 = vsel %vm1407, %v1396, 0
        %v1415 = vsel %vm1407, %v1399, 0
        %v1418 = vsel %vm1407, %v1400, 0
        %1420 = vmatprep.subr.bf16.mxu0 0
        %1421 = vmatpush1.bf16.xpose.msra.mxu0 %v1415
        %1422 = vmatprep.subr.bf16.mxu0 0
        %1423 = vmatpush1.bf16.xpose.msra.mxu0 %v1418
        %1424 = vmatprep.subr.bf16.mxu0 0
        %1425 = vmatpush1.bf16.xpose.msra.mxu0 0
        %1426 = vmatprep.subr.bf16.mxu0 0
        %1427 = vmatpush1.bf16.xpose.msra.mxu0 0
        %1428 = vmatprep.subr.bf16.mxu0 0
        %1429 = vmatpush1.bf16.xpose.msra.mxu0 0
        %1430 = vmatprep.subr.bf16.mxu0 0
        %1431 = vmatpush1.bf16.xpose.msra.mxu0 0
        %1432 = vmatprep.subr.bf16.mxu0 0
        %1433 = vmatpush1.bf16.xpose.msra.mxu0 0
        %1434 = vmatprep.subr.bf16.mxu0 0
        %1435 = vmatpush1.bf16.xpose.msra.mxu0 0
        %1436 = vmatprep.subr.bf16.mxu0 0
        %1437 = vmatpush1.bf16.xpose.msra.mxu0 0
        %1438 = vmatprep.subr.bf16.mxu0 0
        %1439 = vmatpush1.bf16.xpose.msra.mxu0 0
        %1440 = vmatprep.subr.bf16.mxu0 0
        %1441 = vmatpush1.bf16.xpose.msra.mxu0 0
        %1442 = vmatprep.subr.bf16.mxu0 0
        %1443 = vmatpush1.bf16.xpose.msra.mxu0 0
        %1444 = vmatprep.subr.bf16.mxu0 0
        %1445 = vmatpush1.bf16.xpose.msra.mxu0 0
        %1446 = vmatprep.subr.bf16.mxu0 0
        %1447 = vmatpush1.bf16.xpose.msra.mxu0 0
        %1448 = vmatprep.subr.bf16.mxu0 0
        %1449 = vmatpush1.bf16.xpose.msra.mxu0 0
        %1450 = vmatprep.subr.bf16.mxu0 0
        %1451 = vmatpush1.bf16.xpose.msra.mxu0 0
        %1452 = vmatprep.mubr.bf16.mxu0 0
        %1453 = vmatmul.mubr.bf16.gmra.mrb[0].mxu0 %v1409
        %v1454 = vpop.f32.mrb[0].mxu0
        %v1455 = vadd.f32 0.0, %v1454
        %v1456 = vpop.f32.mrb[0].mxu0
        %v1457 = vpop.f32.mrb[0].mxu0
        %v1458 = vadd.f32 0.0, %v1457
        %v1459 = vpop.f32.mrb[0].mxu0
        %1460 = vmatprep.mubr.bf16.mxu0 0
        %1461 = vmatmul.mubr.bf16.gmra.mrb[0].mxu0 %v1412
        %v1462 = vpop.f32.mrb[0].mxu0
        %v1463 = vadd.f32 0.0, %v1462
        %v1464 = vpop.f32.mrb[0].mxu0
        %v1465 = vpop.f32.mrb[0].mxu0
        %v1466 = vpop.f32.mrb[0].mxu0
        %1467 = vdwg.mxu0
        %v1469 = vsel %vm1407, %v1397, 0
        %v1472 = vsel %vm1407, %v1398, 0
        %v1475 = vsel %vm1407, %v1401, 0
        %v1478 = vsel %vm1407, %v1402, 0
        %1480 = vmatprep.subr.bf16.mxu0 0
        %1481 = vmatpush1.bf16.xpose.msra.mxu0 %v1475
        %1482 = vmatprep.subr.bf16.mxu0 0
        %1483 = vmatpush1.bf16.xpose.msra.mxu0 %v1478
        %1484 = vmatprep.subr.bf16.mxu0 0
        %1485 = vmatpush1.bf16.xpose.msra.mxu0 0
        %1486 = vmatprep.subr.bf16.mxu0 0
        %1487 = vmatpush1.bf16.xpose.msra.mxu0 0
        %1488 = vmatprep.subr.bf16.mxu0 0
        %1489 = vmatpush1.bf16.xpose.msra.mxu0 0
        %1490 = vmatprep.subr.bf16.mxu0 0
        %1491 = vmatpush1.bf16.xpose.msra.mxu0 0
        %1492 = vmatprep.subr.bf16.mxu0 0
        %1493 = vmatpush1.bf16.xpose.msra.mxu0 0
        %1494 = vmatprep.subr.bf16.mxu0 0
        %1495 = vmatpush1.bf16.xpose.msra.mxu0 0
        %1496 = vmatprep.subr.bf16.mxu0 0
        %1497 = vmatpush1.bf16.xpose.msra.mxu0 0
        %1498 = vmatprep.subr.bf16.mxu0 0
        %1499 = vmatpush1.bf16.xpose.msra.mxu0 0
        %1500 = vmatprep.subr.bf16.mxu0 0
        %1501 = vmatpush1.bf16.xpose.msra.mxu0 0
        %1502 = vmatprep.subr.bf16.mxu0 0
        %1503 = vmatpush1.bf16.xpose.msra.mxu0 0
        %1504 = vmatprep.subr.bf16.mxu0 0
        %1505 = vmatpush1.bf16.xpose.msra.mxu0 0
        %1506 = vmatprep.subr.bf16.mxu0 0
        %1507 = vmatpush1.bf16.xpose.msra.mxu0 0
        %1508 = vmatprep.subr.bf16.mxu0 0
        %1509 = vmatpush1.bf16.xpose.msra.mxu0 0
        %1510 = vmatprep.subr.bf16.mxu0 0
        %1511 = vmatpush1.bf16.xpose.msra.mxu0 0
        %1512 = vmatprep.mubr.bf16.mxu0 0
        %1513 = vmatmul.mubr.bf16.gmra.mrb[0].mxu0 %v1469
        %v1514 = vpop.f32.mrb[0].mxu0
        %v1515 = vadd.f32 0.0, %v1514
        %v1516 = vpop.f32.mrb[0].mxu0
        %v1517 = vpop.f32.mrb[0].mxu0
        %v1518 = vadd.f32 0.0, %v1517
        %v1519 = vpop.f32.mrb[0].mxu0
        %1520 = vmatprep.mubr.bf16.mxu0 0
        %1521 = vmatmul.mubr.bf16.gmra.mrb[0].mxu0 %v1472
        %v1522 = vpop.f32.mrb[0].mxu0
        %v1523 = vadd.f32 0.0, %v1522
        %v1524 = vpop.f32.mrb[0].mxu0
        %v1525 = vpop.f32.mrb[0].mxu0
        %v1526 = vpop.f32.mrb[0].mxu0
        %1527 = vdwg.mxu0
        %v1528 = vsel %vm1394, %v1455, -1e+30
        %v1529 = vsel %vm1394, %v1458, -1e+30
        %v1530 = vsel %vm1394, %v1463, -1e+30
        %v1531 = vsel %vm1394, %v1515, -1e+30
        %v1532 = vsel %vm1394, %v1518, -1e+30
        %v1533 = vsel %vm1394, %v1523, -1e+30
        %vm1534 = vcmask 195584
        %v1535 = vsel %vm1534, %v1528, -inf
        %1536 = vmax.xlane.f32.xlu0 %v1535
        %v1537 = vpop.xlane.xlu0 %1536
        %v1538 = vsel %vm1534, %v1529, -inf
        %1539 = vmax.xlane.f32.xlu0 %v1538
        %v1540 = vpop.xlane.xlu0 %1539
        %v1541 = vsel %vm1534, %v1530, -inf
        %1542 = vmax.xlane.f32.xlu0 %v1541
        %v1543 = vpop.xlane.xlu0 %1542
        %v1544 = vsel %vm1534, %v1531, -inf
        %1545 = vmax.xlane.f32.xlu0 %v1544
        %v1546 = vpop.xlane.xlu0 %1545
        %v1547 = vsel %vm1534, %v1532, -inf
        %1548 = vmax.xlane.f32.xlu0 %v1547
        %v1549 = vpop.xlane.xlu0 %1548
        %v1550 = vsel %vm1534, %v1533, -inf
        %1551 = vmax.xlane.f32.xlu0 %v1550
        %v1552 = vpop.xlane.xlu0 %1551
        %v1553 = vsub.f32 %v1528, %v1537
        %v1554 = vsub.f32 %v1529, %v1540
        %v1555 = vsub.f32 %v1530, %v1543
        %v1556 = vsub.f32 %v1531, %v1546
        %v1557 = vsub.f32 %v1532, %v1549
        %v1558 = vsub.f32 %v1533, %v1552
        %v1559 = vmul.f32 %v1553, 1.442695
        %v1560 = vpow.pop %v1559
        %v1561 = vmul.f32 %v1554, 1.442695
        %v1562 = vpow.pop %v1561
        %v1563 = vmul.f32 %v1555, 1.442695
        %v1564 = vpow.pop %v1563
        %v1565 = vmul.f32 %v1556, 1.442695
        %v1566 = vpow.pop %v1565
        %v1567 = vmul.f32 %v1557, 1.442695
        %v1568 = vpow.pop %v1567
        %v1569 = vmul.f32 %v1558, 1.442695
        %v1570 = vpow.pop %v1569
        %v1571 = vsel %vm1534, %v1560, 0.0
        %1572 = vadd.xlane.f32.xlu0 %v1571
        %v1573 = vpop.xlane.xlu0 %1572
        %v1574 = vsel %vm1534, %v1562, 0.0
        %1575 = vadd.xlane.f32.xlu0 %v1574
        %v1576 = vpop.xlane.xlu0 %1575
        %v1577 = vsel %vm1534, %v1564, 0.0
        %1578 = vadd.xlane.f32.xlu0 %v1577
        %v1579 = vpop.xlane.xlu0 %1578
        %v1580 = vsel %vm1534, %v1566, 0.0
        %1581 = vadd.xlane.f32.xlu0 %v1580
        %v1582 = vpop.xlane.xlu0 %1581
        %v1583 = vsel %vm1534, %v1568, 0.0
        %1584 = vadd.xlane.f32.xlu0 %v1583
        %v1585 = vpop.xlane.xlu0 %1584
        %v1586 = vsel %vm1534, %v1570, 0.0
        %1587 = vadd.xlane.f32.xlu0 %v1586
        %v1588 = vpop.xlane.xlu0 %1587
        %v1589 = vrcp.pop %v1573
        %v1590 = vrcp.pop %v1576
        %v1591 = vrcp.pop %v1579
        %v1592 = vrcp.pop %v1582
        %v1593 = vrcp.pop %v1585
        %v1594 = vrcp.pop %v1588
        %v1595 = vmul.f32 %v1560, %v1589
        %v1596 = vmul.f32 %v1562, %v1590
        %v1597 = vmul.f32 %v1564, %v1591
        %v1598 = vmul.f32 %v1566, %v1592
        %v1599 = vmul.f32 %v1568, %v1593
        %v1600 = vmul.f32 %v1570, %v1594
        %v1601 = vpack.c.bf16 %v1596, %v1595
        %v1602 = vpack.c.bf16 %v1597, %v1597
        %v1603 = vpack.c.bf16 %v1599, %v1598
        %v1604 = vpack.c.bf16 %v1600, %v1600
        %v1606 = vsel %vm1534, %v1601, 0
        %v1609 = vsel %vm1534, %v1602, 0
        %vm1611 = vcmask 1043456
        %v1613 = vsel %vm1611, %v1404, 0
        %1615 = vmatprep.subr.bf16.mxu0 0
        %1616 = vmatpush1.bf16.msra.mxu0 %v1403
        %1617 = vmatprep.subr.bf16.mxu0 0
        %1618 = vmatpush1.bf16.msra.mxu0 %v1613
        %1619 = vmatprep.subr.bf16.mxu0 0
        %1620 = vmatpush1.bf16.msra.mxu0 0
        %1621 = vmatprep.subr.bf16.mxu0 0
        %1622 = vmatpush1.bf16.msra.mxu0 0
        %1623 = vmatprep.subr.bf16.mxu0 0
        %1624 = vmatpush1.bf16.msra.mxu0 0
        %1625 = vmatprep.subr.bf16.mxu0 0
        %1626 = vmatpush1.bf16.msra.mxu0 0
        %1627 = vmatprep.subr.bf16.mxu0 0
        %1628 = vmatpush1.bf16.msra.mxu0 0
        %1629 = vmatprep.subr.bf16.mxu0 0
        %1630 = vmatpush1.bf16.msra.mxu0 0
        %1631 = vmatprep.subr.bf16.mxu0 0
        %1632 = vmatpush1.bf16.msra.mxu0 0
        %1633 = vmatprep.subr.bf16.mxu0 0
        %1634 = vmatpush1.bf16.msra.mxu0 0
        %1635 = vmatprep.subr.bf16.mxu0 0
        %1636 = vmatpush1.bf16.msra.mxu0 0
        %1637 = vmatprep.subr.bf16.mxu0 0
        %1638 = vmatpush1.bf16.msra.mxu0 0
        %1639 = vmatprep.subr.bf16.mxu0 0
        %1640 = vmatpush1.bf16.msra.mxu0 0
        %1641 = vmatprep.subr.bf16.mxu0 0
        %1642 = vmatpush1.bf16.msra.mxu0 0
        %1643 = vmatprep.subr.bf16.mxu0 0
        %1644 = vmatpush1.bf16.msra.mxu0 0
        %1645 = vmatprep.subr.bf16.mxu0 0
        %1646 = vmatpush1.bf16.msra.mxu0 0
        %1647 = vmatprep.mubr.bf16.mxu0 0
        %1648 = vmatmul.mubr.bf16.gmra.mrb[0].mxu0 %v1606
        %v1649 = vpop.f32.mrb[0].mxu0
        %v1650 = vadd.f32 0.0, %v1649
        %v1651 = vpop.f32.mrb[0].mxu0
        %v1652 = vpop.f32.mrb[0].mxu0
        %v1653 = vadd.f32 0.0, %v1652
        %v1654 = vpop.f32.mrb[0].mxu0
        %1655 = vmatprep.mubr.bf16.mxu0 0
        %1656 = vmatmul.mubr.bf16.gmra.mrb[0].mxu0 %v1609
        %v1657 = vpop.f32.mrb[0].mxu0
        %v1658 = vadd.f32 0.0, %v1657
        %v1659 = vpop.f32.mrb[0].mxu0
        %v1660 = vpop.f32.mrb[0].mxu0
        %v1661 = vpop.f32.mrb[0].mxu0
        %1662 = vdwg.mxu0
        %v1664 = vsel %vm1534, %v1603, 0
        %v1667 = vsel %vm1534, %v1604, 0
        %v1670 = vsel %vm1611, %v1406, 0
        %1672 = vmatprep.subr.bf16.mxu0 0
        %1673 = vmatpush1.bf16.msra.mxu0 %v1405
        %1674 = vmatprep.subr.bf16.mxu0 0
        %1675 = vmatpush1.bf16.msra.mxu0 %v1670
        %1676 = vmatprep.subr.bf16.mxu0 0
        %1677 = vmatpush1.bf16.msra.mxu0 0
        %1678 = vmatprep.subr.bf16.mxu0 0
        %1679 = vmatpush1.bf16.msra.mxu0 0
        %1680 = vmatprep.subr.bf16.mxu0 0
        %1681 = vmatpush1.bf16.msra.mxu0 0
        %1682 = vmatprep.subr.bf16.mxu0 0
        %1683 = vmatpush1.bf16.msra.mxu0 0
        %1684 = vmatprep.subr.bf16.mxu0 0
        %1685 = vmatpush1.bf16.msra.mxu0 0
        %1686 = vmatprep.subr.bf16.mxu0 0
        %1687 = vmatpush1.bf16.msra.mxu0 0
        %1688 = vmatprep.subr.bf16.mxu0 0
        %1689 = vmatpush1.bf16.msra.mxu0 0
        %1690 = vmatprep.subr.bf16.mxu0 0
        %1691 = vmatpush1.bf16.msra.mxu0 0
        %1692 = vmatprep.subr.bf16.mxu0 0
        %1693 = vmatpush1.bf16.msra.mxu0 0
        %1694 = vmatprep.subr.bf16.mxu0 0
        %1695 = vmatpush1.bf16.msra.mxu0 0
        %1696 = vmatprep.subr.bf16.mxu0 0
        %1697 = vmatpush1.bf16.msra.mxu0 0
        %1698 = vmatprep.subr.bf16.mxu0 0
        %1699 = vmatpush1.bf16.msra.mxu0 0
        %1700 = vmatprep.subr.bf16.mxu0 0
        %1701 = vmatpush1.bf16.msra.mxu0 0
        %1702 = vmatprep.subr.bf16.mxu0 0
        %1703 = vmatpush1.bf16.msra.mxu0 0
        %1704 = vmatprep.mubr.bf16.mxu0 0
        %1705 = vmatmul.mubr.bf16.gmra.mrb[0].mxu0 %v1664
        %v1706 = vpop.f32.mrb[0].mxu0
        %v1707 = vadd.f32 0.0, %v1706
        %v1708 = vpop.f32.mrb[0].mxu0
        %v1709 = vpop.f32.mrb[0].mxu0
        %v1710 = vadd.f32 0.0, %v1709
        %v1711 = vpop.f32.mrb[0].mxu0
        %1712 = vmatprep.mubr.bf16.mxu0 0
        %1713 = vmatmul.mubr.bf16.gmra.mrb[0].mxu0 %v1667
        %v1714 = vpop.f32.mrb[0].mxu0
        %v1715 = vadd.f32 0.0, %v1714
        %v1716 = vpop.f32.mrb[0].mxu0
        %v1717 = vpop.f32.mrb[0].mxu0
        %v1718 = vpop.f32.mrb[0].mxu0
        %1719 = vdwg.mxu0
        %1722 = vrot.lane.b32.xlu0 %v1395, 96
        %v1723 = vpop.permute.xlu0 %1722
        %1724 = vrot.lane.b32.xlu0 %v1396, 96
        %v1725 = vpop.permute.xlu0 %1724
        %1728 = vrot.lane.b32.xlu0 %v1399, 96
        %v1729 = vpop.permute.xlu0 %1728
        %1730 = vrot.lane.b32.xlu0 %v1400, 96
        %v1731 = vpop.permute.xlu0 %1730
        %v1733 = vsel %vm1407, %v1723, 0
        %v1736 = vsel %vm1407, %v1725, 0
        %v1739 = vsel %vm1407, %v1729, 0
        %v1742 = vsel %vm1407, %v1731, 0
        %1744 = vmatprep.subr.bf16.mxu0 0
        %1745 = vmatpush1.bf16.xpose.msra.mxu0 %v1739
        %1746 = vmatprep.subr.bf16.mxu0 0
        %1747 = vmatpush1.bf16.xpose.msra.mxu0 %v1742
        %1748 = vmatprep.subr.bf16.mxu0 0
        %1749 = vmatpush1.bf16.xpose.msra.mxu0 0
        %1750 = vmatprep.subr.bf16.mxu0 0
        %1751 = vmatpush1.bf16.xpose.msra.mxu0 0
        %1752 = vmatprep.subr.bf16.mxu0 0
        %1753 = vmatpush1.bf16.xpose.msra.mxu0 0
        %1754 = vmatprep.subr.bf16.mxu0 0
        %1755 = vmatpush1.bf16.xpose.msra.mxu0 0
        %1756 = vmatprep.subr.bf16.mxu0 0
        %1757 = vmatpush1.bf16.xpose.msra.mxu0 0
        %1758 = vmatprep.subr.bf16.mxu0 0
        %1759 = vmatpush1.bf16.xpose.msra.mxu0 0
        %1760 = vmatprep.subr.bf16.mxu0 0
        %1761 = vmatpush1.bf16.xpose.msra.mxu0 0
        %1762 = vmatprep.subr.bf16.mxu0 0
        %1763 = vmatpush1.bf16.xpose.msra.mxu0 0
        %1764 = vmatprep.subr.bf16.mxu0 0
        %1765 = vmatpush1.bf16.xpose.msra.mxu0 0
        %1766 = vmatprep.subr.bf16.mxu0 0
        %1767 = vmatpush1.bf16.xpose.msra.mxu0 0
        %1768 = vmatprep.subr.bf16.mxu0 0
        %1769 = vmatpush1.bf16.xpose.msra.mxu0 0
        %1770 = vmatprep.subr.bf16.mxu0 0
        %1771 = vmatpush1.bf16.xpose.msra.mxu0 0
        %1772 = vmatprep.subr.bf16.mxu0 0
        %1773 = vmatpush1.bf16.xpose.msra.mxu0 0
        %1774 = vmatprep.subr.bf16.mxu0 0
        %1775 = vmatpush1.bf16.xpose.msra.mxu0 0
        %1776 = vmatprep.mubr.bf16.mxu0 0
        %1777 = vmatmul.mubr.bf16.gmra.mrb[0].mxu0 %v1733
        %v1778 = vpop.f32.mrb[0].mxu0
        %v1779 = vadd.f32 0.0, %v1778
        %v1780 = vpop.f32.mrb[0].mxu0
        %v1781 = vpop.f32.mrb[0].mxu0
        %v1782 = vadd.f32 0.0, %v1781
        %v1783 = vpop.f32.mrb[0].mxu0
        %1784 = vmatprep.mubr.bf16.mxu0 0
        %1785 = vmatmul.mubr.bf16.gmra.mrb[0].mxu0 %v1736
        %v1786 = vpop.f32.mrb[0].mxu0
        %v1787 = vadd.f32 0.0, %v1786
        %v1788 = vpop.f32.mrb[0].mxu0
        %v1789 = vpop.f32.mrb[0].mxu0
        %v1790 = vpop.f32.mrb[0].mxu0
        %1791 = vdwg.mxu0
        %1794 = vrot.lane.b32.xlu0 %v1397, 96
        %v1795 = vpop.permute.xlu0 %1794
        %1796 = vrot.lane.b32.xlu0 %v1398, 96
        %v1797 = vpop.permute.xlu0 %1796
        %1800 = vrot.lane.b32.xlu0 %v1401, 96
        %v1801 = vpop.permute.xlu0 %1800
        %1802 = vrot.lane.b32.xlu0 %v1402, 96
        %v1803 = vpop.permute.xlu0 %1802
        %v1805 = vsel %vm1407, %v1795, 0
        %v1808 = vsel %vm1407, %v1797, 0
        %v1811 = vsel %vm1407, %v1801, 0
        %v1814 = vsel %vm1407, %v1803, 0
        %1816 = vmatprep.subr.bf16.mxu0 0
        %1817 = vmatpush1.bf16.xpose.msra.mxu0 %v1811
        %1818 = vmatprep.subr.bf16.mxu0 0
        %1819 = vmatpush1.bf16.xpose.msra.mxu0 %v1814
        %1820 = vmatprep.subr.bf16.mxu0 0
        %1821 = vmatpush1.bf16.xpose.msra.mxu0 0
        %1822 = vmatprep.subr.bf16.mxu0 0
        %1823 = vmatpush1.bf16.xpose.msra.mxu0 0
        %1824 = vmatprep.subr.bf16.mxu0 0
        %1825 = vmatpush1.bf16.xpose.msra.mxu0 0
        %1826 = vmatprep.subr.bf16.mxu0 0
        %1827 = vmatpush1.bf16.xpose.msra.mxu0 0
        %1828 = vmatprep.subr.bf16.mxu0 0
        %1829 = vmatpush1.bf16.xpose.msra.mxu0 0
        %1830 = vmatprep.subr.bf16.mxu0 0
        %1831 = vmatpush1.bf16.xpose.msra.mxu0 0
        %1832 = vmatprep.subr.bf16.mxu0 0
        %1833 = vmatpush1.bf16.xpose.msra.mxu0 0
        %1834 = vmatprep.subr.bf16.mxu0 0
        %1835 = vmatpush1.bf16.xpose.msra.mxu0 0
        %1836 = vmatprep.subr.bf16.mxu0 0
        %1837 = vmatpush1.bf16.xpose.msra.mxu0 0
        %1838 = vmatprep.subr.bf16.mxu0 0
        %1839 = vmatpush1.bf16.xpose.msra.mxu0 0
        %1840 = vmatprep.subr.bf16.mxu0 0
        %1841 = vmatpush1.bf16.xpose.msra.mxu0 0
        %1842 = vmatprep.subr.bf16.mxu0 0
        %1843 = vmatpush1.bf16.xpose.msra.mxu0 0
        %1844 = vmatprep.subr.bf16.mxu0 0
        %1845 = vmatpush1.bf16.xpose.msra.mxu0 0
        %1846 = vmatprep.subr.bf16.mxu0 0
        %1847 = vmatpush1.bf16.xpose.msra.mxu0 0
        %1848 = vmatprep.mubr.bf16.mxu0 0
        %1849 = vmatmul.mubr.bf16.gmra.mrb[0].mxu0 %v1805
        %v1850 = vpop.f32.mrb[0].mxu0
        %v1851 = vadd.f32 0.0, %v1850
        %v1852 = vpop.f32.mrb[0].mxu0
        %v1853 = vpop.f32.mrb[0].mxu0
        %v1854 = vadd.f32 0.0, %v1853
        %v1855 = vpop.f32.mrb[0].mxu0
        %1856 = vmatprep.mubr.bf16.mxu0 0
        %1857 = vmatmul.mubr.bf16.gmra.mrb[0].mxu0 %v1808
        %v1858 = vpop.f32.mrb[0].mxu0
        %v1859 = vadd.f32 0.0, %v1858
        %v1860 = vpop.f32.mrb[0].mxu0
        %v1861 = vpop.f32.mrb[0].mxu0
        %v1862 = vpop.f32.mrb[0].mxu0
        %1863 = vdwg.mxu0
        %v1864 = vsel %vm1394, %v1779, -1e+30
        %v1865 = vsel %vm1394, %v1782, -1e+30
        %v1866 = vsel %vm1394, %v1787, -1e+30
        %v1867 = vsel %vm1394, %v1851, -1e+30
        %v1868 = vsel %vm1394, %v1854, -1e+30
        %v1869 = vsel %vm1394, %v1859, -1e+30
        %v1870 = vsel %vm1534, %v1864, -inf
        %1871 = vmax.xlane.f32.xlu0 %v1870
        %v1872 = vpop.xlane.xlu0 %1871
        %v1873 = vsel %vm1534, %v1865, -inf
        %1874 = vmax.xlane.f32.xlu0 %v1873
        %v1875 = vpop.xlane.xlu0 %1874
        %v1876 = vsel %vm1534, %v1866, -inf
        %1877 = vmax.xlane.f32.xlu0 %v1876
        %v1878 = vpop.xlane.xlu0 %1877
        %v1879 = vsel %vm1534, %v1867, -inf
        %1880 = vmax.xlane.f32.xlu0 %v1879
        %v1881 = vpop.xlane.xlu0 %1880
        %v1882 = vsel %vm1534, %v1868, -inf
        %1883 = vmax.xlane.f32.xlu0 %v1882
        %v1884 = vpop.xlane.xlu0 %1883
        %v1885 = vsel %vm1534, %v1869, -inf
        %1886 = vmax.xlane.f32.xlu0 %v1885
        %v1887 = vpop.xlane.xlu0 %1886
        %v1888 = vsub.f32 %v1864, %v1872
        %v1889 = vsub.f32 %v1865, %v1875
        %v1890 = vsub.f32 %v1866, %v1878
        %v1891 = vsub.f32 %v1867, %v1881
        %v1892 = vsub.f32 %v1868, %v1884
        %v1893 = vsub.f32 %v1869, %v1887
        %v1894 = vmul.f32 %v1888, 1.442695
        %v1895 = vpow.pop %v1894
        %v1896 = vmul.f32 %v1889, 1.442695
        %v1897 = vpow.pop %v1896
        %v1898 = vmul.f32 %v1890, 1.442695
        %v1899 = vpow.pop %v1898
        %v1900 = vmul.f32 %v1891, 1.442695
        %v1901 = vpow.pop %v1900
        %v1902 = vmul.f32 %v1892, 1.442695
        %v1903 = vpow.pop %v1902
        %v1904 = vmul.f32 %v1893, 1.442695
        %v1905 = vpow.pop %v1904
        %v1906 = vsel %vm1534, %v1895, 0.0
        %1907 = vadd.xlane.f32.xlu0 %v1906
        %v1908 = vpop.xlane.xlu0 %1907
        %v1909 = vsel %vm1534, %v1897, 0.0
        %1910 = vadd.xlane.f32.xlu0 %v1909
        %v1911 = vpop.xlane.xlu0 %1910
        %v1912 = vsel %vm1534, %v1899, 0.0
        %1913 = vadd.xlane.f32.xlu0 %v1912
        %v1914 = vpop.xlane.xlu0 %1913
        %v1915 = vsel %vm1534, %v1901, 0.0
        %1916 = vadd.xlane.f32.xlu0 %v1915
        %v1917 = vpop.xlane.xlu0 %1916
        %v1918 = vsel %vm1534, %v1903, 0.0
        %1919 = vadd.xlane.f32.xlu0 %v1918
        %v1920 = vpop.xlane.xlu0 %1919
        %v1921 = vsel %vm1534, %v1905, 0.0
        %1922 = vadd.xlane.f32.xlu0 %v1921
        %v1923 = vpop.xlane.xlu0 %1922
        %v1924 = vrcp.pop %v1908
        %v1925 = vrcp.pop %v1911
        %v1926 = vrcp.pop %v1914
        %v1927 = vrcp.pop %v1917
        %v1928 = vrcp.pop %v1920
        %v1929 = vrcp.pop %v1923
        %v1930 = vmul.f32 %v1895, %v1924
        %v1931 = vmul.f32 %v1897, %v1925
        %v1932 = vmul.f32 %v1899, %v1926
        %v1933 = vmul.f32 %v1901, %v1927
        %v1934 = vmul.f32 %v1903, %v1928
        %v1935 = vmul.f32 %v1905, %v1929
        %v1936 = vpack.c.bf16 %v1931, %v1930
        %v1937 = vpack.c.bf16 %v1932, %v1932
        %v1938 = vpack.c.bf16 %v1934, %v1933
        %v1939 = vpack.c.bf16 %v1935, %v1935
        %1942 = vrot.lane.b32.xlu0 %v1403, 96
        %v1943 = vpop.permute.xlu0 %1942
        %1944 = vrot.lane.b32.xlu0 %v1404, 96
        %v1945 = vpop.permute.xlu0 %1944
        %v1948 = vsel %vm1534, %v1936, 0
        %v1951 = vsel %vm1534, %v1937, 0
        %v1954 = vsel %vm1611, %v1945, 0
        %1956 = vmatprep.subr.bf16.mxu0 0
        %1957 = vmatpush1.bf16.msra.mxu0 %v1943
        %1958 = vmatprep.subr.bf16.mxu0 0
        %1959 = vmatpush1.bf16.msra.mxu0 %v1954
        %1960 = vmatprep.subr.bf16.mxu0 0
        %1961 = vmatpush1.bf16.msra.mxu0 0
        %1962 = vmatprep.subr.bf16.mxu0 0
        %1963 = vmatpush1.bf16.msra.mxu0 0
        %1964 = vmatprep.subr.bf16.mxu0 0
        %1965 = vmatpush1.bf16.msra.mxu0 0
        %1966 = vmatprep.subr.bf16.mxu0 0
        %1967 = vmatpush1.bf16.msra.mxu0 0
        %1968 = vmatprep.subr.bf16.mxu0 0
        %1969 = vmatpush1.bf16.msra.mxu0 0
        %1970 = vmatprep.subr.bf16.mxu0 0
        %1971 = vmatpush1.bf16.msra.mxu0 0
        %1972 = vmatprep.subr.bf16.mxu0 0
        %1973 = vmatpush1.bf16.msra.mxu0 0
        %1974 = vmatprep.subr.bf16.mxu0 0
        %1975 = vmatpush1.bf16.msra.mxu0 0
        %1976 = vmatprep.subr.bf16.mxu0 0
        %1977 = vmatpush1.bf16.msra.mxu0 0
        %1978 = vmatprep.subr.bf16.mxu0 0
        %1979 = vmatpush1.bf16.msra.mxu0 0
        %1980 = vmatprep.subr.bf16.mxu0 0
        %1981 = vmatpush1.bf16.msra.mxu0 0
        %1982 = vmatprep.subr.bf16.mxu0 0
        %1983 = vmatpush1.bf16.msra.mxu0 0
        %1984 = vmatprep.subr.bf16.mxu0 0
        %1985 = vmatpush1.bf16.msra.mxu0 0
        %1986 = vmatprep.subr.bf16.mxu0 0
        %1987 = vmatpush1.bf16.msra.mxu0 0
        %1988 = vmatprep.mubr.bf16.mxu0 0
        %1989 = vmatmul.mubr.bf16.gmra.mrb[0].mxu0 %v1948
        %v1990 = vpop.f32.mrb[0].mxu0
        %v1991 = vadd.f32 0.0, %v1990
        %v1992 = vpop.f32.mrb[0].mxu0
        %v1993 = vpop.f32.mrb[0].mxu0
        %v1994 = vadd.f32 0.0, %v1993
        %v1995 = vpop.f32.mrb[0].mxu0
        %1996 = vmatprep.mubr.bf16.mxu0 0
        %1997 = vmatmul.mubr.bf16.gmra.mrb[0].mxu0 %v1951
        %v1998 = vpop.f32.mrb[0].mxu0
        %v1999 = vadd.f32 0.0, %v1998
        %v2000 = vpop.f32.mrb[0].mxu0
        %v2001 = vpop.f32.mrb[0].mxu0
        %v2002 = vpop.f32.mrb[0].mxu0
        %2003 = vdwg.mxu0
        %2006 = vrot.lane.b32.xlu0 %v1405, 96
        %v2007 = vpop.permute.xlu0 %2006
        %2008 = vrot.lane.b32.xlu0 %v1406, 96
        %v2009 = vpop.permute.xlu0 %2008
        %v2012 = vsel %vm1534, %v1938, 0
        %v2015 = vsel %vm1534, %v1939, 0
        %v2018 = vsel %vm1611, %v2009, 0
        %2020 = vmatprep.subr.bf16.mxu0 0
        %2021 = vmatpush1.bf16.msra.mxu0 %v2007
        %2022 = vmatprep.subr.bf16.mxu0 0
        %2023 = vmatpush1.bf16.msra.mxu0 %v2018
        %2024 = vmatprep.subr.bf16.mxu0 0
        %2025 = vmatpush1.bf16.msra.mxu0 0
        %2026 = vmatprep.subr.bf16.mxu0 0
        %2027 = vmatpush1.bf16.msra.mxu0 0
        %2028 = vmatprep.subr.bf16.mxu0 0
        %2029 = vmatpush1.bf16.msra.mxu0 0
        %2030 = vmatprep.subr.bf16.mxu0 0
        %2031 = vmatpush1.bf16.msra.mxu0 0
        %2032 = vmatprep.subr.bf16.mxu0 0
        %2033 = vmatpush1.bf16.msra.mxu0 0
        %2034 = vmatprep.subr.bf16.mxu0 0
        %2035 = vmatpush1.bf16.msra.mxu0 0
        %2036 = vmatprep.subr.bf16.mxu0 0
        %2037 = vmatpush1.bf16.msra.mxu0 0
        %2038 = vmatprep.subr.bf16.mxu0 0
        %2039 = vmatpush1.bf16.msra.mxu0 0
        %2040 = vmatprep.subr.bf16.mxu0 0
        %2041 = vmatpush1.bf16.msra.mxu0 0
        %2042 = vmatprep.subr.bf16.mxu0 0
        %2043 = vmatpush1.bf16.msra.mxu0 0
        %2044 = vmatprep.subr.bf16.mxu0 0
        %2045 = vmatpush1.bf16.msra.mxu0 0
        %2046 = vmatprep.subr.bf16.mxu0 0
        %2047 = vmatpush1.bf16.msra.mxu0 0
        %2048 = vmatprep.subr.bf16.mxu0 0
        %2049 = vmatpush1.bf16.msra.mxu0 0
        %2050 = vmatprep.subr.bf16.mxu0 0
        %2051 = vmatpush1.bf16.msra.mxu0 0
        %2052 = vmatprep.mubr.bf16.mxu0 0
        %2053 = vmatmul.mubr.bf16.gmra.mrb[0].mxu0 %v2012
        %v2054 = vpop.f32.mrb[0].mxu0
        %v2055 = vadd.f32 0.0, %v2054
        %v2056 = vpop.f32.mrb[0].mxu0
        %v2057 = vpop.f32.mrb[0].mxu0
        %v2058 = vadd.f32 0.0, %v2057
        %v2059 = vpop.f32.mrb[0].mxu0
        %2060 = vmatprep.mubr.bf16.mxu0 0
        %2061 = vmatmul.mubr.bf16.gmra.mrb[0].mxu0 %v2015
        %v2062 = vpop.f32.mrb[0].mxu0
        %v2063 = vadd.f32 0.0, %v2062
        %v2064 = vpop.f32.mrb[0].mxu0
        %v2065 = vpop.f32.mrb[0].mxu0
        %v2066 = vpop.f32.mrb[0].mxu0
        %2067 = vdwg.mxu0
        %2068 = vrot.lane.b32.xlu0 %v1395, 64
        %v2069 = vpop.permute.xlu0 %2068
        %2070 = vrot.lane.b32.xlu0 %v1396, 64
        %v2071 = vpop.permute.xlu0 %2070
        %2072 = vrot.lane.b32.xlu0 %v1399, 64
        %v2073 = vpop.permute.xlu0 %2072
        %2074 = vrot.lane.b32.xlu0 %v1400, 64
        %v2075 = vpop.permute.xlu0 %2074
        %v2077 = vsel %vm1407, %v2069, 0
        %v2080 = vsel %vm1407, %v2071, 0
        %v2083 = vsel %vm1407, %v2073, 0
        %v2086 = vsel %vm1407, %v2075, 0
        %2088 = vmatprep.subr.bf16.mxu0 0
        %2089 = vmatpush1.bf16.xpose.msra.mxu0 %v2083
        %2090 = vmatprep.subr.bf16.mxu0 0
        %2091 = vmatpush1.bf16.xpose.msra.mxu0 %v2086
        %2092 = vmatprep.subr.bf16.mxu0 0
        %2093 = vmatpush1.bf16.xpose.msra.mxu0 0
        %2094 = vmatprep.subr.bf16.mxu0 0
        %2095 = vmatpush1.bf16.xpose.msra.mxu0 0
        %2096 = vmatprep.subr.bf16.mxu0 0
        %2097 = vmatpush1.bf16.xpose.msra.mxu0 0
        %2098 = vmatprep.subr.bf16.mxu0 0
        %2099 = vmatpush1.bf16.xpose.msra.mxu0 0
        %2100 = vmatprep.subr.bf16.mxu0 0
        %2101 = vmatpush1.bf16.xpose.msra.mxu0 0
        %2102 = vmatprep.subr.bf16.mxu0 0
        %2103 = vmatpush1.bf16.xpose.msra.mxu0 0
        %2104 = vmatprep.subr.bf16.mxu0 0
        %2105 = vmatpush1.bf16.xpose.msra.mxu0 0
        %2106 = vmatprep.subr.bf16.mxu0 0
        %2107 = vmatpush1.bf16.xpose.msra.mxu0 0
        %2108 = vmatprep.subr.bf16.mxu0 0
        %2109 = vmatpush1.bf16.xpose.msra.mxu0 0
        %2110 = vmatprep.subr.bf16.mxu0 0
        %2111 = vmatpush1.bf16.xpose.msra.mxu0 0
        %2112 = vmatprep.subr.bf16.mxu0 0
        %2113 = vmatpush1.bf16.xpose.msra.mxu0 0
        %2114 = vmatprep.subr.bf16.mxu0 0
        %2115 = vmatpush1.bf16.xpose.msra.mxu0 0
        %2116 = vmatprep.subr.bf16.mxu0 0
        %2117 = vmatpush1.bf16.xpose.msra.mxu0 0
        %2118 = vmatprep.subr.bf16.mxu0 0
        %2119 = vmatpush1.bf16.xpose.msra.mxu0 0
        %2120 = vmatprep.mubr.bf16.mxu0 0
        %2121 = vmatmul.mubr.bf16.gmra.mrb[0].mxu0 %v2077
        %v2122 = vpop.f32.mrb[0].mxu0
        %v2123 = vadd.f32 0.0, %v2122
        %v2124 = vpop.f32.mrb[0].mxu0
        %v2125 = vpop.f32.mrb[0].mxu0
        %v2126 = vadd.f32 0.0, %v2125
        %v2127 = vpop.f32.mrb[0].mxu0
        %2128 = vmatprep.mubr.bf16.mxu0 0
        %2129 = vmatmul.mubr.bf16.gmra.mrb[0].mxu0 %v2080
        %v2130 = vpop.f32.mrb[0].mxu0
        %v2131 = vadd.f32 0.0, %v2130
        %v2132 = vpop.f32.mrb[0].mxu0
        %v2133 = vpop.f32.mrb[0].mxu0
        %v2134 = vpop.f32.mrb[0].mxu0
        %2135 = vdwg.mxu0
        %2136 = vrot.lane.b32.xlu0 %v1397, 64
        %v2137 = vpop.permute.xlu0 %2136
        %2138 = vrot.lane.b32.xlu0 %v1398, 64
        %v2139 = vpop.permute.xlu0 %2138
        %2140 = vrot.lane.b32.xlu0 %v1401, 64
        %v2141 = vpop.permute.xlu0 %2140
        %2142 = vrot.lane.b32.xlu0 %v1402, 64
        %v2143 = vpop.permute.xlu0 %2142
        %v2145 = vsel %vm1407, %v2137, 0
        %v2148 = vsel %vm1407, %v2139, 0
        %v2151 = vsel %vm1407, %v2141, 0
        %v2154 = vsel %vm1407, %v2143, 0
        %2156 = vmatprep.subr.bf16.mxu0 0
        %2157 = vmatpush1.bf16.xpose.msra.mxu0 %v2151
        %2158 = vmatprep.subr.bf16.mxu0 0
        %2159 = vmatpush1.bf16.xpose.msra.mxu0 %v2154
        %2160 = vmatprep.subr.bf16.mxu0 0
        %2161 = vmatpush1.bf16.xpose.msra.mxu0 0
        %2162 = vmatprep.subr.bf16.mxu0 0
        %2163 = vmatpush1.bf16.xpose.msra.mxu0 0
        %2164 = vmatprep.subr.bf16.mxu0 0
        %2165 = vmatpush1.bf16.xpose.msra.mxu0 0
        %2166 = vmatprep.subr.bf16.mxu0 0
        %2167 = vmatpush1.bf16.xpose.msra.mxu0 0
        %2168 = vmatprep.subr.bf16.mxu0 0
        %2169 = vmatpush1.bf16.xpose.msra.mxu0 0
        %2170 = vmatprep.subr.bf16.mxu0 0
        %2171 = vmatpush1.bf16.xpose.msra.mxu0 0
        %2172 = vmatprep.subr.bf16.mxu0 0
        %2173 = vmatpush1.bf16.xpose.msra.mxu0 0
        %2174 = vmatprep.subr.bf16.mxu0 0
        %2175 = vmatpush1.bf16.xpose.msra.mxu0 0
        %2176 = vmatprep.subr.bf16.mxu0 0
        %2177 = vmatpush1.bf16.xpose.msra.mxu0 0
        %2178 = vmatprep.subr.bf16.mxu0 0
        %2179 = vmatpush1.bf16.xpose.msra.mxu0 0
        %2180 = vmatprep.subr.bf16.mxu0 0
        %2181 = vmatpush1.bf16.xpose.msra.mxu0 0
        %2182 = vmatprep.subr.bf16.mxu0 0
        %2183 = vmatpush1.bf16.xpose.msra.mxu0 0
        %2184 = vmatprep.subr.bf16.mxu0 0
        %2185 = vmatpush1.bf16.xpose.msra.mxu0 0
        %2186 = vmatprep.subr.bf16.mxu0 0
        %2187 = vmatpush1.bf16.xpose.msra.mxu0 0
        %2188 = vmatprep.mubr.bf16.mxu0 0
        %2189 = vmatmul.mubr.bf16.gmra.mrb[0].mxu0 %v2145
        %v2190 = vpop.f32.mrb[0].mxu0
        %v2191 = vadd.f32 0.0, %v2190
        %v2192 = vpop.f32.mrb[0].mxu0
        %v2193 = vpop.f32.mrb[0].mxu0
        %v2194 = vadd.f32 0.0, %v2193
        %v2195 = vpop.f32.mrb[0].mxu0
        %2196 = vmatprep.mubr.bf16.mxu0 0
        %2197 = vmatmul.mubr.bf16.gmra.mrb[0].mxu0 %v2148
        %v2198 = vpop.f32.mrb[0].mxu0
        %v2199 = vadd.f32 0.0, %v2198
        %v2200 = vpop.f32.mrb[0].mxu0
        %v2201 = vpop.f32.mrb[0].mxu0
        %v2202 = vpop.f32.mrb[0].mxu0
        %2203 = vdwg.mxu0
        %v2204 = vsel %vm1394, %v2123, -1e+30
        %v2205 = vsel %vm1394, %v2126, -1e+30
        %v2206 = vsel %vm1394, %v2131, -1e+30
        %v2207 = vsel %vm1394, %v2191, -1e+30
        %v2208 = vsel %vm1394, %v2194, -1e+30
        %v2209 = vsel %vm1394, %v2199, -1e+30
        %v2210 = vsel %vm1534, %v2204, -inf
        %2211 = vmax.xlane.f32.xlu0 %v2210
        %v2212 = vpop.xlane.xlu0 %2211
        %v2213 = vsel %vm1534, %v2205, -inf
        %2214 = vmax.xlane.f32.xlu0 %v2213
        %v2215 = vpop.xlane.xlu0 %2214
        %v2216 = vsel %vm1534, %v2206, -inf
        %2217 = vmax.xlane.f32.xlu0 %v2216
        %v2218 = vpop.xlane.xlu0 %2217
        %v2219 = vsel %vm1534, %v2207, -inf
        %2220 = vmax.xlane.f32.xlu0 %v2219
        %v2221 = vpop.xlane.xlu0 %2220
        %v2222 = vsel %vm1534, %v2208, -inf
        %2223 = vmax.xlane.f32.xlu0 %v2222
        %v2224 = vpop.xlane.xlu0 %2223
        %v2225 = vsel %vm1534, %v2209, -inf
        %2226 = vmax.xlane.f32.xlu0 %v2225
        %v2227 = vpop.xlane.xlu0 %2226
        %v2228 = vsub.f32 %v2204, %v2212
        %v2229 = vsub.f32 %v2205, %v2215
        %v2230 = vsub.f32 %v2206, %v2218
        %v2231 = vsub.f32 %v2207, %v2221
        %v2232 = vsub.f32 %v2208, %v2224
        %v2233 = vsub.f32 %v2209, %v2227
        %v2234 = vmul.f32 %v2228, 1.442695
        %v2235 = vpow.pop %v2234
        %v2236 = vmul.f32 %v2229, 1.442695
        %v2237 = vpow.pop %v2236
        %v2238 = vmul.f32 %v2230, 1.442695
        %v2239 = vpow.pop %v2238
        %v2240 = vmul.f32 %v2231, 1.442695
        %v2241 = vpow.pop %v2240
        %v2242 = vmul.f32 %v2232, 1.442695
        %v2243 = vpow.pop %v2242
        %v2244 = vmul.f32 %v2233, 1.442695
        %v2245 = vpow.pop %v2244
        %v2246 = vsel %vm1534, %v2235, 0.0
        %2247 = vadd.xlane.f32.xlu0 %v2246
        %v2248 = vpop.xlane.xlu0 %2247
        %v2249 = vsel %vm1534, %v2237, 0.0
        %2250 = vadd.xlane.f32.xlu0 %v2249
        %v2251 = vpop.xlane.xlu0 %2250
        %v2252 = vsel %vm1534, %v2239, 0.0
        %2253 = vadd.xlane.f32.xlu0 %v2252
        %v2254 = vpop.xlane.xlu0 %2253
        %v2255 = vsel %vm1534, %v2241, 0.0
        %2256 = vadd.xlane.f32.xlu0 %v2255
        %v2257 = vpop.xlane.xlu0 %2256
        %v2258 = vsel %vm1534, %v2243, 0.0
        %2259 = vadd.xlane.f32.xlu0 %v2258
        %v2260 = vpop.xlane.xlu0 %2259
        %v2261 = vsel %vm1534, %v2245, 0.0
        %2262 = vadd.xlane.f32.xlu0 %v2261
        %v2263 = vpop.xlane.xlu0 %2262
        %v2264 = vrcp.pop %v2248
        %v2265 = vrcp.pop %v2251
        %v2266 = vrcp.pop %v2254
        %v2267 = vrcp.pop %v2257
        %v2268 = vrcp.pop %v2260
        %v2269 = vrcp.pop %v2263
        %v2270 = vmul.f32 %v2235, %v2264
        %v2271 = vmul.f32 %v2237, %v2265
        %v2272 = vmul.f32 %v2239, %v2266
        %v2273 = vmul.f32 %v2241, %v2267
        %v2274 = vmul.f32 %v2243, %v2268
        %v2275 = vmul.f32 %v2245, %v2269
        %v2276 = vpack.c.bf16 %v2271, %v2270
        %v2277 = vpack.c.bf16 %v2272, %v2272
        %v2278 = vpack.c.bf16 %v2274, %v2273
        %v2279 = vpack.c.bf16 %v2275, %v2275
        %2280 = vrot.lane.b32.xlu0 %v1403, 64
        %v2281 = vpop.permute.xlu0 %2280
        %2282 = vrot.lane.b32.xlu0 %v1404, 64
        %v2283 = vpop.permute.xlu0 %2282
        %v2286 = vsel %vm1534, %v2276, 0
        %v2289 = vsel %vm1534, %v2277, 0
        %v2292 = vsel %vm1611, %v2283, 0
        %2294 = vmatprep.subr.bf16.mxu0 0
        %2295 = vmatpush1.bf16.msra.mxu0 %v2281
        %2296 = vmatprep.subr.bf16.mxu0 0
        %2297 = vmatpush1.bf16.msra.mxu0 %v2292
        %2298 = vmatprep.subr.bf16.mxu0 0
        %2299 = vmatpush1.bf16.msra.mxu0 0
        %2300 = vmatprep.subr.bf16.mxu0 0
        %2301 = vmatpush1.bf16.msra.mxu0 0
        %2302 = vmatprep.subr.bf16.mxu0 0
        %2303 = vmatpush1.bf16.msra.mxu0 0
        %2304 = vmatprep.subr.bf16.mxu0 0
        %2305 = vmatpush1.bf16.msra.mxu0 0
        %2306 = vmatprep.subr.bf16.mxu0 0
        %2307 = vmatpush1.bf16.msra.mxu0 0
        %2308 = vmatprep.subr.bf16.mxu0 0
        %2309 = vmatpush1.bf16.msra.mxu0 0
        %2310 = vmatprep.subr.bf16.mxu0 0
        %2311 = vmatpush1.bf16.msra.mxu0 0
        %2312 = vmatprep.subr.bf16.mxu0 0
        %2313 = vmatpush1.bf16.msra.mxu0 0
        %2314 = vmatprep.subr.bf16.mxu0 0
        %2315 = vmatpush1.bf16.msra.mxu0 0
        %2316 = vmatprep.subr.bf16.mxu0 0
        %2317 = vmatpush1.bf16.msra.mxu0 0
        %2318 = vmatprep.subr.bf16.mxu0 0
        %2319 = vmatpush1.bf16.msra.mxu0 0
        %2320 = vmatprep.subr.bf16.mxu0 0
        %2321 = vmatpush1.bf16.msra.mxu0 0
        %2322 = vmatprep.subr.bf16.mxu0 0
        %2323 = vmatpush1.bf16.msra.mxu0 0
        %2324 = vmatprep.subr.bf16.mxu0 0
        %2325 = vmatpush1.bf16.msra.mxu0 0
        %2326 = vmatprep.mubr.bf16.mxu0 0
        %2327 = vmatmul.mubr.bf16.gmra.mrb[0].mxu0 %v2286
        %v2328 = vpop.f32.mrb[0].mxu0
        %v2329 = vadd.f32 0.0, %v2328
        %v2330 = vpop.f32.mrb[0].mxu0
        %v2331 = vpop.f32.mrb[0].mxu0
        %v2332 = vadd.f32 0.0, %v2331
        %v2333 = vpop.f32.mrb[0].mxu0
        %2334 = vmatprep.mubr.bf16.mxu0 0
        %2335 = vmatmul.mubr.bf16.gmra.mrb[0].mxu0 %v2289
        %v2336 = vpop.f32.mrb[0].mxu0
        %v2337 = vadd.f32 0.0, %v2336
        %v2338 = vpop.f32.mrb[0].mxu0
        %v2339 = vpop.f32.mrb[0].mxu0
        %v2340 = vpop.f32.mrb[0].mxu0
        %2341 = vdwg.mxu0
        %2342 = vrot.lane.b32.xlu0 %v1405, 64
        %v2343 = vpop.permute.xlu0 %2342
        %2344 = vrot.lane.b32.xlu0 %v1406, 64
        %v2345 = vpop.permute.xlu0 %2344
        %v2348 = vsel %vm1534, %v2278, 0
        %v2351 = vsel %vm1534, %v2279, 0
        %v2354 = vsel %vm1611, %v2345, 0
        %2356 = vmatprep.subr.bf16.mxu0 0
        %2357 = vmatpush1.bf16.msra.mxu0 %v2343
        %2358 = vmatprep.subr.bf16.mxu0 0
        %2359 = vmatpush1.bf16.msra.mxu0 %v2354
        %2360 = vmatprep.subr.bf16.mxu0 0
        %2361 = vmatpush1.bf16.msra.mxu0 0
        %2362 = vmatprep.subr.bf16.mxu0 0
        %2363 = vmatpush1.bf16.msra.mxu0 0
        %2364 = vmatprep.subr.bf16.mxu0 0
        %2365 = vmatpush1.bf16.msra.mxu0 0
        %2366 = vmatprep.subr.bf16.mxu0 0
        %2367 = vmatpush1.bf16.msra.mxu0 0
        %2368 = vmatprep.subr.bf16.mxu0 0
        %2369 = vmatpush1.bf16.msra.mxu0 0
        %2370 = vmatprep.subr.bf16.mxu0 0
        %2371 = vmatpush1.bf16.msra.mxu0 0
        %2372 = vmatprep.subr.bf16.mxu0 0
        %2373 = vmatpush1.bf16.msra.mxu0 0
        %2374 = vmatprep.subr.bf16.mxu0 0
        %2375 = vmatpush1.bf16.msra.mxu0 0
        %2376 = vmatprep.subr.bf16.mxu0 0
        %2377 = vmatpush1.bf16.msra.mxu0 0
        %2378 = vmatprep.subr.bf16.mxu0 0
        %2379 = vmatpush1.bf16.msra.mxu0 0
        %2380 = vmatprep.subr.bf16.mxu0 0
        %2381 = vmatpush1.bf16.msra.mxu0 0
        %2382 = vmatprep.subr.bf16.mxu0 0
        %2383 = vmatpush1.bf16.msra.mxu0 0
        %2384 = vmatprep.subr.bf16.mxu0 0
        %2385 = vmatpush1.bf16.msra.mxu0 0
        %2386 = vmatprep.subr.bf16.mxu0 0
        %2387 = vmatpush1.bf16.msra.mxu0 0
        %2388 = vmatprep.mubr.bf16.mxu0 0
        %2389 = vmatmul.mubr.bf16.gmra.mrb[0].mxu0 %v2348
        %v2390 = vpop.f32.mrb[0].mxu0
        %v2391 = vadd.f32 0.0, %v2390
        %v2392 = vpop.f32.mrb[0].mxu0
        %v2393 = vpop.f32.mrb[0].mxu0
        %v2394 = vadd.f32 0.0, %v2393
        %v2395 = vpop.f32.mrb[0].mxu0
        %2396 = vmatprep.mubr.bf16.mxu0 0
        %2397 = vmatmul.mubr.bf16.gmra.mrb[0].mxu0 %v2351
        %v2398 = vpop.f32.mrb[0].mxu0
        %v2399 = vadd.f32 0.0, %v2398
        %v2400 = vpop.f32.mrb[0].mxu0
        %v2401 = vpop.f32.mrb[0].mxu0
        %v2402 = vpop.f32.mrb[0].mxu0
        %2403 = vdwg.mxu0
        %2404 = vrot.lane.b32.xlu0 %v1395, 32
        %v2405 = vpop.permute.xlu0 %2404
        %2406 = vrot.lane.b32.xlu0 %v1396, 32
        %v2407 = vpop.permute.xlu0 %2406
        %2408 = vrot.lane.b32.xlu0 %v1399, 32
        %v2409 = vpop.permute.xlu0 %2408
        %2410 = vrot.lane.b32.xlu0 %v1400, 32
        %v2411 = vpop.permute.xlu0 %2410
        %v2413 = vsel %vm1407, %v2405, 0
        %v2416 = vsel %vm1407, %v2407, 0
        %v2419 = vsel %vm1407, %v2409, 0
        %v2422 = vsel %vm1407, %v2411, 0
        %2424 = vmatprep.subr.bf16.mxu0 0
        %2425 = vmatpush1.bf16.xpose.msra.mxu0 %v2419
        %2426 = vmatprep.subr.bf16.mxu0 0
        %2427 = vmatpush1.bf16.xpose.msra.mxu0 %v2422
        %2428 = vmatprep.subr.bf16.mxu0 0
        %2429 = vmatpush1.bf16.xpose.msra.mxu0 0
        %2430 = vmatprep.subr.bf16.mxu0 0
        %2431 = vmatpush1.bf16.xpose.msra.mxu0 0
        %2432 = vmatprep.subr.bf16.mxu0 0
        %2433 = vmatpush1.bf16.xpose.msra.mxu0 0
        %2434 = vmatprep.subr.bf16.mxu0 0
        %2435 = vmatpush1.bf16.xpose.msra.mxu0 0
        %2436 = vmatprep.subr.bf16.mxu0 0
        %2437 = vmatpush1.bf16.xpose.msra.mxu0 0
        %2438 = vmatprep.subr.bf16.mxu0 0
        %2439 = vmatpush1.bf16.xpose.msra.mxu0 0
        %2440 = vmatprep.subr.bf16.mxu0 0
        %2441 = vmatpush1.bf16.xpose.msra.mxu0 0
        %2442 = vmatprep.subr.bf16.mxu0 0
        %2443 = vmatpush1.bf16.xpose.msra.mxu0 0
        %2444 = vmatprep.subr.bf16.mxu0 0
        %2445 = vmatpush1.bf16.xpose.msra.mxu0 0
        %2446 = vmatprep.subr.bf16.mxu0 0
        %2447 = vmatpush1.bf16.xpose.msra.mxu0 0
        %2448 = vmatprep.subr.bf16.mxu0 0
        %2449 = vmatpush1.bf16.xpose.msra.mxu0 0
        %2450 = vmatprep.subr.bf16.mxu0 0
        %2451 = vmatpush1.bf16.xpose.msra.mxu0 0
        %2452 = vmatprep.subr.bf16.mxu0 0
        %2453 = vmatpush1.bf16.xpose.msra.mxu0 0
        %2454 = vmatprep.subr.bf16.mxu0 0
        %2455 = vmatpush1.bf16.xpose.msra.mxu0 0
        %2456 = vmatprep.mubr.bf16.mxu0 0
        %2457 = vmatmul.mubr.bf16.gmra.mrb[0].mxu0 %v2413
        %v2458 = vpop.f32.mrb[0].mxu0
        %v2459 = vadd.f32 0.0, %v2458
        %v2460 = vpop.f32.mrb[0].mxu0
        %v2461 = vpop.f32.mrb[0].mxu0
        %v2462 = vadd.f32 0.0, %v2461
        %v2463 = vpop.f32.mrb[0].mxu0
        %2464 = vmatprep.mubr.bf16.mxu0 0
        %2465 = vmatmul.mubr.bf16.gmra.mrb[0].mxu0 %v2416
        %v2466 = vpop.f32.mrb[0].mxu0
        %v2467 = vadd.f32 0.0, %v2466
        %v2468 = vpop.f32.mrb[0].mxu0
        %v2469 = vpop.f32.mrb[0].mxu0
        %v2470 = vpop.f32.mrb[0].mxu0
        %2471 = vdwg.mxu0
        %2472 = vrot.lane.b32.xlu0 %v1397, 32
        %v2473 = vpop.permute.xlu0 %2472
        %2474 = vrot.lane.b32.xlu0 %v1398, 32
        %v2475 = vpop.permute.xlu0 %2474
        %2476 = vrot.lane.b32.xlu0 %v1401, 32
        %v2477 = vpop.permute.xlu0 %2476
        %2478 = vrot.lane.b32.xlu0 %v1402, 32
        %v2479 = vpop.permute.xlu0 %2478
        %v2481 = vsel %vm1407, %v2473, 0
        %v2484 = vsel %vm1407, %v2475, 0
        %v2487 = vsel %vm1407, %v2477, 0
        %v2490 = vsel %vm1407, %v2479, 0
        %2492 = vmatprep.subr.bf16.mxu0 0
        %2493 = vmatpush1.bf16.xpose.msra.mxu0 %v2487
        %2494 = vmatprep.subr.bf16.mxu0 0
        %2495 = vmatpush1.bf16.xpose.msra.mxu0 %v2490
        %2496 = vmatprep.subr.bf16.mxu0 0
        %2497 = vmatpush1.bf16.xpose.msra.mxu0 0
        %2498 = vmatprep.subr.bf16.mxu0 0
        %2499 = vmatpush1.bf16.xpose.msra.mxu0 0
        %2500 = vmatprep.subr.bf16.mxu0 0
        %2501 = vmatpush1.bf16.xpose.msra.mxu0 0
        %2502 = vmatprep.subr.bf16.mxu0 0
        %2503 = vmatpush1.bf16.xpose.msra.mxu0 0
        %2504 = vmatprep.subr.bf16.mxu0 0
        %2505 = vmatpush1.bf16.xpose.msra.mxu0 0
        %2506 = vmatprep.subr.bf16.mxu0 0
        %2507 = vmatpush1.bf16.xpose.msra.mxu0 0
        %2508 = vmatprep.subr.bf16.mxu0 0
        %2509 = vmatpush1.bf16.xpose.msra.mxu0 0
        %2510 = vmatprep.subr.bf16.mxu0 0
        %2511 = vmatpush1.bf16.xpose.msra.mxu0 0
        %2512 = vmatprep.subr.bf16.mxu0 0
        %2513 = vmatpush1.bf16.xpose.msra.mxu0 0
        %2514 = vmatprep.subr.bf16.mxu0 0
        %2515 = vmatpush1.bf16.xpose.msra.mxu0 0
        %2516 = vmatprep.subr.bf16.mxu0 0
        %2517 = vmatpush1.bf16.xpose.msra.mxu0 0
        %2518 = vmatprep.subr.bf16.mxu0 0
        %2519 = vmatpush1.bf16.xpose.msra.mxu0 0
        %2520 = vmatprep.subr.bf16.mxu0 0
        %2521 = vmatpush1.bf16.xpose.msra.mxu0 0
        %2522 = vmatprep.subr.bf16.mxu0 0
        %2523 = vmatpush1.bf16.xpose.msra.mxu0 0
        %2524 = vmatprep.mubr.bf16.mxu0 0
        %2525 = vmatmul.mubr.bf16.gmra.mrb[0].mxu0 %v2481
        %v2526 = vpop.f32.mrb[0].mxu0
        %v2527 = vadd.f32 0.0, %v2526
        %v2528 = vpop.f32.mrb[0].mxu0
        %v2529 = vpop.f32.mrb[0].mxu0
        %v2530 = vadd.f32 0.0, %v2529
        %v2531 = vpop.f32.mrb[0].mxu0
        %2532 = vmatprep.mubr.bf16.mxu0 0
        %2533 = vmatmul.mubr.bf16.gmra.mrb[0].mxu0 %v2484
        %v2534 = vpop.f32.mrb[0].mxu0
        %v2535 = vadd.f32 0.0, %v2534
        %v2536 = vpop.f32.mrb[0].mxu0
        %v2537 = vpop.f32.mrb[0].mxu0
        %v2538 = vpop.f32.mrb[0].mxu0
        %2539 = vdwg.mxu0
        %v2540 = vsel %vm1394, %v2459, -1e+30
        %v2541 = vsel %vm1394, %v2462, -1e+30
        %v2542 = vsel %vm1394, %v2467, -1e+30
        %v2543 = vsel %vm1394, %v2527, -1e+30
        %v2544 = vsel %vm1394, %v2530, -1e+30
        %v2545 = vsel %vm1394, %v2535, -1e+30
        %v2546 = vsel %vm1534, %v2540, -inf
        %2547 = vmax.xlane.f32.xlu0 %v2546
        %v2548 = vpop.xlane.xlu0 %2547
        %v2549 = vsel %vm1534, %v2541, -inf
        %2550 = vmax.xlane.f32.xlu0 %v2549
        %v2551 = vpop.xlane.xlu0 %2550
        %v2552 = vsel %vm1534, %v2542, -inf
        %2553 = vmax.xlane.f32.xlu0 %v2552
        %v2554 = vpop.xlane.xlu0 %2553
        %v2555 = vsel %vm1534, %v2543, -inf
        %2556 = vmax.xlane.f32.xlu0 %v2555
        %v2557 = vpop.xlane.xlu0 %2556
        %v2558 = vsel %vm1534, %v2544, -inf
        %2559 = vmax.xlane.f32.xlu0 %v2558
        %v2560 = vpop.xlane.xlu0 %2559
        %v2561 = vsel %vm1534, %v2545, -inf
        %2562 = vmax.xlane.f32.xlu0 %v2561
        %v2563 = vpop.xlane.xlu0 %2562
        %v2564 = vsub.f32 %v2540, %v2548
        %v2565 = vsub.f32 %v2541, %v2551
        %v2566 = vsub.f32 %v2542, %v2554
        %v2567 = vsub.f32 %v2543, %v2557
        %v2568 = vsub.f32 %v2544, %v2560
        %v2569 = vsub.f32 %v2545, %v2563
        %v2570 = vmul.f32 %v2564, 1.442695
        %v2571 = vpow.pop %v2570
        %v2572 = vmul.f32 %v2565, 1.442695
        %v2573 = vpow.pop %v2572
        %v2574 = vmul.f32 %v2566, 1.442695
        %v2575 = vpow.pop %v2574
        %v2576 = vmul.f32 %v2567, 1.442695
        %v2577 = vpow.pop %v2576
        %v2578 = vmul.f32 %v2568, 1.442695
        %v2579 = vpow.pop %v2578
        %v2580 = vmul.f32 %v2569, 1.442695
        %v2581 = vpow.pop %v2580
        %v2582 = vsel %vm1534, %v2571, 0.0
        %2583 = vadd.xlane.f32.xlu0 %v2582
        %v2584 = vpop.xlane.xlu0 %2583
        %v2585 = vsel %vm1534, %v2573, 0.0
        %2586 = vadd.xlane.f32.xlu0 %v2585
        %v2587 = vpop.xlane.xlu0 %2586
        %v2588 = vsel %vm1534, %v2575, 0.0
        %2589 = vadd.xlane.f32.xlu0 %v2588
        %v2590 = vpop.xlane.xlu0 %2589
        %v2591 = vsel %vm1534, %v2577, 0.0
        %2592 = vadd.xlane.f32.xlu0 %v2591
        %v2593 = vpop.xlane.xlu0 %2592
        %v2594 = vsel %vm1534, %v2579, 0.0
        %2595 = vadd.xlane.f32.xlu0 %v2594
        %v2596 = vpop.xlane.xlu0 %2595
        %v2597 = vsel %vm1534, %v2581, 0.0
        %2598 = vadd.xlane.f32.xlu0 %v2597
        %v2599 = vpop.xlane.xlu0 %2598
        %v2600 = vrcp.pop %v2584
        %v2601 = vrcp.pop %v2587
        %v2602 = vrcp.pop %v2590
        %v2603 = vrcp.pop %v2593
        %v2604 = vrcp.pop %v2596
        %v2605 = vrcp.pop %v2599
        %v2606 = vmul.f32 %v2571, %v2600
        %v2607 = vmul.f32 %v2573, %v2601
        %v2608 = vmul.f32 %v2575, %v2602
        %v2609 = vmul.f32 %v2577, %v2603
        %v2610 = vmul.f32 %v2579, %v2604
        %v2611 = vmul.f32 %v2581, %v2605
        %v2612 = vpack.c.bf16 %v2607, %v2606
        %v2613 = vpack.c.bf16 %v2608, %v2608
        %v2614 = vpack.c.bf16 %v2610, %v2609
        %v2615 = vpack.c.bf16 %v2611, %v2611
        %2616 = vrot.lane.b32.xlu0 %v1403, 32
        %v2617 = vpop.permute.xlu0 %2616
        %2618 = vrot.lane.b32.xlu0 %v1404, 32
        %v2619 = vpop.permute.xlu0 %2618
        %v2622 = vsel %vm1534, %v2612, 0
        %v2625 = vsel %vm1534, %v2613, 0
        %v2628 = vsel %vm1611, %v2619, 0
        %2630 = vmatprep.subr.bf16.mxu0 0
        %2631 = vmatpush1.bf16.msra.mxu0 %v2617
        %2632 = vmatprep.subr.bf16.mxu0 0
        %2633 = vmatpush1.bf16.msra.mxu0 %v2628
        %2634 = vmatprep.subr.bf16.mxu0 0
        %2635 = vmatpush1.bf16.msra.mxu0 0
        %2636 = vmatprep.subr.bf16.mxu0 0
        %2637 = vmatpush1.bf16.msra.mxu0 0
        %2638 = vmatprep.subr.bf16.mxu0 0
        %2639 = vmatpush1.bf16.msra.mxu0 0
        %2640 = vmatprep.subr.bf16.mxu0 0
        %2641 = vmatpush1.bf16.msra.mxu0 0
        %2642 = vmatprep.subr.bf16.mxu0 0
        %2643 = vmatpush1.bf16.msra.mxu0 0
        %2644 = vmatprep.subr.bf16.mxu0 0
        %2645 = vmatpush1.bf16.msra.mxu0 0
        %2646 = vmatprep.subr.bf16.mxu0 0
        %2647 = vmatpush1.bf16.msra.mxu0 0
        %2648 = vmatprep.subr.bf16.mxu0 0
        %2649 = vmatpush1.bf16.msra.mxu0 0
        %2650 = vmatprep.subr.bf16.mxu0 0
        %2651 = vmatpush1.bf16.msra.mxu0 0
        %2652 = vmatprep.subr.bf16.mxu0 0
        %2653 = vmatpush1.bf16.msra.mxu0 0
        %2654 = vmatprep.subr.bf16.mxu0 0
        %2655 = vmatpush1.bf16.msra.mxu0 0
        %2656 = vmatprep.subr.bf16.mxu0 0
        %2657 = vmatpush1.bf16.msra.mxu0 0
        %2658 = vmatprep.subr.bf16.mxu0 0
        %2659 = vmatpush1.bf16.msra.mxu0 0
        %2660 = vmatprep.subr.bf16.mxu0 0
        %2661 = vmatpush1.bf16.msra.mxu0 0
        %2662 = vmatprep.mubr.bf16.mxu0 0
        %2663 = vmatmul.mubr.bf16.gmra.mrb[0].mxu0 %v2622
        %v2664 = vpop.f32.mrb[0].mxu0
        %v2665 = vadd.f32 0.0, %v2664
        %v2666 = vpop.f32.mrb[0].mxu0
        %v2667 = vpop.f32.mrb[0].mxu0
        %v2668 = vadd.f32 0.0, %v2667
        %v2669 = vpop.f32.mrb[0].mxu0
        %2670 = vmatprep.mubr.bf16.mxu0 0
        %2671 = vmatmul.mubr.bf16.gmra.mrb[0].mxu0 %v2625
        %v2672 = vpop.f32.mrb[0].mxu0
        %v2673 = vadd.f32 0.0, %v2672
        %v2674 = vpop.f32.mrb[0].mxu0
        %v2675 = vpop.f32.mrb[0].mxu0
        %v2676 = vpop.f32.mrb[0].mxu0
        %2677 = vdwg.mxu0
        %2678 = vrot.lane.b32.xlu0 %v1405, 32
        %v2679 = vpop.permute.xlu0 %2678
        %2680 = vrot.lane.b32.xlu0 %v1406, 32
        %v2681 = vpop.permute.xlu0 %2680
        %v2684 = vsel %vm1534, %v2614, 0
        %v2687 = vsel %vm1534, %v2615, 0
        %v2690 = vsel %vm1611, %v2681, 0
        %2692 = vmatprep.subr.bf16.mxu0 0
        %2693 = vmatpush1.bf16.msra.mxu0 %v2679
        %2694 = vmatprep.subr.bf16.mxu0 0
        %2695 = vmatpush1.bf16.msra.mxu0 %v2690
        %2696 = vmatprep.subr.bf16.mxu0 0
        %2697 = vmatpush1.bf16.msra.mxu0 0
        %2698 = vmatprep.subr.bf16.mxu0 0
        %2699 = vmatpush1.bf16.msra.mxu0 0
        %2700 = vmatprep.subr.bf16.mxu0 0
        %2701 = vmatpush1.bf16.msra.mxu0 0
        %2702 = vmatprep.subr.bf16.mxu0 0
        %2703 = vmatpush1.bf16.msra.mxu0 0
        %2704 = vmatprep.subr.bf16.mxu0 0
        %2705 = vmatpush1.bf16.msra.mxu0 0
        %2706 = vmatprep.subr.bf16.mxu0 0
        %2707 = vmatpush1.bf16.msra.mxu0 0
        %2708 = vmatprep.subr.bf16.mxu0 0
        %2709 = vmatpush1.bf16.msra.mxu0 0
        %2710 = vmatprep.subr.bf16.mxu0 0
        %2711 = vmatpush1.bf16.msra.mxu0 0
        %2712 = vmatprep.subr.bf16.mxu0 0
        %2713 = vmatpush1.bf16.msra.mxu0 0
        %2714 = vmatprep.subr.bf16.mxu0 0
        %2715 = vmatpush1.bf16.msra.mxu0 0
        %2716 = vmatprep.subr.bf16.mxu0 0
        %2717 = vmatpush1.bf16.msra.mxu0 0
        %2718 = vmatprep.subr.bf16.mxu0 0
        %2719 = vmatpush1.bf16.msra.mxu0 0
        %2720 = vmatprep.subr.bf16.mxu0 0
        %2721 = vmatpush1.bf16.msra.mxu0 0
        %2722 = vmatprep.subr.bf16.mxu0 0
        %2723 = vmatpush1.bf16.msra.mxu0 0
        %2724 = vmatprep.mubr.bf16.mxu0 0
        %2725 = vmatmul.mubr.bf16.gmra.mrb[0].mxu0 %v2684
        %v2726 = vpop.f32.mrb[0].mxu0
        %v2727 = vadd.f32 0.0, %v2726
        %v2728 = vpop.f32.mrb[0].mxu0
        %v2729 = vpop.f32.mrb[0].mxu0
        %v2730 = vadd.f32 0.0, %v2729
        %v2731 = vpop.f32.mrb[0].mxu0
        %2732 = vmatprep.mubr.bf16.mxu0 0
        %2733 = vmatmul.mubr.bf16.gmra.mrb[0].mxu0 %v2687
        %v2734 = vpop.f32.mrb[0].mxu0
        %v2735 = vadd.f32 0.0, %v2734
        %v2736 = vpop.f32.mrb[0].mxu0
        %v2737 = vpop.f32.mrb[0].mxu0
        %v2738 = vpop.f32.mrb[0].mxu0
        %2739 = vdwg.mxu0
        %2746 = vrot.lane.b32.xlu0 %v1991, 32
        %v2747 = vpop.permute.xlu0 %2746
        %2748 = vrot.lane.b32.xlu0 %v1994, 32
        %v2749 = vpop.permute.xlu0 %2748
        %2750 = vrot.lane.b32.xlu0 %v1999, 32
        %v2751 = vpop.permute.xlu0 %2750
        %2752 = vrot.lane.b32.xlu0 %v2055, 32
        %v2753 = vpop.permute.xlu0 %2752
        %2754 = vrot.lane.b32.xlu0 %v2058, 32
        %v2755 = vpop.permute.xlu0 %2754
        %2756 = vrot.lane.b32.xlu0 %v2063, 32
        %v2757 = vpop.permute.xlu0 %2756
        %2770 = vrot.lane.b32.xlu0 %v2329, 64
        %v2771 = vpop.permute.xlu0 %2770
        %2772 = vrot.lane.b32.xlu0 %v2332, 64
        %v2773 = vpop.permute.xlu0 %2772
        %2774 = vrot.lane.b32.xlu0 %v2337, 64
        %v2775 = vpop.permute.xlu0 %2774
        %2776 = vrot.lane.b32.xlu0 %v2391, 64
        %v2777 = vpop.permute.xlu0 %2776
        %2778 = vrot.lane.b32.xlu0 %v2394, 64
        %v2779 = vpop.permute.xlu0 %2778
        %2780 = vrot.lane.b32.xlu0 %v2399, 64
        %v2781 = vpop.permute.xlu0 %2780
        %2794 = vrot.lane.b32.xlu0 %v2665, 96
        %v2795 = vpop.permute.xlu0 %2794
        %2796 = vrot.lane.b32.xlu0 %v2668, 96
        %v2797 = vpop.permute.xlu0 %2796
        %2798 = vrot.lane.b32.xlu0 %v2673, 96
        %v2799 = vpop.permute.xlu0 %2798
        %2800 = vrot.lane.b32.xlu0 %v2727, 96
        %v2801 = vpop.permute.xlu0 %2800
        %2802 = vrot.lane.b32.xlu0 %v2730, 96
        %v2803 = vpop.permute.xlu0 %2802
        %2804 = vrot.lane.b32.xlu0 %v2735, 96
        %v2805 = vpop.permute.xlu0 %2804
        %v2812 = vsel %vm1407, %v1650, %v2747
        %v2813 = vsel %vm1407, %v1653, %v2749
        %v2814 = vsel %vm1407, %v1658, %v2751
        %v2815 = vsel %vm1407, %v1707, %v2753
        %v2816 = vsel %vm1407, %v1710, %v2755
        %v2817 = vsel %vm1407, %v1715, %v2757
        %vm2818 = vcmask 523264
        %v2819 = vsel %vm2818, %v2812, %v2771
        %v2820 = vsel %vm2818, %v2813, %v2773
        %v2821 = vsel %vm2818, %v2814, %v2775
        %v2822 = vsel %vm2818, %v2815, %v2777
        %v2823 = vsel %vm2818, %v2816, %v2779
        %v2824 = vsel %vm2818, %v2817, %v2781
        %vm2825 = vcmask 785408
        %v2826 = vsel %vm2825, %v2819, %v2795
        %v2827 = vsel %vm2825, %v2820, %v2797
        %v2828 = vsel %vm2825, %v2821, %v2799
        %v2829 = vsel %vm2825, %v2822, %v2801
        %v2830 = vsel %vm2825, %v2823, %v2803
        %v2831 = vsel %vm2825, %v2824, %v2805
        %v2832 = vpack.c.bf16 %v2827, %v2826
        %v2833 = vpack.c.bf16 %v2829, %v2828
        %v2834 = vpack.c.bf16 %v2831, %v2830
        %v2835 = vld [vmem:[%s678] sm:$0xf]
        %v2836 = vld [vmem:[%s678 + $0x4] sm:$0xf]
        %v2837 = vld [vmem:[%s678 + $0x8] sm:$0xf]
        %v2838 = vld [vmem:[%s678 + $0xc] sm:$0xf]
        %v2839 = vld [vmem:[%s678 + $0x10] sm:$0xf]
        %v2840 = vld [vmem:[%s678 + $0x14] sm:$0xf]
        %v2841 = vld [vmem:[%s678 + $0x18] sm:$0xf]
        %v2842 = vld [vmem:[%s678 + $0x1c] sm:$0xf]
        %v2843 = vld [vmem:[%s678 + $0x20] sm:$0xf]
        %v2844 = vld [vmem:[%s678 + $0x24] sm:$0xf]
        %v2845 = vld [vmem:[%s678 + $0x28] sm:$0xf]
        %v2846 = vld [vmem:[%s678 + $0x2c] sm:$0xf]
        %v2847 = vld [vmem:[%s678 + $0x30] sm:$0xf]
        %v2848 = vld [vmem:[%s678 + $0x34] sm:$0xf]
        %v2849 = vld [vmem:[%s678 + $0x38] sm:$0xf]
        %v2850 = vld [vmem:[%s678 + $0x3c] sm:$0xf]
        %v2867 = vunpack.c.l.b16 %v2835
        %v2868 = vunpack.c.l.b16 %v2836
        %v2869 = vunpack.c.l.b16 %v2837
        %v2870 = vunpack.c.l.b16 %v2838
        %v2871 = vunpack.c.l.b16 %v2839
        %v2872 = vunpack.c.l.b16 %v2840
        %v2873 = vunpack.c.l.b16 %v2841
        %v2874 = vunpack.c.l.b16 %v2842
        %v2875 = vunpack.c.l.b16 %v2843
        %v2876 = vunpack.c.l.b16 %v2844
        %v2877 = vunpack.c.l.b16 %v2845
        %v2878 = vunpack.c.l.b16 %v2846
        %v2879 = vunpack.c.l.b16 %v2847
        %v2880 = vunpack.c.l.b16 %v2848
        %v2881 = vunpack.c.l.b16 %v2849
        %v2882 = vunpack.c.l.b16 %v2850
        %v2883 = vpack.c.b16 %v2868, %v2867
        %v2884 = vpack.c.b16 %v2870, %v2869
        %v2885 = vpack.c.b16 %v2872, %v2871
        %v2886 = vpack.c.b16 %v2874, %v2873
        %v2887 = vpack.c.b16 %v2876, %v2875
        %v2888 = vpack.c.b16 %v2878, %v2877
        %v2889 = vpack.c.b16 %v2880, %v2879
        %v2890 = vpack.c.b16 %v2882, %v2881
        %2899 = vmatprep.subr.bf16.mxu0 0
        %2900 = vmatpush1.bf16.msra.mxu0 %v2883
        %2901 = vmatprep.subr.bf16.mxu0 0
        %2902 = vmatpush1.bf16.msra.mxu0 %v2884
        %2903 = vmatprep.subr.bf16.mxu0 0
        %2904 = vmatpush1.bf16.msra.mxu0 %v2885
        %2905 = vmatprep.subr.bf16.mxu0 0
        %2906 = vmatpush1.bf16.msra.mxu0 %v2886
        %2907 = vmatprep.subr.bf16.mxu0 0
        %2908 = vmatpush1.bf16.msra.mxu0 %v2887
        %2909 = vmatprep.subr.bf16.mxu0 0
        %2910 = vmatpush1.bf16.msra.mxu0 %v2888
        %2911 = vmatprep.subr.bf16.mxu0 0
        %2912 = vmatpush1.bf16.msra.mxu0 %v2889
        %2913 = vmatprep.subr.bf16.mxu0 0
        %2914 = vmatpush1.bf16.msra.mxu0 %v2890
        %2915 = vmatprep.subr.bf16.mxu0 0
        %2916 = vmatpush1.bf16.msra.mxu0 0
        %2917 = vmatprep.subr.bf16.mxu0 0
        %2918 = vmatpush1.bf16.msra.mxu0 0
        %2919 = vmatprep.subr.bf16.mxu0 0
        %2920 = vmatpush1.bf16.msra.mxu0 0
        %2921 = vmatprep.subr.bf16.mxu0 0
        %2922 = vmatpush1.bf16.msra.mxu0 0
        %2923 = vmatprep.subr.bf16.mxu0 0
        %2924 = vmatpush1.bf16.msra.mxu0 0
        %2925 = vmatprep.subr.bf16.mxu0 0
        %2926 = vmatpush1.bf16.msra.mxu0 0
        %2927 = vmatprep.subr.bf16.mxu0 0
        %2928 = vmatpush1.bf16.msra.mxu0 0
        %2929 = vmatprep.subr.bf16.mxu0 0
        %2930 = vmatpush1.bf16.msra.mxu0 0
        %2931 = vmatprep.mubr.bf16.mxu0 0
        %2932 = vmatmul.mubr.bf16.gmra.mrb[0].mxu0 %v2832
        %v2933 = vpop.f32.mrb[0].mxu0
        %v2934 = vadd.f32 0.0, %v2933
        %v2935 = vpop.f32.mrb[0].mxu0
        %v2936 = vpop.f32.mrb[0].mxu0
        %v2937 = vadd.f32 0.0, %v2936
        %v2938 = vpop.f32.mrb[0].mxu0
        %2939 = vmatprep.mubr.bf16.mxu0 0
        %2940 = vmatmul.mubr.bf16.gmra.mrb[0].mxu0 %v2833
        %v2941 = vpop.f32.mrb[0].mxu0
        %v2942 = vadd.f32 0.0, %v2941
        %v2943 = vpop.f32.mrb[0].mxu0
        %v2944 = vpop.f32.mrb[0].mxu0
        %v2945 = vadd.f32 0.0, %v2944
        %v2946 = vpop.f32.mrb[0].mxu0
        %2947 = vmatprep.mubr.bf16.mxu0 0
        %2948 = vmatmul.mubr.bf16.gmra.mrb[0].mxu0 %v2834
        %v2949 = vpop.f32.mrb[0].mxu0
        %v2950 = vadd.f32 0.0, %v2949
        %v2951 = vpop.f32.mrb[0].mxu0
        %v2952 = vpop.f32.mrb[0].mxu0
        %v2953 = vadd.f32 0.0, %v2952
        %v2954 = vpop.f32.mrb[0].mxu0
        %2955 = vdwg.mxu0
        %v2956 = vadd.f32 %v987, %v2934
        %v2957 = vadd.f32 %v988, %v2937
        %v2958 = vadd.f32 %v989, %v2942
        %v2959 = vadd.f32 %v990, %v2945
        %v2960 = vadd.f32 %v991, %v2950
        %v2961 = vadd.f32 %v992, %v2953
        %v2962 = vlaneseq
        %v2963 = vshrl.u32 %v2962, 7
        %v2964 = vsub.s32 0, %v2963
        %v2965 = vrot.slane %v995, %v2964
        %v2966 = vadd.f32 %v2956, %v2965
        %v2967 = vadd.f32 %v2957, %v2965
        %v2968 = vadd.f32 %v2958, %v2965
        %v2969 = vadd.f32 %v2959, %v2965
        %v2970 = vadd.f32 %v2960, %v2965
        %v2971 = vadd.f32 %v2961, %v2965
        %2972 = vadd.xlane.f32.xlu0 %v2966
        %v2973 = vpop.xlane.xlu0 %2972
        %2974 = vadd.xlane.f32.xlu0 %v2967
        %v2975 = vpop.xlane.xlu0 %2974
        %2976 = vadd.xlane.f32.xlu0 %v2968
        %v2977 = vpop.xlane.xlu0 %2976
        %2978 = vadd.xlane.f32.xlu0 %v2969
        %v2979 = vpop.xlane.xlu0 %2978
        %2980 = vadd.xlane.f32.xlu0 %v2970
        %v2981 = vpop.xlane.xlu0 %2980
        %2982 = vadd.xlane.f32.xlu0 %v2971
        %v2983 = vpop.xlane.xlu0 %2982
        %v2984 = vmul.f32 %v2973, %v1011
        %v2985 = vmul.f32 %v2975, %v1011
        %v2986 = vmul.f32 %v2977, %v1011
        %v2987 = vmul.f32 %v2979, %v1011
        %v2988 = vmul.f32 %v2981, %v1011
        %v2989 = vmul.f32 %v2983, %v1011
        %v2990 = vsub.f32 %v2966, %v2984
        %v2991 = vsub.f32 %v2967, %v2985
        %v2992 = vsub.f32 %v2968, %v2986
        %v2993 = vsub.f32 %v2969, %v2987
        %v2994 = vsub.f32 %v2970, %v2988
        %v2995 = vsub.f32 %v2971, %v2989
        %v2996 = vmul.f32 %v2990, %v2990
        %v2997 = vmul.f32 %v2991, %v2991
        %v2998 = vmul.f32 %v2992, %v2992
        %v2999 = vmul.f32 %v2993, %v2993
        %v3000 = vmul.f32 %v2994, %v2994
        %v3001 = vmul.f32 %v2995, %v2995
        %3002 = vadd.xlane.f32.xlu0 %v2996
        %v3003 = vpop.xlane.xlu0 %3002
        %3004 = vadd.xlane.f32.xlu0 %v2997
        %v3005 = vpop.xlane.xlu0 %3004
        %3006 = vadd.xlane.f32.xlu0 %v2998
        %v3007 = vpop.xlane.xlu0 %3006
        %3008 = vadd.xlane.f32.xlu0 %v2999
        %v3009 = vpop.xlane.xlu0 %3008
        %3010 = vadd.xlane.f32.xlu0 %v3000
        %v3011 = vpop.xlane.xlu0 %3010
        %3012 = vadd.xlane.f32.xlu0 %v3001
        %v3013 = vpop.xlane.xlu0 %3012
        %v3014 = vmul.f32 %v3003, %v1011
        %v3015 = vmul.f32 %v3005, %v1011
        %v3016 = vmul.f32 %v3007, %v1011
        %v3017 = vmul.f32 %v3009, %v1011
        %v3018 = vmul.f32 %v3011, %v1011
        %v3019 = vmul.f32 %v3013, %v1011
        %v3020 = vadd.f32 %v3014, 1e-05
        %v3021 = vadd.f32 %v3015, 1e-05
        %v3022 = vadd.f32 %v3016, 1e-05
        %v3023 = vadd.f32 %v3017, 1e-05
        %v3024 = vadd.f32 %v3018, 1e-05
        %v3025 = vadd.f32 %v3019, 1e-05
        %v3026 = vrsqrt.pop %v3020
        %v3027 = vrsqrt.pop %v3021
        %v3028 = vrsqrt.pop %v3022
        %v3029 = vrsqrt.pop %v3023
        %v3030 = vrsqrt.pop %v3024
        %v3031 = vrsqrt.pop %v3025
        %v3032 = vmul.f32 %v2990, %v3026
        %v3033 = vmul.f32 %v2991, %v3027
        %v3034 = vmul.f32 %v2992, %v3028
        %v3035 = vmul.f32 %v2993, %v3029
        %v3036 = vmul.f32 %v2994, %v3030
        %v3037 = vmul.f32 %v2995, %v3031
        %v3038 = vlaneseq
        %v3039 = vshrl.u32 %v3038, 7
        %v3040 = vsub.s32 0, %v3039
        %v3041 = vrot.slane %v996, %v3040
        %v3042 = vmul.f32 %v3032, %v3041
        %v3043 = vmul.f32 %v3033, %v3041
        %v3044 = vmul.f32 %v3034, %v3041
        %v3045 = vmul.f32 %v3035, %v3041
        %v3046 = vmul.f32 %v3036, %v3041
        %v3047 = vmul.f32 %v3037, %v3041
        %v3048 = vlaneseq
        %v3049 = vshrl.u32 %v3048, 7
        %v3050 = vsub.s32 0, %v3049
        %v3051 = vrot.slane %v997, %v3050
        %v3052 = vadd.f32 %v3042, %v3051
        %v3053 = vadd.f32 %v3043, %v3051
        %v3054 = vadd.f32 %v3044, %v3051
        %v3055 = vadd.f32 %v3045, %v3051
        %v3056 = vadd.f32 %v3046, %v3051
        %v3057 = vadd.f32 %v3047, %v3051
        %v3058 = vpack.c.bf16 %v3053, %v3052
        %v3059 = vpack.c.bf16 %v3055, %v3054
        %v3060 = vpack.c.bf16 %v3057, %v3056
        %v3061 = vld [vmem:[%s687] sm:$0xff]
        %v3062 = vld [vmem:[%s687 + $0x8] sm:$0xff]
        %v3063 = vld [vmem:[%s687 + $0x10] sm:$0xff]
        %v3064 = vld [vmem:[%s687 + $0x18] sm:$0xff]
        %v3065 = vld [vmem:[%s687 + $0x20] sm:$0xff]
        %v3066 = vld [vmem:[%s687 + $0x28] sm:$0xff]
        %v3067 = vld [vmem:[%s687 + $0x30] sm:$0xff]
        %v3068 = vld [vmem:[%s687 + $0x38] sm:$0xff]
        %v3069 = vld [vmem:[%s687 + $0x40] sm:$0xff]
        %v3070 = vld [vmem:[%s687 + $0x48] sm:$0xff]
        %v3071 = vld [vmem:[%s687 + $0x50] sm:$0xff]
        %v3072 = vld [vmem:[%s687 + $0x58] sm:$0xff]
        %v3073 = vld [vmem:[%s687 + $0x60] sm:$0xff]
        %v3074 = vld [vmem:[%s687 + $0x68] sm:$0xff]
        %v3075 = vld [vmem:[%s687 + $0x70] sm:$0xff]
        %v3076 = vld [vmem:[%s687 + $0x78] sm:$0xff]
        %v3077 = vld [vmem:[%s687 + $0x80] sm:$0xff]
        %v3078 = vld [vmem:[%s687 + $0x88] sm:$0xff]
        %v3079 = vld [vmem:[%s687 + $0x90] sm:$0xff]
        %v3080 = vld [vmem:[%s687 + $0x98] sm:$0xff]
        %v3081 = vld [vmem:[%s687 + $0xa0] sm:$0xff]
        %v3082 = vld [vmem:[%s687 + $0xa8] sm:$0xff]
        %v3083 = vld [vmem:[%s687 + $0xb0] sm:$0xff]
        %v3084 = vld [vmem:[%s687 + $0xb8] sm:$0xff]
        %v3085 = vld [vmem:[%s687 + $0xc0] sm:$0xff]
        %v3086 = vld [vmem:[%s687 + $0xc8] sm:$0xff]
        %v3087 = vld [vmem:[%s687 + $0xd0] sm:$0xff]
        %v3088 = vld [vmem:[%s687 + $0xd8] sm:$0xff]
        %v3089 = vld [vmem:[%s687 + $0xe0] sm:$0xff]
        %v3090 = vld [vmem:[%s687 + $0xe8] sm:$0xff]
        %v3091 = vld [vmem:[%s687 + $0xf0] sm:$0xff]
        %v3092 = vld [vmem:[%s687 + $0xf8] sm:$0xff]
        %v3093 = vld [vmem:[%s780] sm:$0xf]
        %v3095 = vlaneseq
        %v3096 = vshrl.u32 %v3095, 7
        %v3097 = vsub.s32 0, %v3096
        %v3098 = vrot.slane %v3093, %v3097
        %v3099 = vlaneseq
        %v3100 = vshrl.u32 %v3099, 7
        %v3101 = vsub.s32 1, %v3100
        %v3102 = vrot.slane %v3093, %v3101
        %v3103 = vlaneseq
        %v3104 = vshrl.u32 %v3103, 7
        %v3105 = vsub.s32 2, %v3104
        %v3106 = vrot.slane %v3093, %v3105
        %v3107 = vlaneseq
        %v3108 = vshrl.u32 %v3107, 7
        %v3109 = vsub.s32 3, %v3108
        %v3110 = vrot.slane %v3093, %v3109
        %v3147 = vunpack.c.l.b16 %v3061
        %v3148 = vunpack.c.h.b16 %v3061
        %v3149 = vunpack.c.l.b16 %v3062
        %v3150 = vunpack.c.h.b16 %v3062
        %v3151 = vunpack.c.l.b16 %v3063
        %v3152 = vunpack.c.h.b16 %v3063
        %v3153 = vunpack.c.l.b16 %v3064
        %v3154 = vunpack.c.h.b16 %v3064
        %v3155 = vunpack.c.l.b16 %v3065
        %v3156 = vunpack.c.h.b16 %v3065
        %v3157 = vunpack.c.l.b16 %v3066
        %v3158 = vunpack.c.h.b16 %v3066
        %v3159 = vunpack.c.l.b16 %v3067
        %v3160 = vunpack.c.h.b16 %v3067
        %v3161 = vunpack.c.l.b16 %v3068
        %v3162 = vunpack.c.h.b16 %v3068
        %v3163 = vunpack.c.l.b16 %v3069
        %v3164 = vunpack.c.h.b16 %v3069
        %v3165 = vunpack.c.l.b16 %v3070
        %v3166 = vunpack.c.h.b16 %v3070
        %v3167 = vunpack.c.l.b16 %v3071
        %v3168 = vunpack.c.h.b16 %v3071
        %v3169 = vunpack.c.l.b16 %v3072
        %v3170 = vunpack.c.h.b16 %v3072
        %v3171 = vunpack.c.l.b16 %v3073
        %v3172 = vunpack.c.h.b16 %v3073
        %v3173 = vunpack.c.l.b16 %v3074
        %v3174 = vunpack.c.h.b16 %v3074
        %v3175 = vunpack.c.l.b16 %v3075
        %v3176 = vunpack.c.h.b16 %v3075
        %v3177 = vunpack.c.l.b16 %v3076
        %v3178 = vunpack.c.h.b16 %v3076
        %v3179 = vunpack.c.l.b16 %v3077
        %v3180 = vunpack.c.h.b16 %v3077
        %v3181 = vunpack.c.l.b16 %v3078
        %v3182 = vunpack.c.h.b16 %v3078
        %v3183 = vunpack.c.l.b16 %v3079
        %v3184 = vunpack.c.h.b16 %v3079
        %v3185 = vunpack.c.l.b16 %v3080
        %v3186 = vunpack.c.h.b16 %v3080
        %v3187 = vunpack.c.l.b16 %v3081
        %v3188 = vunpack.c.h.b16 %v3081
        %v3189 = vunpack.c.l.b16 %v3082
        %v3190 = vunpack.c.h.b16 %v3082
        %v3191 = vunpack.c.l.b16 %v3083
        %v3192 = vunpack.c.h.b16 %v3083
        %v3193 = vunpack.c.l.b16 %v3084
        %v3194 = vunpack.c.h.b16 %v3084
        %v3195 = vunpack.c.l.b16 %v3085
        %v3196 = vunpack.c.h.b16 %v3085
        %v3197 = vunpack.c.l.b16 %v3086
        %v3198 = vunpack.c.h.b16 %v3086
        %v3199 = vunpack.c.l.b16 %v3087
        %v3200 = vunpack.c.h.b16 %v3087
        %v3201 = vunpack.c.l.b16 %v3088
        %v3202 = vunpack.c.h.b16 %v3088
        %v3203 = vunpack.c.l.b16 %v3089
        %v3204 = vunpack.c.h.b16 %v3089
        %v3205 = vunpack.c.l.b16 %v3090
        %v3206 = vunpack.c.h.b16 %v3090
        %v3207 = vunpack.c.l.b16 %v3091
        %v3208 = vunpack.c.h.b16 %v3091
        %v3209 = vunpack.c.l.b16 %v3092
        %v3210 = vunpack.c.h.b16 %v3092
        %v3211 = vpack.c.b16 %v3151, %v3147
        %v3212 = vpack.c.b16 %v3152, %v3148
        %v3213 = vpack.c.b16 %v3153, %v3149
        %v3214 = vpack.c.b16 %v3154, %v3150
        %v3215 = vpack.c.b16 %v3159, %v3155
        %v3216 = vpack.c.b16 %v3160, %v3156
        %v3217 = vpack.c.b16 %v3161, %v3157
        %v3218 = vpack.c.b16 %v3162, %v3158
        %v3219 = vpack.c.b16 %v3167, %v3163
        %v3220 = vpack.c.b16 %v3168, %v3164
        %v3221 = vpack.c.b16 %v3169, %v3165
        %v3222 = vpack.c.b16 %v3170, %v3166
        %v3223 = vpack.c.b16 %v3175, %v3171
        %v3224 = vpack.c.b16 %v3176, %v3172
        %v3225 = vpack.c.b16 %v3177, %v3173
        %v3226 = vpack.c.b16 %v3178, %v3174
        %v3227 = vpack.c.b16 %v3183, %v3179
        %v3228 = vpack.c.b16 %v3184, %v3180
        %v3229 = vpack.c.b16 %v3185, %v3181
        %v3230 = vpack.c.b16 %v3186, %v3182
        %v3231 = vpack.c.b16 %v3191, %v3187
        %v3232 = vpack.c.b16 %v3192, %v3188
        %v3233 = vpack.c.b16 %v3193, %v3189
        %v3234 = vpack.c.b16 %v3194, %v3190
        %v3235 = vpack.c.b16 %v3199, %v3195
        %v3236 = vpack.c.b16 %v3200, %v3196
        %v3237 = vpack.c.b16 %v3201, %v3197
        %v3238 = vpack.c.b16 %v3202, %v3198
        %v3239 = vpack.c.b16 %v3207, %v3203
        %v3240 = vpack.c.b16 %v3208, %v3204
        %v3241 = vpack.c.b16 %v3209, %v3205
        %v3242 = vpack.c.b16 %v3210, %v3206
        %3275 = vmatprep.subr.bf16.mxu0 %v3212
        %3276 = vmatpush1.bf16.msra.mxu0 %v3211
        %3277 = vmatprep.subr.bf16.mxu0 %v3216
        %3278 = vmatpush1.bf16.msra.mxu0 %v3215
        %3279 = vmatprep.subr.bf16.mxu0 %v3220
        %3280 = vmatpush1.bf16.msra.mxu0 %v3219
        %3281 = vmatprep.subr.bf16.mxu0 %v3224
        %3282 = vmatpush1.bf16.msra.mxu0 %v3223
        %3283 = vmatprep.subr.bf16.mxu0 %v3228
        %3284 = vmatpush1.bf16.msra.mxu0 %v3227
        %3285 = vmatprep.subr.bf16.mxu0 %v3232
        %3286 = vmatpush1.bf16.msra.mxu0 %v3231
        %3287 = vmatprep.subr.bf16.mxu0 %v3236
        %3288 = vmatpush1.bf16.msra.mxu0 %v3235
        %3289 = vmatprep.subr.bf16.mxu0 %v3240
        %3290 = vmatpush1.bf16.msra.mxu0 %v3239
        %3291 = vmatprep.subr.bf16.mxu0 0
        %3292 = vmatpush1.bf16.msra.mxu0 0
        %3293 = vmatprep.subr.bf16.mxu0 0
        %3294 = vmatpush1.bf16.msra.mxu0 0
        %3295 = vmatprep.subr.bf16.mxu0 0
        %3296 = vmatpush1.bf16.msra.mxu0 0
        %3297 = vmatprep.subr.bf16.mxu0 0
        %3298 = vmatpush1.bf16.msra.mxu0 0
        %3299 = vmatprep.subr.bf16.mxu0 0
        %3300 = vmatpush1.bf16.msra.mxu0 0
        %3301 = vmatprep.subr.bf16.mxu0 0
        %3302 = vmatpush1.bf16.msra.mxu0 0
        %3303 = vmatprep.subr.bf16.mxu0 0
        %3304 = vmatpush1.bf16.msra.mxu0 0
        %3305 = vmatprep.subr.bf16.mxu0 0
        %3306 = vmatpush1.bf16.msra.mxu0 0
        %3307 = vmatprep.mubr.bf16.mxu0 0
        %3308 = vmatmul.mubr.bf16.gmra.mrb[0].mxu0 %v3058
        %v3309 = vpop.f32.mrb[0].mxu0
        %v3310 = vadd.f32 %v3098, %v3309
        %v3311 = vpop.f32.mrb[0].mxu0
        %v3312 = vadd.f32 %v3102, %v3311
        %v3313 = vpop.f32.mrb[0].mxu0
        %v3314 = vadd.f32 %v3098, %v3313
        %v3315 = vpop.f32.mrb[0].mxu0
        %v3316 = vadd.f32 %v3102, %v3315
        %3317 = vmatprep.mubr.bf16.mxu0 0
        %3318 = vmatmul.mubr.bf16.gmra.mrb[0].mxu0 %v3059
        %v3319 = vpop.f32.mrb[0].mxu0
        %v3320 = vadd.f32 %v3098, %v3319
        %v3321 = vpop.f32.mrb[0].mxu0
        %v3322 = vadd.f32 %v3102, %v3321
        %v3323 = vpop.f32.mrb[0].mxu0
        %v3324 = vadd.f32 %v3098, %v3323
        %v3325 = vpop.f32.mrb[0].mxu0
        %v3326 = vadd.f32 %v3102, %v3325
        %3327 = vmatprep.mubr.bf16.mxu0 0
        %3328 = vmatmul.mubr.bf16.gmra.mrb[0].mxu0 %v3060
        %v3329 = vpop.f32.mrb[0].mxu0
        %v3330 = vadd.f32 %v3098, %v3329
        %v3331 = vpop.f32.mrb[0].mxu0
        %v3332 = vadd.f32 %v3102, %v3331
        %v3333 = vpop.f32.mrb[0].mxu0
        %v3334 = vadd.f32 %v3098, %v3333
        %v3335 = vpop.f32.mrb[0].mxu0
        %v3336 = vadd.f32 %v3102, %v3335
        %3337 = vdwg.mxu0
        %3338 = vmatprep.subr.bf16.mxu0 %v3214
        %3339 = vmatpush1.bf16.msra.mxu0 %v3213
        %3340 = vmatprep.subr.bf16.mxu0 %v3218
        %3341 = vmatpush1.bf16.msra.mxu0 %v3217
        %3342 = vmatprep.subr.bf16.mxu0 %v3222
        %3343 = vmatpush1.bf16.msra.mxu0 %v3221
        %3344 = vmatprep.subr.bf16.mxu0 %v3226
        %3345 = vmatpush1.bf16.msra.mxu0 %v3225
        %3346 = vmatprep.subr.bf16.mxu0 %v3230
        %3347 = vmatpush1.bf16.msra.mxu0 %v3229
        %3348 = vmatprep.subr.bf16.mxu0 %v3234
        %3349 = vmatpush1.bf16.msra.mxu0 %v3233
        %3350 = vmatprep.subr.bf16.mxu0 %v3238
        %3351 = vmatpush1.bf16.msra.mxu0 %v3237
        %3352 = vmatprep.subr.bf16.mxu0 %v3242
        %3353 = vmatpush1.bf16.msra.mxu0 %v3241
        %3354 = vmatprep.subr.bf16.mxu0 0
        %3355 = vmatpush1.bf16.msra.mxu0 0
        %3356 = vmatprep.subr.bf16.mxu0 0
        %3357 = vmatpush1.bf16.msra.mxu0 0
        %3358 = vmatprep.subr.bf16.mxu0 0
        %3359 = vmatpush1.bf16.msra.mxu0 0
        %3360 = vmatprep.subr.bf16.mxu0 0
        %3361 = vmatpush1.bf16.msra.mxu0 0
        %3362 = vmatprep.subr.bf16.mxu0 0
        %3363 = vmatpush1.bf16.msra.mxu0 0
        %3364 = vmatprep.subr.bf16.mxu0 0
        %3365 = vmatpush1.bf16.msra.mxu0 0
        %3366 = vmatprep.subr.bf16.mxu0 0
        %3367 = vmatpush1.bf16.msra.mxu0 0
        %3368 = vmatprep.subr.bf16.mxu0 0
        %3369 = vmatpush1.bf16.msra.mxu0 0
        %3370 = vmatprep.mubr.bf16.mxu0 0
        %3371 = vmatmul.mubr.bf16.gmra.mrb[0].mxu0 %v3058
        %v3372 = vpop.f32.mrb[0].mxu0
        %v3373 = vadd.f32 %v3106, %v3372
        %v3374 = vpop.f32.mrb[0].mxu0
        %v3375 = vadd.f32 %v3110, %v3374
        %v3376 = vpop.f32.mrb[0].mxu0
        %v3377 = vadd.f32 %v3106, %v3376
        %v3378 = vpop.f32.mrb[0].mxu0
        %v3379 = vadd.f32 %v3110, %v3378
        %3380 = vmatprep.mubr.bf16.mxu0 0
        %3381 = vmatmul.mubr.bf16.gmra.mrb[0].mxu0 %v3059
        %v3382 = vpop.f32.mrb[0].mxu0
        %v3383 = vadd.f32 %v3106, %v3382
        %v3384 = vpop.f32.mrb[0].mxu0
        %v3385 = vadd.f32 %v3110, %v3384
        %v3386 = vpop.f32.mrb[0].mxu0
        %v3387 = vadd.f32 %v3106, %v3386
        %v3388 = vpop.f32.mrb[0].mxu0
        %v3389 = vadd.f32 %v3110, %v3388
        %3390 = vmatprep.mubr.bf16.mxu0 0
        %3391 = vmatmul.mubr.bf16.gmra.mrb[0].mxu0 %v3060
        %v3392 = vpop.f32.mrb[0].mxu0
        %v3393 = vadd.f32 %v3106, %v3392
        %v3394 = vpop.f32.mrb[0].mxu0
        %v3395 = vadd.f32 %v3110, %v3394
        %v3396 = vpop.f32.mrb[0].mxu0
        %v3397 = vadd.f32 %v3106, %v3396
        %v3398 = vpop.f32.mrb[0].mxu0
        %v3399 = vadd.f32 %v3110, %v3398
        %3400 = vdwg.mxu0
        %v3401 = vmul.f32 %v3310, 1.702
        %v3402 = vmul.f32 %v3312, 1.702
        %v3403 = vmul.f32 %v3373, 1.702
        %v3404 = vmul.f32 %v3375, 1.702
        %v3405 = vmul.f32 %v3314, 1.702
        %v3406 = vmul.f32 %v3316, 1.702
        %v3407 = vmul.f32 %v3377, 1.702
        %v3408 = vmul.f32 %v3379, 1.702
        %v3409 = vmul.f32 %v3320, 1.702
        %v3410 = vmul.f32 %v3322, 1.702
        %v3411 = vmul.f32 %v3383, 1.702
        %v3412 = vmul.f32 %v3385, 1.702
        %v3413 = vmul.f32 %v3324, 1.702
        %v3414 = vmul.f32 %v3326, 1.702
        %v3415 = vmul.f32 %v3387, 1.702
        %v3416 = vmul.f32 %v3389, 1.702
        %v3417 = vmul.f32 %v3330, 1.702
        %v3418 = vmul.f32 %v3332, 1.702
        %v3419 = vmul.f32 %v3393, 1.702
        %v3420 = vmul.f32 %v3395, 1.702
        %v3421 = vmul.f32 %v3334, 1.702
        %v3422 = vmul.f32 %v3336, 1.702
        %v3423 = vmul.f32 %v3397, 1.702
        %v3424 = vmul.f32 %v3399, 1.702
        %v3425 = vxor.u32 %v3401, 2147483648
        %v3426 = vxor.u32 %v3402, 2147483648
        %v3427 = vxor.u32 %v3403, 2147483648
        %v3428 = vxor.u32 %v3404, 2147483648
        %v3429 = vxor.u32 %v3405, 2147483648
        %v3430 = vxor.u32 %v3406, 2147483648
        %v3431 = vxor.u32 %v3407, 2147483648
        %v3432 = vxor.u32 %v3408, 2147483648
        %v3433 = vxor.u32 %v3409, 2147483648
        %v3434 = vxor.u32 %v3410, 2147483648
        %v3435 = vxor.u32 %v3411, 2147483648
        %v3436 = vxor.u32 %v3412, 2147483648
        %v3437 = vxor.u32 %v3413, 2147483648
        %v3438 = vxor.u32 %v3414, 2147483648
        %v3439 = vxor.u32 %v3415, 2147483648
        %v3440 = vxor.u32 %v3416, 2147483648
        %v3441 = vxor.u32 %v3417, 2147483648
        %v3442 = vxor.u32 %v3418, 2147483648
        %v3443 = vxor.u32 %v3419, 2147483648
        %v3444 = vxor.u32 %v3420, 2147483648
        %v3445 = vxor.u32 %v3421, 2147483648
        %v3446 = vxor.u32 %v3422, 2147483648
        %v3447 = vxor.u32 %v3423, 2147483648
        %v3448 = vxor.u32 %v3424, 2147483648
        %v3449 = vmul.f32 %v3425, 1.442695
        %v3450 = vpow.pop %v3449
        %v3451 = vmul.f32 %v3426, 1.442695
        %v3452 = vpow.pop %v3451
        %v3453 = vmul.f32 %v3427, 1.442695
        %v3454 = vpow.pop %v3453
        %v3455 = vmul.f32 %v3428, 1.442695
        %v3456 = vpow.pop %v3455
        %v3457 = vmul.f32 %v3429, 1.442695
        %v3458 = vpow.pop %v3457
        %v3459 = vmul.f32 %v3430, 1.442695
        %v3460 = vpow.pop %v3459
        %v3461 = vmul.f32 %v3431, 1.442695
        %v3462 = vpow.pop %v3461
        %v3463 = vmul.f32 %v3432, 1.442695
        %v3464 = vpow.pop %v3463
        %v3465 = vmul.f32 %v3433, 1.442695
        %v3466 = vpow.pop %v3465
        %v3467 = vmul.f32 %v3434, 1.442695
        %v3468 = vpow.pop %v3467
        %v3469 = vmul.f32 %v3435, 1.442695
        %v3470 = vpow.pop %v3469
        %v3471 = vmul.f32 %v3436, 1.442695
        %v3472 = vpow.pop %v3471
        %v3473 = vmul.f32 %v3437, 1.442695
        %v3474 = vpow.pop %v3473
        %v3475 = vmul.f32 %v3438, 1.442695
        %v3476 = vpow.pop %v3475
        %v3477 = vmul.f32 %v3439, 1.442695
        %v3478 = vpow.pop %v3477
        %v3479 = vmul.f32 %v3440, 1.442695
        %v3480 = vpow.pop %v3479
        %v3481 = vmul.f32 %v3441, 1.442695
        %v3482 = vpow.pop %v3481
        %v3483 = vmul.f32 %v3442, 1.442695
        %v3484 = vpow.pop %v3483
        %v3485 = vmul.f32 %v3443, 1.442695
        %v3486 = vpow.pop %v3485
        %v3487 = vmul.f32 %v3444, 1.442695
        %v3488 = vpow.pop %v3487
        %v3489 = vmul.f32 %v3445, 1.442695
        %v3490 = vpow.pop %v3489
        %v3491 = vmul.f32 %v3446, 1.442695
        %v3492 = vpow.pop %v3491
        %v3493 = vmul.f32 %v3447, 1.442695
        %v3494 = vpow.pop %v3493
        %v3495 = vmul.f32 %v3448, 1.442695
        %v3496 = vpow.pop %v3495
        %v3497 = vadd.f32 %v3450, 1.0
        %v3498 = vadd.f32 %v3452, 1.0
        %v3499 = vadd.f32 %v3454, 1.0
        %v3500 = vadd.f32 %v3456, 1.0
        %v3501 = vadd.f32 %v3458, 1.0
        %v3502 = vadd.f32 %v3460, 1.0
        %v3503 = vadd.f32 %v3462, 1.0
        %v3504 = vadd.f32 %v3464, 1.0
        %v3505 = vadd.f32 %v3466, 1.0
        %v3506 = vadd.f32 %v3468, 1.0
        %v3507 = vadd.f32 %v3470, 1.0
        %v3508 = vadd.f32 %v3472, 1.0
        %v3509 = vadd.f32 %v3474, 1.0
        %v3510 = vadd.f32 %v3476, 1.0
        %v3511 = vadd.f32 %v3478, 1.0
        %v3512 = vadd.f32 %v3480, 1.0
        %v3513 = vadd.f32 %v3482, 1.0
        %v3514 = vadd.f32 %v3484, 1.0
        %v3515 = vadd.f32 %v3486, 1.0
        %v3516 = vadd.f32 %v3488, 1.0
        %v3517 = vadd.f32 %v3490, 1.0
        %v3518 = vadd.f32 %v3492, 1.0
        %v3519 = vadd.f32 %v3494, 1.0
        %v3520 = vadd.f32 %v3496, 1.0
        %v3521 = vrcp.pop %v3497
        %v3522 = vmul.f32 1.0, %v3521
        %v3523 = vrcp.pop %v3498
        %v3524 = vmul.f32 1.0, %v3523
        %v3525 = vrcp.pop %v3499
        %v3526 = vmul.f32 1.0, %v3525
        %v3527 = vrcp.pop %v3500
        %v3528 = vmul.f32 1.0, %v3527
        %v3529 = vrcp.pop %v3501
        %v3530 = vmul.f32 1.0, %v3529
        %v3531 = vrcp.pop %v3502
        %v3532 = vmul.f32 1.0, %v3531
        %v3533 = vrcp.pop %v3503
        %v3534 = vmul.f32 1.0, %v3533
        %v3535 = vrcp.pop %v3504
        %v3536 = vmul.f32 1.0, %v3535
        %v3537 = vrcp.pop %v3505
        %v3538 = vmul.f32 1.0, %v3537
        %v3539 = vrcp.pop %v3506
        %v3540 = vmul.f32 1.0, %v3539
        %v3541 = vrcp.pop %v3507
        %v3542 = vmul.f32 1.0, %v3541
        %v3543 = vrcp.pop %v3508
        %v3544 = vmul.f32 1.0, %v3543
        %v3545 = vrcp.pop %v3509
        %v3546 = vmul.f32 1.0, %v3545
        %v3547 = vrcp.pop %v3510
        %v3548 = vmul.f32 1.0, %v3547
        %v3549 = vrcp.pop %v3511
        %v3550 = vmul.f32 1.0, %v3549
        %v3551 = vrcp.pop %v3512
        %v3552 = vmul.f32 1.0, %v3551
        %v3553 = vrcp.pop %v3513
        %v3554 = vmul.f32 1.0, %v3553
        %v3555 = vrcp.pop %v3514
        %v3556 = vmul.f32 1.0, %v3555
        %v3557 = vrcp.pop %v3515
        %v3558 = vmul.f32 1.0, %v3557
        %v3559 = vrcp.pop %v3516
        %v3560 = vmul.f32 1.0, %v3559
        %v3561 = vrcp.pop %v3517
        %v3562 = vmul.f32 1.0, %v3561
        %v3563 = vrcp.pop %v3518
        %v3564 = vmul.f32 1.0, %v3563
        %v3565 = vrcp.pop %v3519
        %v3566 = vmul.f32 1.0, %v3565
        %v3567 = vrcp.pop %v3520
        %v3568 = vmul.f32 1.0, %v3567
        %v3569 = vmul.f32 %v3310, %v3522
        %v3570 = vmul.f32 %v3312, %v3524
        %v3571 = vmul.f32 %v3373, %v3526
        %v3572 = vmul.f32 %v3375, %v3528
        %v3573 = vmul.f32 %v3314, %v3530
        %v3574 = vmul.f32 %v3316, %v3532
        %v3575 = vmul.f32 %v3377, %v3534
        %v3576 = vmul.f32 %v3379, %v3536
        %v3577 = vmul.f32 %v3320, %v3538
        %v3578 = vmul.f32 %v3322, %v3540
        %v3579 = vmul.f32 %v3383, %v3542
        %v3580 = vmul.f32 %v3385, %v3544
        %v3581 = vmul.f32 %v3324, %v3546
        %v3582 = vmul.f32 %v3326, %v3548
        %v3583 = vmul.f32 %v3387, %v3550
        %v3584 = vmul.f32 %v3389, %v3552
        %v3585 = vmul.f32 %v3330, %v3554
        %v3586 = vmul.f32 %v3332, %v3556
        %v3587 = vmul.f32 %v3393, %v3558
        %v3588 = vmul.f32 %v3395, %v3560
        %v3589 = vmul.f32 %v3334, %v3562
        %v3590 = vmul.f32 %v3336, %v3564
        %v3591 = vmul.f32 %v3397, %v3566
        %v3592 = vmul.f32 %v3399, %v3568
        %v3593 = vpack.c.bf16 %v3573, %v3569
        %v3594 = vpack.c.bf16 %v3574, %v3570
        %v3595 = vpack.c.bf16 %v3575, %v3571
        %v3596 = vpack.c.bf16 %v3576, %v3572
        %v3597 = vpack.c.bf16 %v3581, %v3577
        %v3598 = vpack.c.bf16 %v3582, %v3578
        %v3599 = vpack.c.bf16 %v3583, %v3579
        %v3600 = vpack.c.bf16 %v3584, %v3580
        %v3601 = vpack.c.bf16 %v3589, %v3585
        %v3602 = vpack.c.bf16 %v3590, %v3586
        %v3603 = vpack.c.bf16 %v3591, %v3587
        %v3604 = vpack.c.bf16 %v3592, %v3588
        %v3605 = vld [vmem:[%s696] sm:$0xf]
        %v3606 = vld [vmem:[%s696 + $0x4] sm:$0xf]
        %v3607 = vld [vmem:[%s696 + $0x8] sm:$0xf]
        %v3608 = vld [vmem:[%s696 + $0xc] sm:$0xf]
        %v3609 = vld [vmem:[%s696 + $0x10] sm:$0xf]
        %v3610 = vld [vmem:[%s696 + $0x14] sm:$0xf]
        %v3611 = vld [vmem:[%s696 + $0x18] sm:$0xf]
        %v3612 = vld [vmem:[%s696 + $0x1c] sm:$0xf]
        %v3613 = vld [vmem:[%s696 + $0x20] sm:$0xf]
        %v3614 = vld [vmem:[%s696 + $0x24] sm:$0xf]
        %v3615 = vld [vmem:[%s696 + $0x28] sm:$0xf]
        %v3616 = vld [vmem:[%s696 + $0x2c] sm:$0xf]
        %v3617 = vld [vmem:[%s696 + $0x30] sm:$0xf]
        %v3618 = vld [vmem:[%s696 + $0x34] sm:$0xf]
        %v3619 = vld [vmem:[%s696 + $0x38] sm:$0xf]
        %v3620 = vld [vmem:[%s696 + $0x3c] sm:$0xf]
        %v3621 = vld [vmem:[%s696 + $0x40] sm:$0xf]
        %v3622 = vld [vmem:[%s696 + $0x44] sm:$0xf]
        %v3623 = vld [vmem:[%s696 + $0x48] sm:$0xf]
        %v3624 = vld [vmem:[%s696 + $0x4c] sm:$0xf]
        %v3625 = vld [vmem:[%s696 + $0x50] sm:$0xf]
        %v3626 = vld [vmem:[%s696 + $0x54] sm:$0xf]
        %v3627 = vld [vmem:[%s696 + $0x58] sm:$0xf]
        %v3628 = vld [vmem:[%s696 + $0x5c] sm:$0xf]
        %v3629 = vld [vmem:[%s696 + $0x60] sm:$0xf]
        %v3630 = vld [vmem:[%s696 + $0x64] sm:$0xf]
        %v3631 = vld [vmem:[%s696 + $0x68] sm:$0xf]
        %v3632 = vld [vmem:[%s696 + $0x6c] sm:$0xf]
        %v3633 = vld [vmem:[%s696 + $0x70] sm:$0xf]
        %v3634 = vld [vmem:[%s696 + $0x74] sm:$0xf]
        %v3635 = vld [vmem:[%s696 + $0x78] sm:$0xf]
        %v3636 = vld [vmem:[%s696 + $0x7c] sm:$0xf]
        %v3637 = vld [vmem:[%s696 + $0x80] sm:$0xf]
        %v3638 = vld [vmem:[%s696 + $0x84] sm:$0xf]
        %v3639 = vld [vmem:[%s696 + $0x88] sm:$0xf]
        %v3640 = vld [vmem:[%s696 + $0x8c] sm:$0xf]
        %v3641 = vld [vmem:[%s696 + $0x90] sm:$0xf]
        %v3642 = vld [vmem:[%s696 + $0x94] sm:$0xf]
        %v3643 = vld [vmem:[%s696 + $0x98] sm:$0xf]
        %v3644 = vld [vmem:[%s696 + $0x9c] sm:$0xf]
        %v3645 = vld [vmem:[%s696 + $0xa0] sm:$0xf]
        %v3646 = vld [vmem:[%s696 + $0xa4] sm:$0xf]
        %v3647 = vld [vmem:[%s696 + $0xa8] sm:$0xf]
        %v3648 = vld [vmem:[%s696 + $0xac] sm:$0xf]
        %v3649 = vld [vmem:[%s696 + $0xb0] sm:$0xf]
        %v3650 = vld [vmem:[%s696 + $0xb4] sm:$0xf]
        %v3651 = vld [vmem:[%s696 + $0xb8] sm:$0xf]
        %v3652 = vld [vmem:[%s696 + $0xbc] sm:$0xf]
        %v3653 = vld [vmem:[%s696 + $0xc0] sm:$0xf]
        %v3654 = vld [vmem:[%s696 + $0xc4] sm:$0xf]
        %v3655 = vld [vmem:[%s696 + $0xc8] sm:$0xf]
        %v3656 = vld [vmem:[%s696 + $0xcc] sm:$0xf]
        %v3657 = vld [vmem:[%s696 + $0xd0] sm:$0xf]
        %v3658 = vld [vmem:[%s696 + $0xd4] sm:$0xf]
        %v3659 = vld [vmem:[%s696 + $0xd8] sm:$0xf]
        %v3660 = vld [vmem:[%s696 + $0xdc] sm:$0xf]
        %v3661 = vld [vmem:[%s696 + $0xe0] sm:$0xf]
        %v3662 = vld [vmem:[%s696 + $0xe4] sm:$0xf]
        %v3663 = vld [vmem:[%s696 + $0xe8] sm:$0xf]
        %v3664 = vld [vmem:[%s696 + $0xec] sm:$0xf]
        %v3665 = vld [vmem:[%s696 + $0xf0] sm:$0xf]
        %v3666 = vld [vmem:[%s696 + $0xf4] sm:$0xf]
        %v3667 = vld [vmem:[%s696 + $0xf8] sm:$0xf]
        %v3668 = vld [vmem:[%s696 + $0xfc] sm:$0xf]
        %v3733 = vunpack.c.l.b16 %v3605
        %v3734 = vunpack.c.l.b16 %v3606
        %v3735 = vunpack.c.l.b16 %v3607
        %v3736 = vunpack.c.l.b16 %v3608
        %v3737 = vunpack.c.l.b16 %v3609
        %v3738 = vunpack.c.l.b16 %v3610
        %v3739 = vunpack.c.l.b16 %v3611
        %v3740 = vunpack.c.l.b16 %v3612
        %v3741 = vunpack.c.l.b16 %v3613
        %v3742 = vunpack.c.l.b16 %v3614
        %v3743 = vunpack.c.l.b16 %v3615
        %v3744 = vunpack.c.l.b16 %v3616
        %v3745 = vunpack.c.l.b16 %v3617
        %v3746 = vunpack.c.l.b16 %v3618
        %v3747 = vunpack.c.l.b16 %v3619
        %v3748 = vunpack.c.l.b16 %v3620
        %v3749 = vunpack.c.l.b16 %v3621
        %v3750 = vunpack.c.l.b16 %v3622
        %v3751 = vunpack.c.l.b16 %v3623
        %v3752 = vunpack.c.l.b16 %v3624
        %v3753 = vunpack.c.l.b16 %v3625
        %v3754 = vunpack.c.l.b16 %v3626
        %v3755 = vunpack.c.l.b16 %v3627
        %v3756 = vunpack.c.l.b16 %v3628
        %v3757 = vunpack.c.l.b16 %v3629
        %v3758 = vunpack.c.l.b16 %v3630
        %v3759 = vunpack.c.l.b16 %v3631
        %v3760 = vunpack.c.l.b16 %v3632
        %v3761 = vunpack.c.l.b16 %v3633
        %v3762 = vunpack.c.l.b16 %v3634
        %v3763 = vunpack.c.l.b16 %v3635
        %v3764 = vunpack.c.l.b16 %v3636
        %v3765 = vunpack.c.l.b16 %v3637
        %v3766 = vunpack.c.l.b16 %v3638
        %v3767 = vunpack.c.l.b16 %v3639
        %v3768 = vunpack.c.l.b16 %v3640
        %v3769 = vunpack.c.l.b16 %v3641
        %v3770 = vunpack.c.l.b16 %v3642
        %v3771 = vunpack.c.l.b16 %v3643
        %v3772 = vunpack.c.l.b16 %v3644
        %v3773 = vunpack.c.l.b16 %v3645
        %v3774 = vunpack.c.l.b16 %v3646
        %v3775 = vunpack.c.l.b16 %v3647
        %v3776 = vunpack.c.l.b16 %v3648
        %v3777 = vunpack.c.l.b16 %v3649
        %v3778 = vunpack.c.l.b16 %v3650
        %v3779 = vunpack.c.l.b16 %v3651
        %v3780 = vunpack.c.l.b16 %v3652
        %v3781 = vunpack.c.l.b16 %v3653
        %v3782 = vunpack.c.l.b16 %v3654
        %v3783 = vunpack.c.l.b16 %v3655
        %v3784 = vunpack.c.l.b16 %v3656
        %v3785 = vunpack.c.l.b16 %v3657
        %v3786 = vunpack.c.l.b16 %v3658
        %v3787 = vunpack.c.l.b16 %v3659
        %v3788 = vunpack.c.l.b16 %v3660
        %v3789 = vunpack.c.l.b16 %v3661
        %v3790 = vunpack.c.l.b16 %v3662
        %v3791 = vunpack.c.l.b16 %v3663
        %v3792 = vunpack.c.l.b16 %v3664
        %v3793 = vunpack.c.l.b16 %v3665
        %v3794 = vunpack.c.l.b16 %v3666
        %v3795 = vunpack.c.l.b16 %v3667
        %v3796 = vunpack.c.l.b16 %v3668
        %v3797 = vpack.c.b16 %v3734, %v3733
        %v3798 = vpack.c.b16 %v3736, %v3735
        %v3799 = vpack.c.b16 %v3738, %v3737
        %v3800 = vpack.c.b16 %v3740, %v3739
        %v3801 = vpack.c.b16 %v3742, %v3741
        %v3802 = vpack.c.b16 %v3744, %v3743
        %v3803 = vpack.c.b16 %v3746, %v3745
        %v3804 = vpack.c.b16 %v3748, %v3747
        %v3805 = vpack.c.b16 %v3750, %v3749
        %v3806 = vpack.c.b16 %v3752, %v3751
        %v3807 = vpack.c.b16 %v3754, %v3753
        %v3808 = vpack.c.b16 %v3756, %v3755
        %v3809 = vpack.c.b16 %v3758, %v3757
        %v3810 = vpack.c.b16 %v3760, %v3759
        %v3811 = vpack.c.b16 %v3762, %v3761
        %v3812 = vpack.c.b16 %v3764, %v3763
        %v3813 = vpack.c.b16 %v3766, %v3765
        %v3814 = vpack.c.b16 %v3768, %v3767
        %v3815 = vpack.c.b16 %v3770, %v3769
        %v3816 = vpack.c.b16 %v3772, %v3771
        %v3817 = vpack.c.b16 %v3774, %v3773
        %v3818 = vpack.c.b16 %v3776, %v3775
        %v3819 = vpack.c.b16 %v3778, %v3777
        %v3820 = vpack.c.b16 %v3780, %v3779
        %v3821 = vpack.c.b16 %v3782, %v3781
        %v3822 = vpack.c.b16 %v3784, %v3783
        %v3823 = vpack.c.b16 %v3786, %v3785
        %v3824 = vpack.c.b16 %v3788, %v3787
        %v3825 = vpack.c.b16 %v3790, %v3789
        %v3826 = vpack.c.b16 %v3792, %v3791
        %v3827 = vpack.c.b16 %v3794, %v3793
        %v3828 = vpack.c.b16 %v3796, %v3795
        %3861 = vmatprep.subr.bf16.mxu0 0
        %3862 = vmatpush1.bf16.msra.mxu0 %v3797
        %3863 = vmatprep.subr.bf16.mxu0 0
        %3864 = vmatpush1.bf16.msra.mxu0 %v3798
        %3865 = vmatprep.subr.bf16.mxu0 0
        %3866 = vmatpush1.bf16.msra.mxu0 %v3799
        %3867 = vmatprep.subr.bf16.mxu0 0
        %3868 = vmatpush1.bf16.msra.mxu0 %v3800
        %3869 = vmatprep.subr.bf16.mxu0 0
        %3870 = vmatpush1.bf16.msra.mxu0 %v3801
        %3871 = vmatprep.subr.bf16.mxu0 0
        %3872 = vmatpush1.bf16.msra.mxu0 %v3802
        %3873 = vmatprep.subr.bf16.mxu0 0
        %3874 = vmatpush1.bf16.msra.mxu0 %v3803
        %3875 = vmatprep.subr.bf16.mxu0 0
        %3876 = vmatpush1.bf16.msra.mxu0 %v3804
        %3877 = vmatprep.subr.bf16.mxu0 0
        %3878 = vmatpush1.bf16.msra.mxu0 %v3805
        %3879 = vmatprep.subr.bf16.mxu0 0
        %3880 = vmatpush1.bf16.msra.mxu0 %v3806
        %3881 = vmatprep.subr.bf16.mxu0 0
        %3882 = vmatpush1.bf16.msra.mxu0 %v3807
        %3883 = vmatprep.subr.bf16.mxu0 0
        %3884 = vmatpush1.bf16.msra.mxu0 %v3808
        %3885 = vmatprep.subr.bf16.mxu0 0
        %3886 = vmatpush1.bf16.msra.mxu0 %v3809
        %3887 = vmatprep.subr.bf16.mxu0 0
        %3888 = vmatpush1.bf16.msra.mxu0 %v3810
        %3889 = vmatprep.subr.bf16.mxu0 0
        %3890 = vmatpush1.bf16.msra.mxu0 %v3811
        %3891 = vmatprep.subr.bf16.mxu0 0
        %3892 = vmatpush1.bf16.msra.mxu0 %v3812
        %3893 = vmatprep.mubr.bf16.mxu0 %v3594
        %3894 = vmatmul.mubr.bf16.gmra.mrb[0].mxu0 %v3593
        %v3895 = vpop.f32.mrb[0].mxu0
        %v3896 = vadd.f32 0.0, %v3895
        %v3897 = vpop.f32.mrb[0].mxu0
        %v3898 = vpop.f32.mrb[0].mxu0
        %v3899 = vadd.f32 0.0, %v3898
        %v3900 = vpop.f32.mrb[0].mxu0
        %3901 = vmatprep.mubr.bf16.mxu0 %v3598
        %3902 = vmatmul.mubr.bf16.gmra.mrb[0].mxu0 %v3597
        %v3903 = vpop.f32.mrb[0].mxu0
        %v3904 = vadd.f32 0.0, %v3903
        %v3905 = vpop.f32.mrb[0].mxu0
        %v3906 = vpop.f32.mrb[0].mxu0
        %v3907 = vadd.f32 0.0, %v3906
        %v3908 = vpop.f32.mrb[0].mxu0
        %3909 = vmatprep.mubr.bf16.mxu0 %v3602
        %3910 = vmatmul.mubr.bf16.gmra.mrb[0].mxu0 %v3601
        %v3911 = vpop.f32.mrb[0].mxu0
        %v3912 = vadd.f32 0.0, %v3911
        %v3913 = vpop.f32.mrb[0].mxu0
        %v3914 = vpop.f32.mrb[0].mxu0
        %v3915 = vadd.f32 0.0, %v3914
        %v3916 = vpop.f32.mrb[0].mxu0
        %3917 = vdwg.mxu0
        %3918 = vmatprep.subr.bf16.mxu0 0
        %3919 = vmatpush1.bf16.msra.mxu0 %v3813
        %3920 = vmatprep.subr.bf16.mxu0 0
        %3921 = vmatpush1.bf16.msra.mxu0 %v3814
        %3922 = vmatprep.subr.bf16.mxu0 0
        %3923 = vmatpush1.bf16.msra.mxu0 %v3815
        %3924 = vmatprep.subr.bf16.mxu0 0
        %3925 = vmatpush1.bf16.msra.mxu0 %v3816
        %3926 = vmatprep.subr.bf16.mxu0 0
        %3927 = vmatpush1.bf16.msra.mxu0 %v3817
        %3928 = vmatprep.subr.bf16.mxu0 0
        %3929 = vmatpush1.bf16.msra.mxu0 %v3818
        %3930 = vmatprep.subr.bf16.mxu0 0
        %3931 = vmatpush1.bf16.msra.mxu0 %v3819
        %3932 = vmatprep.subr.bf16.mxu0 0
        %3933 = vmatpush1.bf16.msra.mxu0 %v3820
        %3934 = vmatprep.subr.bf16.mxu0 0
        %3935 = vmatpush1.bf16.msra.mxu0 %v3821
        %3936 = vmatprep.subr.bf16.mxu0 0
        %3937 = vmatpush1.bf16.msra.mxu0 %v3822
        %3938 = vmatprep.subr.bf16.mxu0 0
        %3939 = vmatpush1.bf16.msra.mxu0 %v3823
        %3940 = vmatprep.subr.bf16.mxu0 0
        %3941 = vmatpush1.bf16.msra.mxu0 %v3824
        %3942 = vmatprep.subr.bf16.mxu0 0
        %3943 = vmatpush1.bf16.msra.mxu0 %v3825
        %3944 = vmatprep.subr.bf16.mxu0 0
        %3945 = vmatpush1.bf16.msra.mxu0 %v3826
        %3946 = vmatprep.subr.bf16.mxu0 0
        %3947 = vmatpush1.bf16.msra.mxu0 %v3827
        %3948 = vmatprep.subr.bf16.mxu0 0
        %3949 = vmatpush1.bf16.msra.mxu0 %v3828
        %3950 = vmatprep.mubr.bf16.mxu0 %v3596
        %3951 = vmatmul.mubr.bf16.gmra.mrb[0].mxu0 %v3595
        %v3952 = vpop.f32.mrb[0].mxu0
        %v3953 = vadd.f32 %v3896, %v3952
        %v3954 = vpop.f32.mrb[0].mxu0
        %v3955 = vpop.f32.mrb[0].mxu0
        %v3956 = vadd.f32 %v3899, %v3955
        %v3957 = vpop.f32.mrb[0].mxu0
        %3958 = vmatprep.mubr.bf16.mxu0 %v3600
        %3959 = vmatmul.mubr.bf16.gmra.mrb[0].mxu0 %v3599
        %v3960 = vpop.f32.mrb[0].mxu0
        %v3961 = vadd.f32 %v3904, %v3960
        %v3962 = vpop.f32.mrb[0].mxu0
        %v3963 = vpop.f32.mrb[0].mxu0
        %v3964 = vadd.f32 %v3907, %v3963
        %v3965 = vpop.f32.mrb[0].mxu0
        %3966 = vmatprep.mubr.bf16.mxu0 %v3604
        %3967 = vmatmul.mubr.bf16.gmra.mrb[0].mxu0 %v3603
        %v3968 = vpop.f32.mrb[0].mxu0
        %v3969 = vadd.f32 %v3912, %v3968
        %v3970 = vpop.f32.mrb[0].mxu0
        %v3971 = vpop.f32.mrb[0].mxu0
        %v3972 = vadd.f32 %v3915, %v3971
        %v3973 = vpop.f32.mrb[0].mxu0
        %3974 = vdwg.mxu0
        %v3975 = vadd.f32 %v2966, %v3953
        %v3976 = vadd.f32 %v2967, %v3956
        %v3977 = vadd.f32 %v2968, %v3961
        %v3978 = vadd.f32 %v2969, %v3964
        %v3979 = vadd.f32 %v2970, %v3969
        %v3980 = vadd.f32 %v2971, %v3972
        %v3981 = vlaneseq
        %v3982 = vshrl.u32 %v3981, 7
        %v3983 = vsub.s32 0, %v3982
        %v3984 = vrot.slane %v998, %v3983
        %v3985 = vadd.f32 %v3975, %v3984
        %v3986 = vadd.f32 %v3976, %v3984
        %v3987 = vadd.f32 %v3977, %v3984
        %v3988 = vadd.f32 %v3978, %v3984
        %v3989 = vadd.f32 %v3979, %v3984
        %v3990 = vadd.f32 %v3980, %v3984
        %3991 = vst [vmem:[#allocation2] sm:$0xff] %v3985
        %3992 = vst [vmem:[#allocation2 + $0x8] sm:$0xff] %v3986
        %3993 = vst [vmem:[#allocation2 + $0x10] sm:$0xff] %v3987
        %3994 = vst [vmem:[#allocation2 + $0x18] sm:$0xff] %v3988
        %3995 = vst [vmem:[#allocation2 + $0x20] sm:$0xff] %v3989
        %3996 = vst [vmem:[#allocation2 + $0x28] sm:$0xff] %v3990
        %p3997 = scmp.eq.s32.totalorder %s31, 1
        // Predicated region
        $region129: #{tpu_custom_call.1} parent=83 // pred_check
          %p3998 = pneg %p3997
        $region130: #{tpu_custom_call.1} parent=83 // pred_check_branch
          %4000 = sbr.rel (%p3998) target = $region132
        $region131: #{tpu_custom_call.1} parent=83 // pred_region
          %v4001 = vpack.c.bf16 %v3986, %v3985
          %v4002 = vpack.c.bf16 %v3988, %v3987
          %v4003 = vpack.c.bf16 %v3990, %v3989
          %v4004 = vld [vmem:[#allocation14] sm:$0xff]
          %v4005 = vld [vmem:[#allocation14 + $0x8] sm:$0xff]
          %v4006 = vld [vmem:[#allocation14 + $0x10] sm:$0xff]
          %v4007 = vld [vmem:[#allocation14 + $0x18] sm:$0xff]
          %v4008 = vld [vmem:[#allocation14 + $0x20] sm:$0xff]
          %v4009 = vld [vmem:[#allocation14 + $0x28] sm:$0xff]
          %v4010 = vld [vmem:[#allocation14 + $0x30] sm:$0xff]
          %v4011 = vld [vmem:[#allocation14 + $0x38] sm:$0xff]
          %v4012 = vld [vmem:[#allocation14 + $0x40] sm:$0xff]
          %v4013 = vld [vmem:[#allocation14 + $0x48] sm:$0xff]
          %v4014 = vld [vmem:[#allocation14 + $0x50] sm:$0xff]
          %v4015 = vld [vmem:[#allocation14 + $0x58] sm:$0xff]
          %v4016 = vld [vmem:[#allocation14 + $0x60] sm:$0xff]
          %v4017 = vld [vmem:[#allocation14 + $0x68] sm:$0xff]
          %v4018 = vld [vmem:[#allocation14 + $0x70] sm:$0xff]
          %v4019 = vld [vmem:[#allocation14 + $0x78] sm:$0xff]
          %s4020 = scalar_lea.vmem %s13, 17
          %v4021 = vld [vmem:[%s4020] ss:$8 sm:$0x3]
          %v4023 = vlaneseq
          %v4024 = vshrl.u32 %v4023, 7
          %v4025 = vsub.s32 0, %v4024
          %v4026 = vrot.slane %v4021, %v4025
          %v4027 = vlaneseq
          %v4028 = vshrl.u32 %v4027, 7
          %v4029 = vsub.s32 1, %v4028
          %v4030 = vrot.slane %v4021, %v4029
          %v4049 = vunpack.c.l.b16 %v4004
          %v4050 = vunpack.c.h.b16 %v4004
          %v4051 = vunpack.c.l.b16 %v4005
          %v4052 = vunpack.c.h.b16 %v4005
          %v4053 = vunpack.c.l.b16 %v4006
          %v4054 = vunpack.c.h.b16 %v4006
          %v4055 = vunpack.c.l.b16 %v4007
          %v4056 = vunpack.c.h.b16 %v4007
          %v4057 = vunpack.c.l.b16 %v4008
          %v4058 = vunpack.c.h.b16 %v4008
          %v4059 = vunpack.c.l.b16 %v4009
          %v4060 = vunpack.c.h.b16 %v4009
          %v4061 = vunpack.c.l.b16 %v4010
          %v4062 = vunpack.c.h.b16 %v4010
          %v4063 = vunpack.c.l.b16 %v4011
          %v4064 = vunpack.c.h.b16 %v4011
          %v4065 = vunpack.c.l.b16 %v4012
          %v4066 = vunpack.c.h.b16 %v4012
          %v4067 = vunpack.c.l.b16 %v4013
          %v4068 = vunpack.c.h.b16 %v4013
          %v4069 = vunpack.c.l.b16 %v4014
          %v4070 = vunpack.c.h.b16 %v4014
          %v4071 = vunpack.c.l.b16 %v4015
          %v4072 = vunpack.c.h.b16 %v4015
          %v4073 = vunpack.c.l.b16 %v4016
          %v4074 = vunpack.c.h.b16 %v4016
          %v4075 = vunpack.c.l.b16 %v4017
          %v4076 = vunpack.c.h.b16 %v4017
          %v4077 = vunpack.c.l.b16 %v4018
          %v4078 = vunpack.c.h.b16 %v4018
          %v4079 = vunpack.c.l.b16 %v4019
          %v4080 = vunpack.c.h.b16 %v4019
          %v4081 = vpack.c.b16 %v4051, %v4049
          %v4082 = vpack.c.b16 %v4052, %v4050
          %v4083 = vpack.c.b16 %v4055, %v4053
          %v4084 = vpack.c.b16 %v4056, %v4054
          %v4085 = vpack.c.b16 %v4059, %v4057
          %v4086 = vpack.c.b16 %v4060, %v4058
          %v4087 = vpack.c.b16 %v4063, %v4061
          %v4088 = vpack.c.b16 %v4064, %v4062
          %v4089 = vpack.c.b16 %v4067, %v4065
          %v4090 = vpack.c.b16 %v4068, %v4066
          %v4091 = vpack.c.b16 %v4071, %v4069
          %v4092 = vpack.c.b16 %v4072, %v4070
          %v4093 = vpack.c.b16 %v4075, %v4073
          %v4094 = vpack.c.b16 %v4076, %v4074
          %v4095 = vpack.c.b16 %v4079, %v4077
          %v4096 = vpack.c.b16 %v4080, %v4078
          %4113 = vmatprep.subr.bf16.mxu0 %v4082
          %4114 = vmatpush1.bf16.msra.mxu0 %v4081
          %4115 = vmatprep.subr.bf16.mxu0 %v4084
          %4116 = vmatpush1.bf16.msra.mxu0 %v4083
          %4117 = vmatprep.subr.bf16.mxu0 %v4086
          %4118 = vmatpush1.bf16.msra.mxu0 %v4085
          %4119 = vmatprep.subr.bf16.mxu0 %v4088
          %4120 = vmatpush1.bf16.msra.mxu0 %v4087
          %4121 = vmatprep.subr.bf16.mxu0 %v4090
          %4122 = vmatpush1.bf16.msra.mxu0 %v4089
          %4123 = vmatprep.subr.bf16.mxu0 %v4092
          %4124 = vmatpush1.bf16.msra.mxu0 %v4091
          %4125 = vmatprep.subr.bf16.mxu0 %v4094
          %4126 = vmatpush1.bf16.msra.mxu0 %v4093
          %4127 = vmatprep.subr.bf16.mxu0 %v4096
          %4128 = vmatpush1.bf16.msra.mxu0 %v4095
          %4129 = vmatprep.subr.bf16.mxu0 0
          %4130 = vmatpush1.bf16.msra.mxu0 0
          %4131 = vmatprep.subr.bf16.mxu0 0
          %4132 = vmatpush1.bf16.msra.mxu0 0
          %4133 = vmatprep.subr.bf16.mxu0 0
          %4134 = vmatpush1.bf16.msra.mxu0 0
          %4135 = vmatprep.subr.bf16.mxu0 0
          %4136 = vmatpush1.bf16.msra.mxu0 0
          %4137 = vmatprep.subr.bf16.mxu0 0
          %4138 = vmatpush1.bf16.msra.mxu0 0
          %4139 = vmatprep.subr.bf16.mxu0 0
          %4140 = vmatpush1.bf16.msra.mxu0 0
          %4141 = vmatprep.subr.bf16.mxu0 0
          %4142 = vmatpush1.bf16.msra.mxu0 0
          %4143 = vmatprep.subr.bf16.mxu0 0
          %4144 = vmatpush1.bf16.msra.mxu0 0
          %4145 = vmatprep.mubr.bf16.mxu0 0
          %4146 = vmatmul.mubr.bf16.gmra.mrb[0].mxu0 %v4001
          %v4147 = vpop.f32.mrb[0].mxu0
          %v4148 = vadd.f32 %v4026, %v4147
          %v4149 = vpop.f32.mrb[0].mxu0
          %v4150 = vadd.f32 %v4030, %v4149
          %v4151 = vpop.f32.mrb[0].mxu0
          %v4152 = vadd.f32 %v4026, %v4151
          %v4153 = vpop.f32.mrb[0].mxu0
          %v4154 = vadd.f32 %v4030, %v4153
          %4155 = vmatprep.mubr.bf16.mxu0 0
          %4156 = vmatmul.mubr.bf16.gmra.mrb[0].mxu0 %v4002
          %v4157 = vpop.f32.mrb[0].mxu0
          %v4158 = vadd.f32 %v4026, %v4157
          %v4159 = vpop.f32.mrb[0].mxu0
          %v4160 = vadd.f32 %v4030, %v4159
          %v4161 = vpop.f32.mrb[0].mxu0
          %v4162 = vadd.f32 %v4026, %v4161
          %v4163 = vpop.f32.mrb[0].mxu0
          %v4164 = vadd.f32 %v4030, %v4163
          %4165 = vmatprep.mubr.bf16.mxu0 0
          %4166 = vmatmul.mubr.bf16.gmra.mrb[0].mxu0 %v4003
          %v4167 = vpop.f32.mrb[0].mxu0
          %v4168 = vadd.f32 %v4026, %v4167
          %v4169 = vpop.f32.mrb[0].mxu0
          %v4170 = vadd.f32 %v4030, %v4169
          %v4171 = vpop.f32.mrb[0].mxu0
          %v4172 = vadd.f32 %v4026, %v4171
          %v4173 = vpop.f32.mrb[0].mxu0
          %v4174 = vadd.f32 %v4030, %v4173
          %4175 = vdwg.mxu0
          %v4176 = vmul.f32 %v4148, 0.5
          %v4177 = vmul.f32 %v4150, 0.5
          %v4178 = vmul.f32 %v4152, 0.5
          %v4179 = vmul.f32 %v4154, 0.5
          %v4180 = vmul.f32 %v4158, 0.5
          %v4181 = vmul.f32 %v4160, 0.5
          %v4182 = vmul.f32 %v4162, 0.5
          %v4183 = vmul.f32 %v4164, 0.5
          %v4184 = vmul.f32 %v4168, 0.5
          %v4185 = vmul.f32 %v4170, 0.5
          %v4186 = vmul.f32 %v4172, 0.5
          %v4187 = vmul.f32 %v4174, 0.5
          %v4188 = vmul.f32 %v4148, 0.70710677
          %v4189 = vmul.f32 %v4150, 0.70710677
          %v4190 = vmul.f32 %v4152, 0.70710677
          %v4191 = vmul.f32 %v4154, 0.70710677
          %v4192 = vmul.f32 %v4158, 0.70710677
          %v4193 = vmul.f32 %v4160, 0.70710677
          %v4194 = vmul.f32 %v4162, 0.70710677
          %v4195 = vmul.f32 %v4164, 0.70710677
          %v4196 = vmul.f32 %v4168, 0.70710677
          %v4197 = vmul.f32 %v4170, 0.70710677
          %v4198 = vmul.f32 %v4172, 0.70710677
          %v4199 = vmul.f32 %v4174, 0.70710677
          %vm4200 = vcmp.ge.f32.partialorder %v4188, 0.0
          %vm4201 = vcmp.ge.f32.partialorder %v4189, 0.0
          %vm4202 = vcmp.ge.f32.partialorder %v4190, 0.0
          %vm4203 = vcmp.ge.f32.partialorder %v4191, 0.0
          %vm4204 = vcmp.ge.f32.partialorder %v4192, 0.0
          %vm4205 = vcmp.ge.f32.partialorder %v4193, 0.0
          %vm4206 = vcmp.ge.f32.partialorder %v4194, 0.0
          %vm4207 = vcmp.ge.f32.partialorder %v4195, 0.0
          %vm4208 = vcmp.ge.f32.partialorder %v4196, 0.0
          %vm4209 = vcmp.ge.f32.partialorder %v4197, 0.0
          %vm4210 = vcmp.ge.f32.partialorder %v4198, 0.0
          %vm4211 = vcmp.ge.f32.partialorder %v4199, 0.0
          %v4212 = vsel %vm4200, 1.0, -1.0
          %v4213 = vsel %vm4201, 1.0, -1.0
          %v4214 = vsel %vm4202, 1.0, -1.0
          %v4215 = vsel %vm4203, 1.0, -1.0
          %v4216 = vsel %vm4204, 1.0, -1.0
          %v4217 = vsel %vm4205, 1.0, -1.0
          %v4218 = vsel %vm4206, 1.0, -1.0
          %v4219 = vsel %vm4207, 1.0, -1.0
          %v4220 = vsel %vm4208, 1.0, -1.0
          %v4221 = vsel %vm4209, 1.0, -1.0
          %v4222 = vsel %vm4210, 1.0, -1.0
          %v4223 = vsel %vm4211, 1.0, -1.0
          %v4224 = vand.u32 2147483647, %v4188
          %v4225 = vand.u32 2147483647, %v4189
          %v4226 = vand.u32 2147483647, %v4190
          %v4227 = vand.u32 2147483647, %v4191
          %v4228 = vand.u32 2147483647, %v4192
          %v4229 = vand.u32 2147483647, %v4193
          %v4230 = vand.u32 2147483647, %v4194
          %v4231 = vand.u32 2147483647, %v4195
          %v4232 = vand.u32 2147483647, %v4196
          %v4233 = vand.u32 2147483647, %v4197
          %v4234 = vand.u32 2147483647, %v4198
          %v4235 = vand.u32 2147483647, %v4199
          %v4236 = vmul.f32 %v4224, 0.3275911
          %v4237 = vmul.f32 %v4225, 0.3275911
          %v4238 = vmul.f32 %v4226, 0.3275911
          %v4239 = vmul.f32 %v4227, 0.3275911
          %v4240 = vmul.f32 %v4228, 0.3275911
          %v4241 = vmul.f32 %v4229, 0.3275911
          %v4242 = vmul.f32 %v4230, 0.3275911
          %v4243 = vmul.f32 %v4231, 0.3275911
          %v4244 = vmul.f32 %v4232, 0.3275911
          %v4245 = vmul.f32 %v4233, 0.3275911
          %v4246 = vmul.f32 %v4234, 0.3275911
          %v4247 = vmul.f32 %v4235, 0.3275911
          %v4248 = vadd.f32 %v4236, 1.0
          %v4249 = vadd.f32 %v4237, 1.0
          %v4250 = vadd.f32 %v4238, 1.0
          %v4251 = vadd.f32 %v4239, 1.0
          %v4252 = vadd.f32 %v4240, 1.0
          %v4253 = vadd.f32 %v4241, 1.0
          %v4254 = vadd.f32 %v4242, 1.0
          %v4255 = vadd.f32 %v4243, 1.0
          %v4256 = vadd.f32 %v4244, 1.0
          %v4257 = vadd.f32 %v4245, 1.0
          %v4258 = vadd.f32 %v4246, 1.0
          %v4259 = vadd.f32 %v4247, 1.0
          %v4260 = vrcp.pop %v4248
          %v4261 = vmul.f32 1.0, %v4260
          %v4262 = vrcp.pop %v4249
          %v4263 = vmul.f32 1.0, %v4262
          %v4264 = vrcp.pop %v4250
          %v4265 = vmul.f32 1.0, %v4264
          %v4266 = vrcp.pop %v4251
          %v4267 = vmul.f32 1.0, %v4266
          %v4268 = vrcp.pop %v4252
          %v4269 = vmul.f32 1.0, %v4268
          %v4270 = vrcp.pop %v4253
          %v4271 = vmul.f32 1.0, %v4270
          %v4272 = vrcp.pop %v4254
          %v4273 = vmul.f32 1.0, %v4272
          %v4274 = vrcp.pop %v4255
          %v4275 = vmul.f32 1.0, %v4274
          %v4276 = vrcp.pop %v4256
          %v4277 = vmul.f32 1.0, %v4276
          %v4278 = vrcp.pop %v4257
          %v4279 = vmul.f32 1.0, %v4278
          %v4280 = vrcp.pop %v4258
          %v4281 = vmul.f32 1.0, %v4280
          %v4282 = vrcp.pop %v4259
          %v4283 = vmul.f32 1.0, %v4282
          %v4284 = vmul.f32 %v4261, 1.0614054
          %v4285 = vmul.f32 %v4263, 1.0614054
          %v4286 = vmul.f32 %v4265, 1.0614054
          %v4287 = vmul.f32 %v4267, 1.0614054
          %v4288 = vmul.f32 %v4269, 1.0614054
          %v4289 = vmul.f32 %v4271, 1.0614054
          %v4290 = vmul.f32 %v4273, 1.0614054
          %v4291 = vmul.f32 %v4275, 1.0614054
          %v4292 = vmul.f32 %v4277, 1.0614054
          %v4293 = vmul.f32 %v4279, 1.0614054
          %v4294 = vmul.f32 %v4281, 1.0614054
          %v4295 = vmul.f32 %v4283, 1.0614054
          %v4296 = vadd.f32 %v4284, -1.4531521
          %v4297 = vadd.f32 %v4285, -1.4531521
          %v4298 = vadd.f32 %v4286, -1.4531521
          %v4299 = vadd.f32 %v4287, -1.4531521
          %v4300 = vadd.f32 %v4288, -1.4531521
          %v4301 = vadd.f32 %v4289, -1.4531521
          %v4302 = vadd.f32 %v4290, -1.4531521
          %v4303 = vadd.f32 %v4291, -1.4531521
          %v4304 = vadd.f32 %v4292, -1.4531521
          %v4305 = vadd.f32 %v4293, -1.4531521
          %v4306 = vadd.f32 %v4294, -1.4531521
          %v4307 = vadd.f32 %v4295, -1.4531521
          %v4308 = vmul.f32 %v4296, %v4261
          %v4309 = vmul.f32 %v4297, %v4263
          %v4310 = vmul.f32 %v4298, %v4265
          %v4311 = vmul.f32 %v4299, %v4267
          %v4312 = vmul.f32 %v4300, %v4269
          %v4313 = vmul.f32 %v4301, %v4271
          %v4314 = vmul.f32 %v4302, %v4273
          %v4315 = vmul.f32 %v4303, %v4275
          %v4316 = vmul.f32 %v4304, %v4277
          %v4317 = vmul.f32 %v4305, %v4279
          %v4318 = vmul.f32 %v4306, %v4281
          %v4319 = vmul.f32 %v4307, %v4283
          %v4320 = vadd.f32 %v4308, 1.4214138
          %v4321 = vadd.f32 %v4309, 1.4214138
          %v4322 = vadd.f32 %v4310, 1.4214138
          %v4323 = vadd.f32 %v4311, 1.4214138
          %v4324 = vadd.f32 %v4312, 1.4214138
          %v4325 = vadd.f32 %v4313, 1.4214138
          %v4326 = vadd.f32 %v4314, 1.4214138
          %v4327 = vadd.f32 %v4315, 1.4214138
          %v4328 = vadd.f32 %v4316, 1.4214138
          %v4329 = vadd.f32 %v4317, 1.4214138
          %v4330 = vadd.f32 %v4318, 1.4214138
          %v4331 = vadd.f32 %v4319, 1.4214138
          %v4332 = vmul.f32 %v4320, %v4261
          %v4333 = vmul.f32 %v4321, %v4263
          %v4334 = vmul.f32 %v4322, %v4265
          %v4335 = vmul.f32 %v4323, %v4267
          %v4336 = vmul.f32 %v4324, %v4269
          %v4337 = vmul.f32 %v4325, %v4271
          %v4338 = vmul.f32 %v4326, %v4273
          %v4339 = vmul.f32 %v4327, %v4275
          %v4340 = vmul.f32 %v4328, %v4277
          %v4341 = vmul.f32 %v4329, %v4279
          %v4342 = vmul.f32 %v4330, %v4281
          %v4343 = vmul.f32 %v4331, %v4283
          %v4344 = vadd.f32 %v4332, -0.28449672
          %v4345 = vadd.f32 %v4333, -0.28449672
          %v4346 = vadd.f32 %v4334, -0.28449672
          %v4347 = vadd.f32 %v4335, -0.28449672
          %v4348 = vadd.f32 %v4336, -0.28449672
          %v4349 = vadd.f32 %v4337, -0.28449672
          %v4350 = vadd.f32 %v4338, -0.28449672
          %v4351 = vadd.f32 %v4339, -0.28449672
          %v4352 = vadd.f32 %v4340, -0.28449672
          %v4353 = vadd.f32 %v4341, -0.28449672
          %v4354 = vadd.f32 %v4342, -0.28449672
          %v4355 = vadd.f32 %v4343, -0.28449672
          %v4356 = vmul.f32 %v4344, %v4261
          %v4357 = vmul.f32 %v4345, %v4263
          %v4358 = vmul.f32 %v4346, %v4265
          %v4359 = vmul.f32 %v4347, %v4267
          %v4360 = vmul.f32 %v4348, %v4269
          %v4361 = vmul.f32 %v4349, %v4271
          %v4362 = vmul.f32 %v4350, %v4273
          %v4363 = vmul.f32 %v4351, %v4275
          %v4364 = vmul.f32 %v4352, %v4277
          %v4365 = vmul.f32 %v4353, %v4279
          %v4366 = vmul.f32 %v4354, %v4281
          %v4367 = vmul.f32 %v4355, %v4283
          %v4368 = vadd.f32 %v4356, 0.2548296
          %v4369 = vadd.f32 %v4357, 0.2548296
          %v4370 = vadd.f32 %v4358, 0.2548296
          %v4371 = vadd.f32 %v4359, 0.2548296
          %v4372 = vadd.f32 %v4360, 0.2548296
          %v4373 = vadd.f32 %v4361, 0.2548296
          %v4374 = vadd.f32 %v4362, 0.2548296
          %v4375 = vadd.f32 %v4363, 0.2548296
          %v4376 = vadd.f32 %v4364, 0.2548296
          %v4377 = vadd.f32 %v4365, 0.2548296
          %v4378 = vadd.f32 %v4366, 0.2548296
          %v4379 = vadd.f32 %v4367, 0.2548296
          %v4380 = vmul.f32 %v4368, %v4261
          %v4381 = vmul.f32 %v4369, %v4263
          %v4382 = vmul.f32 %v4370, %v4265
          %v4383 = vmul.f32 %v4371, %v4267
          %v4384 = vmul.f32 %v4372, %v4269
          %v4385 = vmul.f32 %v4373, %v4271
          %v4386 = vmul.f32 %v4374, %v4273
          %v4387 = vmul.f32 %v4375, %v4275
          %v4388 = vmul.f32 %v4376, %v4277
          %v4389 = vmul.f32 %v4377, %v4279
          %v4390 = vmul.f32 %v4378, %v4281
          %v4391 = vmul.f32 %v4379, %v4283
          %v4392 = vsub.f32 0.0, %v4224
          %v4393 = vsub.f32 0.0, %v4225
          %v4394 = vsub.f32 0.0, %v4226
          %v4395 = vsub.f32 0.0, %v4227
          %v4396 = vsub.f32 0.0, %v4228
          %v4397 = vsub.f32 0.0, %v4229
          %v4398 = vsub.f32 0.0, %v4230
          %v4399 = vsub.f32 0.0, %v4231
          %v4400 = vsub.f32 0.0, %v4232
          %v4401 = vsub.f32 0.0, %v4233
          %v4402 = vsub.f32 0.0, %v4234
          %v4403 = vsub.f32 0.0, %v4235
          %v4404 = vmul.f32 %v4392, %v4224
          %v4405 = vmul.f32 %v4393, %v4225
          %v4406 = vmul.f32 %v4394, %v4226
          %v4407 = vmul.f32 %v4395, %v4227
          %v4408 = vmul.f32 %v4396, %v4228
          %v4409 = vmul.f32 %v4397, %v4229
          %v4410 = vmul.f32 %v4398, %v4230
          %v4411 = vmul.f32 %v4399, %v4231
          %v4412 = vmul.f32 %v4400, %v4232
          %v4413 = vmul.f32 %v4401, %v4233
          %v4414 = vmul.f32 %v4402, %v4234
          %v4415 = vmul.f32 %v4403, %v4235
          %v4416 = vmul.f32 %v4404, 1.442695
          %v4417 = vpow.pop %v4416
          %v4418 = vmul.f32 %v4405, 1.442695
          %v4419 = vpow.pop %v4418
          %v4420 = vmul.f32 %v4406, 1.442695
          %v4421 = vpow.pop %v4420
          %v4422 = vmul.f32 %v4407, 1.442695
          %v4423 = vpow.pop %v4422
          %v4424 = vmul.f32 %v4408, 1.442695
          %v4425 = vpow.pop %v4424
          %v4426 = vmul.f32 %v4409, 1.442695
          %v4427 = vpow.pop %v4426
          %v4428 = vmul.f32 %v4410, 1.442695
          %v4429 = vpow.pop %v4428
          %v4430 = vmul.f32 %v4411, 1.442695
          %v4431 = vpow.pop %v4430
          %v4432 = vmul.f32 %v4412, 1.442695
          %v4433 = vpow.pop %v4432
          %v4434 = vmul.f32 %v4413, 1.442695
          %v4435 = vpow.pop %v4434
          %v4436 = vmul.f32 %v4414, 1.442695
          %v4437 = vpow.pop %v4436
          %v4438 = vmul.f32 %v4415, 1.442695
          %v4439 = vpow.pop %v4438
          %v4440 = vmul.f32 %v4380, %v4417
          %v4441 = vmul.f32 %v4381, %v4419
          %v4442 = vmul.f32 %v4382, %v4421
          %v4443 = vmul.f32 %v4383, %v4423
          %v4444 = vmul.f32 %v4384, %v4425
          %v4445 = vmul.f32 %v4385, %v4427
          %v4446 = vmul.f32 %v4386, %v4429
          %v4447 = vmul.f32 %v4387, %v4431
          %v4448 = vmul.f32 %v4388, %v4433
          %v4449 = vmul.f32 %v4389, %v4435
          %v4450 = vmul.f32 %v4390, %v4437
          %v4451 = vmul.f32 %v4391, %v4439
          %v4452 = vsub.f32 1.0, %v4440
          %v4453 = vsub.f32 1.0, %v4441
          %v4454 = vsub.f32 1.0, %v4442
          %v4455 = vsub.f32 1.0, %v4443
          %v4456 = vsub.f32 1.0, %v4444
          %v4457 = vsub.f32 1.0, %v4445
          %v4458 = vsub.f32 1.0, %v4446
          %v4459 = vsub.f32 1.0, %v4447
          %v4460 = vsub.f32 1.0, %v4448
          %v4461 = vsub.f32 1.0, %v4449
          %v4462 = vsub.f32 1.0, %v4450
          %v4463 = vsub.f32 1.0, %v4451
          %v4464 = vmul.f32 %v4212, %v4452
          %v4465 = vmul.f32 %v4213, %v4453
          %v4466 = vmul.f32 %v4214, %v4454
          %v4467 = vmul.f32 %v4215, %v4455
          %v4468 = vmul.f32 %v4216, %v4456
          %v4469 = vmul.f32 %v4217, %v4457
          %v4470 = vmul.f32 %v4218, %v4458
          %v4471 = vmul.f32 %v4219, %v4459
          %v4472 = vmul.f32 %v4220, %v4460
          %v4473 = vmul.f32 %v4221, %v4461
          %v4474 = vmul.f32 %v4222, %v4462
          %v4475 = vmul.f32 %v4223, %v4463
          %v4476 = vadd.f32 %v4464, 1.0
          %v4477 = vadd.f32 %v4465, 1.0
          %v4478 = vadd.f32 %v4466, 1.0
          %v4479 = vadd.f32 %v4467, 1.0
          %v4480 = vadd.f32 %v4468, 1.0
          %v4481 = vadd.f32 %v4469, 1.0
          %v4482 = vadd.f32 %v4470, 1.0
          %v4483 = vadd.f32 %v4471, 1.0
          %v4484 = vadd.f32 %v4472, 1.0
          %v4485 = vadd.f32 %v4473, 1.0
          %v4486 = vadd.f32 %v4474, 1.0
          %v4487 = vadd.f32 %v4475, 1.0
          %v4488 = vmul.f32 %v4176, %v4476
          %v4489 = vmul.f32 %v4177, %v4477
          %v4490 = vmul.f32 %v4178, %v4478
          %v4491 = vmul.f32 %v4179, %v4479
          %v4492 = vmul.f32 %v4180, %v4480
          %v4493 = vmul.f32 %v4181, %v4481
          %v4494 = vmul.f32 %v4182, %v4482
          %v4495 = vmul.f32 %v4183, %v4483
          %v4496 = vmul.f32 %v4184, %v4484
          %v4497 = vmul.f32 %v4185, %v4485
          %v4498 = vmul.f32 %v4186, %v4486
          %v4499 = vmul.f32 %v4187, %v4487
          %v4500 = vpack.c.bf16 %v4490, %v4488
          %v4501 = vpack.c.bf16 %v4491, %v4489
          %v4502 = vpack.c.bf16 %v4494, %v4492
          %v4503 = vpack.c.bf16 %v4495, %v4493
          %v4504 = vpack.c.bf16 %v4498, %v4496
          %v4505 = vpack.c.bf16 %v4499, %v4497
          %v4506 = vld [vmem:[#allocation15] sm:$0xff]
          %v4507 = vld [vmem:[#allocation15 + $0x8] sm:$0xff]
          %v4508 = vld [vmem:[#allocation15 + $0x10] sm:$0xff]
          %v4509 = vld [vmem:[#allocation15 + $0x18] sm:$0xff]
          %v4510 = vld [vmem:[#allocation15 + $0x20] sm:$0xff]
          %v4511 = vld [vmem:[#allocation15 + $0x28] sm:$0xff]
          %v4512 = vld [vmem:[#allocation15 + $0x30] sm:$0xff]
          %v4513 = vld [vmem:[#allocation15 + $0x38] sm:$0xff]
          %v4514 = vld [vmem:[#allocation15 + $0x40] sm:$0xff]
          %v4515 = vld [vmem:[#allocation15 + $0x48] sm:$0xff]
          %v4516 = vld [vmem:[#allocation15 + $0x50] sm:$0xff]
          %v4517 = vld [vmem:[#allocation15 + $0x58] sm:$0xff]
          %v4518 = vld [vmem:[#allocation15 + $0x60] sm:$0xff]
          %v4519 = vld [vmem:[#allocation15 + $0x68] sm:$0xff]
          %v4520 = vld [vmem:[#allocation15 + $0x70] sm:$0xff]
          %v4521 = vld [vmem:[#allocation15 + $0x78] sm:$0xff]
          %v4522 = vld [vmem:[#allocation15 + $0x80] sm:$0xff]
          %v4523 = vld [vmem:[#allocation15 + $0x88] sm:$0xff]
          %v4524 = vld [vmem:[#allocation15 + $0x90] sm:$0xff]
          %v4525 = vld [vmem:[#allocation15 + $0x98] sm:$0xff]
          %v4526 = vld [vmem:[#allocation15 + $0xa0] sm:$0xff]
          %v4527 = vld [vmem:[#allocation15 + $0xa8] sm:$0xff]
          %v4528 = vld [vmem:[#allocation15 + $0xb0] sm:$0xff]
          %v4529 = vld [vmem:[#allocation15 + $0xb8] sm:$0xff]
          %v4530 = vld [vmem:[#allocation15 + $0xc0] sm:$0xff]
          %v4531 = vld [vmem:[#allocation15 + $0xc8] sm:$0xff]
          %v4532 = vld [vmem:[#allocation15 + $0xd0] sm:$0xff]
          %v4533 = vld [vmem:[#allocation15 + $0xd8] sm:$0xff]
          %v4534 = vld [vmem:[#allocation15 + $0xe0] sm:$0xff]
          %v4535 = vld [vmem:[#allocation15 + $0xe8] sm:$0xff]
          %v4536 = vld [vmem:[#allocation15 + $0xf0] sm:$0xff]
          %v4537 = vld [vmem:[#allocation15 + $0xf8] sm:$0xff]
          %s4538 = scalar_lea.vmem %s13, 18
          %v4539 = vld [vmem:[%s4538] ss:$8 sm:$0x3]
          %v4541 = vlaneseq
          %v4542 = vshrl.u32 %v4541, 7
          %v4543 = vsub.s32 0, %v4542
          %v4544 = vrot.slane %v4539, %v4543
          %v4545 = vlaneseq
          %v4546 = vshrl.u32 %v4545, 7
          %v4547 = vsub.s32 1, %v4546
          %v4548 = vrot.slane %v4539, %v4547
          %v4583 = vunpack.c.l.b16 %v4506
          %v4584 = vunpack.c.h.b16 %v4506
          %v4585 = vunpack.c.l.b16 %v4507
          %v4586 = vunpack.c.h.b16 %v4507
          %v4587 = vunpack.c.l.b16 %v4508
          %v4588 = vunpack.c.h.b16 %v4508
          %v4589 = vunpack.c.l.b16 %v4509
          %v4590 = vunpack.c.h.b16 %v4509
          %v4591 = vunpack.c.l.b16 %v4510
          %v4592 = vunpack.c.h.b16 %v4510
          %v4593 = vunpack.c.l.b16 %v4511
          %v4594 = vunpack.c.h.b16 %v4511
          %v4595 = vunpack.c.l.b16 %v4512
          %v4596 = vunpack.c.h.b16 %v4512
          %v4597 = vunpack.c.l.b16 %v4513
          %v4598 = vunpack.c.h.b16 %v4513
          %v4599 = vunpack.c.l.b16 %v4514
          %v4600 = vunpack.c.h.b16 %v4514
          %v4601 = vunpack.c.l.b16 %v4515
          %v4602 = vunpack.c.h.b16 %v4515
          %v4603 = vunpack.c.l.b16 %v4516
          %v4604 = vunpack.c.h.b16 %v4516
          %v4605 = vunpack.c.l.b16 %v4517
          %v4606 = vunpack.c.h.b16 %v4517
          %v4607 = vunpack.c.l.b16 %v4518
          %v4608 = vunpack.c.h.b16 %v4518
          %v4609 = vunpack.c.l.b16 %v4519
          %v4610 = vunpack.c.h.b16 %v4519
          %v4611 = vunpack.c.l.b16 %v4520
          %v4612 = vunpack.c.h.b16 %v4520
          %v4613 = vunpack.c.l.b16 %v4521
          %v4614 = vunpack.c.h.b16 %v4521
          %v4615 = vunpack.c.l.b16 %v4522
          %v4616 = vunpack.c.h.b16 %v4522
          %v4617 = vunpack.c.l.b16 %v4523
          %v4618 = vunpack.c.h.b16 %v4523
          %v4619 = vunpack.c.l.b16 %v4524
          %v4620 = vunpack.c.h.b16 %v4524
          %v4621 = vunpack.c.l.b16 %v4525
          %v4622 = vunpack.c.h.b16 %v4525
          %v4623 = vunpack.c.l.b16 %v4526
          %v4624 = vunpack.c.h.b16 %v4526
          %v4625 = vunpack.c.l.b16 %v4527
          %v4626 = vunpack.c.h.b16 %v4527
          %v4627 = vunpack.c.l.b16 %v4528
          %v4628 = vunpack.c.h.b16 %v4528
          %v4629 = vunpack.c.l.b16 %v4529
          %v4630 = vunpack.c.h.b16 %v4529
          %v4631 = vunpack.c.l.b16 %v4530
          %v4632 = vunpack.c.h.b16 %v4530
          %v4633 = vunpack.c.l.b16 %v4531
          %v4634 = vunpack.c.h.b16 %v4531
          %v4635 = vunpack.c.l.b16 %v4532
          %v4636 = vunpack.c.h.b16 %v4532
          %v4637 = vunpack.c.l.b16 %v4533
          %v4638 = vunpack.c.h.b16 %v4533
          %v4639 = vunpack.c.l.b16 %v4534
          %v4640 = vunpack.c.h.b16 %v4534
          %v4641 = vunpack.c.l.b16 %v4535
          %v4642 = vunpack.c.h.b16 %v4535
          %v4643 = vunpack.c.l.b16 %v4536
          %v4644 = vunpack.c.h.b16 %v4536
          %v4645 = vunpack.c.l.b16 %v4537
          %v4646 = vunpack.c.h.b16 %v4537
          %v4647 = vpack.c.b16 %v4585, %v4583
          %v4648 = vpack.c.b16 %v4586, %v4584
          %v4649 = vpack.c.b16 %v4589, %v4587
          %v4650 = vpack.c.b16 %v4590, %v4588
          %v4651 = vpack.c.b16 %v4593, %v4591
          %v4652 = vpack.c.b16 %v4594, %v4592
          %v4653 = vpack.c.b16 %v4597, %v4595
          %v4654 = vpack.c.b16 %v4598, %v4596
          %v4655 = vpack.c.b16 %v4601, %v4599
          %v4656 = vpack.c.b16 %v4602, %v4600
          %v4657 = vpack.c.b16 %v4605, %v4603
          %v4658 = vpack.c.b16 %v4606, %v4604
          %v4659 = vpack.c.b16 %v4609, %v4607
          %v4660 = vpack.c.b16 %v4610, %v4608
          %v4661 = vpack.c.b16 %v4613, %v4611
          %v4662 = vpack.c.b16 %v4614, %v4612
          %v4663 = vpack.c.b16 %v4617, %v4615
          %v4664 = vpack.c.b16 %v4618, %v4616
          %v4665 = vpack.c.b16 %v4621, %v4619
          %v4666 = vpack.c.b16 %v4622, %v4620
          %v4667 = vpack.c.b16 %v4625, %v4623
          %v4668 = vpack.c.b16 %v4626, %v4624
          %v4669 = vpack.c.b16 %v4629, %v4627
          %v4670 = vpack.c.b16 %v4630, %v4628
          %v4671 = vpack.c.b16 %v4633, %v4631
          %v4672 = vpack.c.b16 %v4634, %v4632
          %v4673 = vpack.c.b16 %v4637, %v4635
          %v4674 = vpack.c.b16 %v4638, %v4636
          %v4675 = vpack.c.b16 %v4641, %v4639
          %v4676 = vpack.c.b16 %v4642, %v4640
          %v4677 = vpack.c.b16 %v4645, %v4643
          %v4678 = vpack.c.b16 %v4646, %v4644
          %4711 = vmatprep.subr.bf16.mxu0 %v4648
          %4712 = vmatpush1.bf16.msra.mxu0 %v4647
          %4713 = vmatprep.subr.bf16.mxu0 %v4650
          %4714 = vmatpush1.bf16.msra.mxu0 %v4649
          %4715 = vmatprep.subr.bf16.mxu0 %v4652
          %4716 = vmatpush1.bf16.msra.mxu0 %v4651
          %4717 = vmatprep.subr.bf16.mxu0 %v4654
          %4718 = vmatpush1.bf16.msra.mxu0 %v4653
          %4719 = vmatprep.subr.bf16.mxu0 %v4656
          %4720 = vmatpush1.bf16.msra.mxu0 %v4655
          %4721 = vmatprep.subr.bf16.mxu0 %v4658
          %4722 = vmatpush1.bf16.msra.mxu0 %v4657
          %4723 = vmatprep.subr.bf16.mxu0 %v4660
          %4724 = vmatpush1.bf16.msra.mxu0 %v4659
          %4725 = vmatprep.subr.bf16.mxu0 %v4662
          %4726 = vmatpush1.bf16.msra.mxu0 %v4661
          %4727 = vmatprep.subr.bf16.mxu0 %v4664
          %4728 = vmatpush1.bf16.msra.mxu0 %v4663
          %4729 = vmatprep.subr.bf16.mxu0 %v4666
          %4730 = vmatpush1.bf16.msra.mxu0 %v4665
          %4731 = vmatprep.subr.bf16.mxu0 %v4668
          %4732 = vmatpush1.bf16.msra.mxu0 %v4667
          %4733 = vmatprep.subr.bf16.mxu0 %v4670
          %4734 = vmatpush1.bf16.msra.mxu0 %v4669
          %4735 = vmatprep.subr.bf16.mxu0 %v4672
          %4736 = vmatpush1.bf16.msra.mxu0 %v4671
          %4737 = vmatprep.subr.bf16.mxu0 %v4674
          %4738 = vmatpush1.bf16.msra.mxu0 %v4673
          %4739 = vmatprep.subr.bf16.mxu0 %v4676
          %4740 = vmatpush1.bf16.msra.mxu0 %v4675
          %4741 = vmatprep.subr.bf16.mxu0 %v4678
          %4742 = vmatpush1.bf16.msra.mxu0 %v4677
          %4743 = vmatprep.mubr.bf16.mxu0 %v4501
          %4744 = vmatmul.mubr.bf16.gmra.mrb[0].mxu0 %v4500
          %v4745 = vpop.f32.mrb[0].mxu0
          %v4746 = vadd.f32 %v4544, %v4745
          %v4747 = vpop.f32.mrb[0].mxu0
          %v4748 = vadd.f32 %v4548, %v4747
          %v4749 = vpop.f32.mrb[0].mxu0
          %v4750 = vadd.f32 %v4544, %v4749
          %v4751 = vpop.f32.mrb[0].mxu0
          %v4752 = vadd.f32 %v4548, %v4751
          %4753 = vmatprep.mubr.bf16.mxu0 %v4503
          %4754 = vmatmul.mubr.bf16.gmra.mrb[0].mxu0 %v4502
          %v4755 = vpop.f32.mrb[0].mxu0
          %v4756 = vadd.f32 %v4544, %v4755
          %v4757 = vpop.f32.mrb[0].mxu0
          %v4758 = vadd.f32 %v4548, %v4757
          %v4759 = vpop.f32.mrb[0].mxu0
          %v4760 = vadd.f32 %v4544, %v4759
          %v4761 = vpop.f32.mrb[0].mxu0
          %v4762 = vadd.f32 %v4548, %v4761
          %4763 = vmatprep.mubr.bf16.mxu0 %v4505
          %4764 = vmatmul.mubr.bf16.gmra.mrb[0].mxu0 %v4504
          %v4765 = vpop.f32.mrb[0].mxu0
          %v4766 = vadd.f32 %v4544, %v4765
          %v4767 = vpop.f32.mrb[0].mxu0
          %v4768 = vadd.f32 %v4548, %v4767
          %v4769 = vpop.f32.mrb[0].mxu0
          %v4770 = vadd.f32 %v4544, %v4769
          %v4771 = vpop.f32.mrb[0].mxu0
          %v4772 = vadd.f32 %v4548, %v4771
          %4773 = vdwg.mxu0
          %v4774 = vld [vmem:[%s14] sm:$0xff]
          %vm4775 = vcmask 392192
          %v4777 = vsel %vm4775, %v4774, 0
          %4779 = vmatprep.subr.mxu0 %v4748
          %4780 = vmatpush1.msra.mxu0 %v4746
          %4781 = vmatprep.subr.mxu0 %v4752
          %4782 = vmatpush1.msra.mxu0 %v4750
          %4783 = vmatprep.subr.mxu0 %v4758
          %4784 = vmatpush1.msra.mxu0 %v4756
          %4785 = vmatprep.subr.mxu0 %v4762
          %4786 = vmatpush1.msra.mxu0 %v4760
          %4787 = vmatprep.subr.mxu0 %v4768
          %4788 = vmatpush1.msra.mxu0 %v4766
          %4789 = vmatprep.subr.mxu0 %v4772
          %4790 = vmatpush1.msra.mxu0 %v4770
          %4791 = vmatprep.subr.mxu0 0.0
          %4792 = vmatpush1.msra.mxu0 0.0
          %4793 = vmatprep.subr.mxu0 0.0
          %4794 = vmatpush1.msra.mxu0 0.0
          %4795 = vmatprep.subr.mxu0 0.0
          %4796 = vmatpush1.msra.mxu0 0.0
          %4797 = vmatprep.subr.mxu0 0.0
          %4798 = vmatpush1.msra.mxu0 0.0
          %4799 = vmatprep.subr.mxu0 0.0
          %4800 = vmatpush1.msra.mxu0 0.0
          %4801 = vmatprep.subr.mxu0 0.0
          %4802 = vmatpush1.msra.mxu0 0.0
          %4803 = vmatprep.subr.mxu0 0.0
          %4804 = vmatpush1.msra.mxu0 0.0
          %4805 = vmatprep.subr.mxu0 0.0
          %4806 = vmatpush1.msra.mxu0 0.0
          %4807 = vmatprep.subr.mxu0 0.0
          %4808 = vmatpush1.msra.mxu0 0.0
          %4809 = vmatprep.subr.mxu0 0.0
          %4810 = vmatpush1.msra.mxu0 0.0
          %4811 = vmatprep.subr.mxu0 0.0
          %4812 = vmatpush1.msra.mxu0 0.0
          %4813 = vmatprep.subr.mxu0 0.0
          %4814 = vmatpush1.msra.mxu0 0.0
          %4815 = vmatprep.subr.mxu0 0.0
          %4816 = vmatpush1.msra.mxu0 0.0
          %4817 = vmatprep.subr.mxu0 0.0
          %4818 = vmatpush1.msra.mxu0 0.0
          %4819 = vmatprep.subr.mxu0 0.0
          %4820 = vmatpush1.msra.mxu0 0.0
          %4821 = vmatprep.subr.mxu0 0.0
          %4822 = vmatpush1.msra.mxu0 0.0
          %4823 = vmatprep.subr.mxu0 0.0
          %4824 = vmatpush1.msra.mxu0 0.0
          %4825 = vmatprep.subr.mxu0 0.0
          %4826 = vmatpush1.msra.mxu0 0.0
          %4827 = vmatprep.subr.mxu0 0.0
          %4828 = vmatpush1.msra.mxu0 0.0
          %4829 = vmatprep.subr.mxu0 0.0
          %4830 = vmatpush1.msra.mxu0 0.0
          %4831 = vmatprep.subr.mxu0 0.0
          %4832 = vmatpush1.msra.mxu0 0.0
          %4833 = vmatprep.subr.mxu0 0.0
          %4834 = vmatpush1.msra.mxu0 0.0
          %4835 = vmatprep.subr.mxu0 0.0
          %4836 = vmatpush1.msra.mxu0 0.0
          %4837 = vmatprep.subr.mxu0 0.0
          %4838 = vmatpush1.msra.mxu0 0.0
          %4839 = vmatprep.subr.mxu0 0.0
          %4840 = vmatpush1.msra.mxu0 0.0
          %4841 = vmatprep.subr.mxu0 0.0
          %4842 = vmatpush1.msra.mxu0 0.0
          %4843 = vmatprep.mubr.f32.mxu0 0.0
          %4844 = vmatmul.mubr.f32.gmra.mrb[0].mxu0 %v4777
          %v4845 = vpop.f32.mrb[0].mxu0
          %v4846 = vadd.f32 0.0, %v4845
          %v4847 = vpop.f32.mrb[0].mxu0
          %v4848 = vadd.f32 0.0, %v4847
          %4849 = vdwg.mxu0
          %v4850 = vld [vmem:[%s15] sm:$0xff]
          %v4851 = vld [vmem:[%s15 + $0x8] sm:$0xff]
          %v4852 = vld [vmem:[%s15 + $0x10] sm:$0xff]
          %v4853 = vld [vmem:[%s15 + $0x18] sm:$0xff]
          %v4854 = vld [vmem:[%s15 + $0x20] sm:$0xff]
          %v4855 = vld [vmem:[%s15 + $0x28] sm:$0xff]
          %v4856 = vld [vmem:[%s15 + $0x30] sm:$0xff]
          %v4857 = vld [vmem:[%s15 + $0x38] sm:$0xff]
          %v4858 = vld [vmem:[%s15 + $0x40] sm:$0xff]
          %vm4859 = vcmask 64512
          %v4861 = vsel %vm4859, %v4850, 0
          %v4864 = vsel %vm4859, %v4851, 0
          %v4867 = vsel %vm4859, %v4852, 0
          %v4870 = vsel %vm4859, %v4853, 0
          %v4873 = vsel %vm4859, %v4854, 0
          %v4876 = vsel %vm4859, %v4855, 0
          %v4879 = vsel %vm4859, %v4856, 0
          %v4882 = vsel %vm4859, %v4857, 0
          %v4885 = vsel %vm4859, %v4858, 0
          %4887 = vmatprep.subr.mxu0 %v4848
          %4888 = vmatpush1.msra.mxu0 %v4846
          %4889 = vmatprep.subr.mxu0 0.0
          %4890 = vmatpush1.msra.mxu0 0.0
          %4891 = vmatprep.subr.mxu0 0.0
          %4892 = vmatpush1.msra.mxu0 0.0
          %4893 = vmatprep.subr.mxu0 0.0
          %4894 = vmatpush1.msra.mxu0 0.0
          %4895 = vmatprep.subr.mxu0 0.0
          %4896 = vmatpush1.msra.mxu0 0.0
          %4897 = vmatprep.subr.mxu0 0.0
          %4898 = vmatpush1.msra.mxu0 0.0
          %4899 = vmatprep.subr.mxu0 0.0
          %4900 = vmatpush1.msra.mxu0 0.0
          %4901 = vmatprep.subr.mxu0 0.0
          %4902 = vmatpush1.msra.mxu0 0.0
          %4903 = vmatprep.subr.mxu0 0.0
          %4904 = vmatpush1.msra.mxu0 0.0
          %4905 = vmatprep.subr.mxu0 0.0
          %4906 = vmatpush1.msra.mxu0 0.0
          %4907 = vmatprep.subr.mxu0 0.0
          %4908 = vmatpush1.msra.mxu0 0.0
          %4909 = vmatprep.subr.mxu0 0.0
          %4910 = vmatpush1.msra.mxu0 0.0
          %4911 = vmatprep.subr.mxu0 0.0
          %4912 = vmatpush1.msra.mxu0 0.0
          %4913 = vmatprep.subr.mxu0 0.0
          %4914 = vmatpush1.msra.mxu0 0.0
          %4915 = vmatprep.subr.mxu0 0.0
          %4916 = vmatpush1.msra.mxu0 0.0
          %4917 = vmatprep.subr.mxu0 0.0
          %4918 = vmatpush1.msra.mxu0 0.0
          %4919 = vmatprep.subr.mxu0 0.0
          %4920 = vmatpush1.msra.mxu0 0.0
          %4921 = vmatprep.subr.mxu0 0.0
          %4922 = vmatpush1.msra.mxu0 0.0
          %4923 = vmatprep.subr.mxu0 0.0
          %4924 = vmatpush1.msra.mxu0 0.0
          %4925 = vmatprep.subr.mxu0 0.0
          %4926 = vmatpush1.msra.mxu0 0.0
          %4927 = vmatprep.subr.mxu0 0.0
          %4928 = vmatpush1.msra.mxu0 0.0
          %4929 = vmatprep.subr.mxu0 0.0
          %4930 = vmatpush1.msra.mxu0 0.0
          %4931 = vmatprep.subr.mxu0 0.0
          %4932 = vmatpush1.msra.mxu0 0.0
          %4933 = vmatprep.subr.mxu0 0.0
          %4934 = vmatpush1.msra.mxu0 0.0
          %4935 = vmatprep.subr.mxu0 0.0
          %4936 = vmatpush1.msra.mxu0 0.0
          %4937 = vmatprep.subr.mxu0 0.0
          %4938 = vmatpush1.msra.mxu0 0.0
          %4939 = vmatprep.subr.mxu0 0.0
          %4940 = vmatpush1.msra.mxu0 0.0
          %4941 = vmatprep.subr.mxu0 0.0
          %4942 = vmatpush1.msra.mxu0 0.0
          %4943 = vmatprep.subr.mxu0 0.0
          %4944 = vmatpush1.msra.mxu0 0.0
          %4945 = vmatprep.subr.mxu0 0.0
          %4946 = vmatpush1.msra.mxu0 0.0
          %4947 = vmatprep.subr.mxu0 0.0
          %4948 = vmatpush1.msra.mxu0 0.0
          %4949 = vmatprep.subr.mxu0 0.0
          %4950 = vmatpush1.msra.mxu0 0.0
          %4951 = vmatprep.mubr.f32.mxu0 0.0
          %4952 = vmatmul.mubr.f32.gmra.mrb[0].mxu0 %v4861
          %v4953 = vpop.f32.mrb[0].mxu0
          %v4954 = vadd.f32 0.0, %v4953
          %v4955 = vpop.f32.mrb[0].mxu0
          %v4956 = vadd.f32 0.0, %v4955
          %4957 = vmatprep.mubr.f32.mxu0 0.0
          %4958 = vmatmul.mubr.f32.gmra.mrb[0].mxu0 %v4864
          %v4959 = vpop.f32.mrb[0].mxu0
          %v4960 = vadd.f32 0.0, %v4959
          %v4961 = vpop.f32.mrb[0].mxu0
          %v4962 = vadd.f32 0.0, %v4961
          %4963 = vmatprep.mubr.f32.mxu0 0.0
          %4964 = vmatmul.mubr.f32.gmra.mrb[0].mxu0 %v4867
          %v4965 = vpop.f32.mrb[0].mxu0
          %v4966 = vadd.f32 0.0, %v4965
          %v4967 = vpop.f32.mrb[0].mxu0
          %v4968 = vadd.f32 0.0, %v4967
          %4969 = vmatprep.mubr.f32.mxu0 0.0
          %4970 = vmatmul.mubr.f32.gmra.mrb[0].mxu0 %v4870
          %v4971 = vpop.f32.mrb[0].mxu0
          %v4972 = vadd.f32 0.0, %v4971
          %v4973 = vpop.f32.mrb[0].mxu0
          %v4974 = vadd.f32 0.0, %v4973
          %4975 = vmatprep.mubr.f32.mxu0 0.0
          %4976 = vmatmul.mubr.f32.gmra.mrb[0].mxu0 %v4873
          %v4977 = vpop.f32.mrb[0].mxu0
          %v4978 = vadd.f32 0.0, %v4977
          %v4979 = vpop.f32.mrb[0].mxu0
          %v4980 = vadd.f32 0.0, %v4979
          %4981 = vmatprep.mubr.f32.mxu0 0.0
          %4982 = vmatmul.mubr.f32.gmra.mrb[0].mxu0 %v4876
          %v4983 = vpop.f32.mrb[0].mxu0
          %v4984 = vadd.f32 0.0, %v4983
          %v4985 = vpop.f32.mrb[0].mxu0
          %v4986 = vadd.f32 0.0, %v4985
          %4987 = vmatprep.mubr.f32.mxu0 0.0
          %4988 = vmatmul.mubr.f32.gmra.mrb[0].mxu0 %v4879
          %v4989 = vpop.f32.mrb[0].mxu0
          %v4990 = vadd.f32 0.0, %v4989
          %v4991 = vpop.f32.mrb[0].mxu0
          %v4992 = vadd.f32 0.0, %v4991
          %4993 = vmatprep.mubr.f32.mxu0 0.0
          %4994 = vmatmul.mubr.f32.gmra.mrb[0].mxu0 %v4882
          %v4995 = vpop.f32.mrb[0].mxu0
          %v4996 = vadd.f32 0.0, %v4995
          %v4997 = vpop.f32.mrb[0].mxu0
          %v4998 = vadd.f32 0.0, %v4997
          %4999 = vmatprep.mubr.f32.mxu0 0.0
          %5000 = vmatmul.mubr.f32.gmra.mrb[0].mxu0 %v4885
          %v5001 = vpop.f32.mrb[0].mxu0
          %v5002 = vadd.f32 0.0, %v5001
          %v5003 = vpop.f32.mrb[0].mxu0
          %v5004 = vadd.f32 0.0, %v5003
          %5005 = vdwg.mxu0
          %s5006 = scalar_lea.vmem %s13, 19
          %v5007 = vld [vmem:[%s5006] ss:$8 sm:$0x3]
          %v5009 = vlaneseq
          %v5010 = vshrl.u32 %v5009, 7
          %v5011 = vsub.s32 0, %v5010
          %v5012 = vrot.slane %v5007, %v5011
          %v5013 = vlaneseq
          %v5014 = vshrl.u32 %v5013, 7
          %v5015 = vsub.s32 1, %v5014
          %v5016 = vrot.slane %v5007, %v5015
          %v5019 = vadd.f32 %v4846, %v5012
          %v5020 = vadd.f32 %v4848, %v5016
          %v5021 = vld [vmem:[%s13] ss:$8 sm:$0x3]
          %v5023 = vlaneseq
          %v5024 = vshrl.u32 %v5023, 7
          %v5025 = vsub.s32 0, %v5024
          %v5026 = vrot.slane %v5021, %v5025
          %v5027 = vlaneseq
          %v5028 = vshrl.u32 %v5027, 7
          %v5029 = vsub.s32 1, %v5028
          %v5030 = vrot.slane %v5021, %v5029
          %v5033 = vmul.f32 %v4954, %v5026
          %v5034 = vmul.f32 %v4956, %v5030
          %v5035 = vadd.f32 %v5019, %v5033
          %v5036 = vadd.f32 %v5020, %v5034
          %s5037 = scalar_lea.vmem %s13, 1
          %v5038 = vld [vmem:[%s5037] ss:$8 sm:$0x3]
          %v5040 = vlaneseq
          %v5041 = vshrl.u32 %v5040, 7
          %v5042 = vsub.s32 0, %v5041
          %v5043 = vrot.slane %v5038, %v5042
          %v5044 = vlaneseq
          %v5045 = vshrl.u32 %v5044, 7
          %v5046 = vsub.s32 1, %v5045
          %v5047 = vrot.slane %v5038, %v5046
          %v5050 = vmul.f32 %v4960, %v5043
          %v5051 = vmul.f32 %v4962, %v5047
          %v5052 = vadd.f32 %v5035, %v5050
          %v5053 = vadd.f32 %v5036, %v5051
          %s5054 = scalar_lea.vmem %s13, 2
          %v5055 = vld [vmem:[%s5054] ss:$8 sm:$0x3]
          %v5057 = vlaneseq
          %v5058 = vshrl.u32 %v5057, 7
          %v5059 = vsub.s32 0, %v5058
          %v5060 = vrot.slane %v5055, %v5059
          %v5061 = vlaneseq
          %v5062 = vshrl.u32 %v5061, 7
          %v5063 = vsub.s32 1, %v5062
          %v5064 = vrot.slane %v5055, %v5063
          %v5067 = vmul.f32 %v4966, %v5060
          %v5068 = vmul.f32 %v4968, %v5064
          %v5069 = vadd.f32 %v5052, %v5067
          %v5070 = vadd.f32 %v5053, %v5068
          %s5071 = scalar_lea.vmem %s13, 3
          %v5072 = vld [vmem:[%s5071] ss:$8 sm:$0x3]
          %v5074 = vlaneseq
          %v5075 = vshrl.u32 %v5074, 7
          %v5076 = vsub.s32 0, %v5075
          %v5077 = vrot.slane %v5072, %v5076
          %v5078 = vlaneseq
          %v5079 = vshrl.u32 %v5078, 7
          %v5080 = vsub.s32 1, %v5079
          %v5081 = vrot.slane %v5072, %v5080
          %v5084 = vmul.f32 %v4972, %v5077
          %v5085 = vmul.f32 %v4974, %v5081
          %v5086 = vadd.f32 %v5069, %v5084
          %v5087 = vadd.f32 %v5070, %v5085
          %s5088 = scalar_lea.vmem %s13, 4
          %v5089 = vld [vmem:[%s5088] ss:$8 sm:$0x3]
          %v5091 = vlaneseq
          %v5092 = vshrl.u32 %v5091, 7
          %v5093 = vsub.s32 0, %v5092
          %v5094 = vrot.slane %v5089, %v5093
          %v5095 = vlaneseq
          %v5096 = vshrl.u32 %v5095, 7
          %v5097 = vsub.s32 1, %v5096
          %v5098 = vrot.slane %v5089, %v5097
          %v5101 = vmul.f32 %v4978, %v5094
          %v5102 = vmul.f32 %v4980, %v5098
          %v5103 = vadd.f32 %v5086, %v5101
          %v5104 = vadd.f32 %v5087, %v5102
          %s5105 = scalar_lea.vmem %s13, 5
          %v5106 = vld [vmem:[%s5105] ss:$8 sm:$0x3]
          %v5108 = vlaneseq
          %v5109 = vshrl.u32 %v5108, 7
          %v5110 = vsub.s32 0, %v5109
          %v5111 = vrot.slane %v5106, %v5110
          %v5112 = vlaneseq
          %v5113 = vshrl.u32 %v5112, 7
          %v5114 = vsub.s32 1, %v5113
          %v5115 = vrot.slane %v5106, %v5114
          %v5118 = vmul.f32 %v4984, %v5111
          %v5119 = vmul.f32 %v4986, %v5115
          %v5120 = vadd.f32 %v5103, %v5118
          %v5121 = vadd.f32 %v5104, %v5119
          %s5122 = scalar_lea.vmem %s13, 6
          %v5123 = vld [vmem:[%s5122] ss:$8 sm:$0x3]
          %v5125 = vlaneseq
          %v5126 = vshrl.u32 %v5125, 7
          %v5127 = vsub.s32 0, %v5126
          %v5128 = vrot.slane %v5123, %v5127
          %v5129 = vlaneseq
          %v5130 = vshrl.u32 %v5129, 7
          %v5131 = vsub.s32 1, %v5130
          %v5132 = vrot.slane %v5123, %v5131
          %v5135 = vmul.f32 %v4990, %v5128
          %v5136 = vmul.f32 %v4992, %v5132
          %v5137 = vadd.f32 %v5120, %v5135
          %v5138 = vadd.f32 %v5121, %v5136
          %s5139 = scalar_lea.vmem %s13, 7
          %v5140 = vld [vmem:[%s5139] ss:$8 sm:$0x3]
          %v5142 = vlaneseq
          %v5143 = vshrl.u32 %v5142, 7
          %v5144 = vsub.s32 0, %v5143
          %v5145 = vrot.slane %v5140, %v5144
          %v5146 = vlaneseq
          %v5147 = vshrl.u32 %v5146, 7
          %v5148 = vsub.s32 1, %v5147
          %v5149 = vrot.slane %v5140, %v5148
          %v5152 = vmul.f32 %v4996, %v5145
          %v5153 = vmul.f32 %v4998, %v5149
          %v5154 = vadd.f32 %v5137, %v5152
          %v5155 = vadd.f32 %v5138, %v5153
          %s5156 = scalar_lea.vmem %s13, 16
          %v5157 = vld [vmem:[%s5156] ss:$8 sm:$0x3]
          %v5159 = vlaneseq
          %v5160 = vshrl.u32 %v5159, 7
          %v5161 = vsub.s32 0, %v5160
          %v5162 = vrot.slane %v5157, %v5161
          %v5163 = vlaneseq
          %v5164 = vshrl.u32 %v5163, 7
          %v5165 = vsub.s32 1, %v5164
          %v5166 = vrot.slane %v5157, %v5165
          %v5169 = vmul.f32 %v5002, %v5162
          %v5170 = vmul.f32 %v5004, %v5166
          %v5171 = vadd.f32 %v5154, %v5169
          %v5172 = vadd.f32 %v5155, %v5170
          %5173 = vst [vmem:[#allocation17] sm:$0xff] %v5171
          %5174 = vst [vmem:[#allocation17 + $0x8] sm:$0xff] %v5172
        $region132: #{tpu_custom_call.1} parent=83 // pred_fallthru
          _
        // Predicated region
        $region133: #{tpu_custom_call.1} parent=83 // pred_check
          %p5175 = pneg %p415
        $region134: #{tpu_custom_call.1} parent=83 // pred_check_branch
          %5177 = sbr.rel (%p5175) target = $region136
        $region135: #{tpu_custom_call.1} parent=83 // pred_region
          %s5179 = ssub.s32 256, 256
          %5180 = vsyncadd [#allocation5], %s5179
          %s5182 = sshll.u32 [#allocation17], 4
          %s5183 = int_to_ptr.vmem [resolvable:$true] %s5182
          %5185 = dma.vmem_to_hbm [thread:$0]  %s5183, 256, %s16, [#allocation5]
        $region136: #{tpu_custom_call.1} parent=83 // pred_fallthru
          _
        // Predicated region
        $region137: #{tpu_custom_call.1} parent=83 // pred_check
          %p5186 = pneg %p415
        $region138: #{tpu_custom_call.1} parent=83 // pred_check_branch
          %5188 = sbr.rel (%p5186) target = $region140
        $region139: #{tpu_custom_call.1} parent=83 // pred_region
          %5189 = dma.done [#allocation5], 256
        $region140: #{tpu_custom_call.1} parent=83 // pred_fallthru
          _
      $region84: #{tpu_custom_call.1} parent=5 // pred_fallthru
        _
      %p5190 = scmp.le.s32.totalorder 2, %s26
      // Predicated region
      $region141: #{tpu_custom_call.1} parent=5 // pred_check
        %p5191 = pneg %p5190
      $region142: #{tpu_custom_call.1} parent=5 // pred_check_branch
        %5193 = sbr.rel (%p5191) target = $region144
      $region143: #{tpu_custom_call.1} parent=5 // pred_region
        %s5194 = ssub.s32 %s26, 2
      $region144: #{tpu_custom_call.1} parent=5 // pred_fallthru
        _
    $region6: #{tpu_custom_call.1} parent=1 // loop_footer
      %s30 = sadd.s32 1, %s26
    $region7: #{tpu_custom_call.1} parent=1 // loop_footer_branch
      %25 = sbr.rel target = $region3
    $region8: #{tpu_custom_call.1} parent=1 // loop_exit
      _
    %5195 = vsyncpa [#allocation4], 1
    %s5196 = scalar_lea.sflag [#allocation4], 1
    %5197 = vsyncpa %s5196, 1
    %5198 = vsyncpa [#allocation7], 1
    %5199 = vsyncpa [#allocation16], 1
    %5200 = vsyncpa [#allocation5], 1
    %s5201 = scalar_lea.sflag [#allocation5], 1
    %5202 = vsyncpa %s5201, 1

</llo_original>
